<compile_context>
chip_gen: v6e
topology: v6e:2x2x1
jax: 0.10.0
libtpu: 0.0.40
codegen_flags: <defaults>
</compile_context>

<pallas_src>
import functools
import math

import jax
import jax.numpy as jnp
from jax import lax
from jax.experimental import pallas as pl
from jax.experimental.pallas import tpu as pltpu


# ----------------------------------------------------------------------------
# Tiling helpers
# ----------------------------------------------------------------------------

_ROW_TILES = (512, 256, 128, 64, 32, 16, 8)      # sublane axis: multiples of 8
_LANE_TILES = (1024, 512, 256, 128)              # lane axis:    multiples of 128


def _pick_tile(n, candidates, min_steps=1):
    """Largest candidate that divides n (and yields >= min_steps grid steps)."""
    for c in candidates:
        if c <= n and n % c == 0 and n // c >= min_steps:
            return c
    return n


def _head_group(num_heads, head_dim):
    """Smallest head-group size whose lane width is a multiple of 128 (else all heads)."""
    g = 1
    while g < num_heads and (g * head_dim) % 128 != 0:
        g += 1
    if (g * head_dim) % 128 != 0 or num_heads % g != 0:
        g = num_heads
    return g


def _layernorm(z, gamma, beta, eps):
    mu = jnp.mean(z, axis=-1, keepdims=True)
    var = jnp.mean(jnp.square(z - mu), axis=-1, keepdims=True)
    return (z - mu) * lax.rsqrt(var + eps) * gamma + beta


# ----------------------------------------------------------------------------
# Kernel 1: embedding (sqrt(H) pre-folded) + positional-encoding add
# ----------------------------------------------------------------------------

def _embed_pos_kernel(e_ref, p_ref, o_ref):
    o_ref[...] = e_ref[...] + p_ref[...]


def embed_pos(emb, pos):
    B, S, H = emb.shape
    ts = _pick_tile(S, _ROW_TILES)
    blk = pl.BlockSpec((1, ts, H), lambda b, s: (b, s, 0))
    pos_blk = pl.BlockSpec((1, ts, H), lambda b, s: (0, s, 0))
    return pl.pallas_call(
        _embed_pos_kernel,
        out_shape=jax.ShapeDtypeStruct((B, S, H), jnp.float32),
        grid=(B, S // ts),
        in_specs=[blk, pos_blk],
        out_specs=blk,
        compiler_params=pltpu.CompilerParams(
            dimension_semantics=("parallel", "parallel")),
    )(emb, pos)


# ----------------------------------------------------------------------------
# Kernel 2: tiled linear (fused QKV projection), bf16 weights, bf16 output
# ----------------------------------------------------------------------------

def _linear_kernel(x_ref, w_ref, b_ref, o_ref, acc_ref, *, activation):
    @pl.when(pl.program_id(2) == 0)
    def _():
        acc_ref[...] = jnp.zeros_like(acc_ref)

    acc_ref[...] += jnp.dot(
        x_ref[...].astype(jnp.bfloat16), w_ref[...],
        preferred_element_type=jnp.float32)

    @pl.when(pl.program_id(2) == pl.num_programs(2) - 1)
    def _():
        y = acc_ref[...] + b_ref[...]
        if activation == "relu":
            y = jnp.maximum(y, 0.0)
        o_ref[...] = y.astype(o_ref.dtype)


def fused_linear(x, w, b, activation=None, out_dtype=jnp.bfloat16):
    M, K = x.shape
    N = w.shape[1]
    tm = _pick_tile(M, _ROW_TILES, min_steps=2)
    tn = _pick_tile(N, _LANE_TILES)
    tk = _pick_tile(K, _LANE_TILES)
    return pl.pallas_call(
        functools.partial(_linear_kernel, activation=activation),
        out_shape=jax.ShapeDtypeStruct((M, N), out_dtype),
        grid_spec=pltpu.PrefetchScalarGridSpec(
            num_scalar_prefetch=0,
            grid=(M // tm, N // tn, K // tk),
            in_specs=[
                pl.BlockSpec((tm, tk), lambda i, j, k: (i, k)),
                pl.BlockSpec((tk, tn), lambda i, j, k: (k, j)),
                pl.BlockSpec((1, tn), lambda i, j, k: (0, j)),
            ],
            out_specs=pl.BlockSpec((tm, tn), lambda i, j, k: (i, j)),
            scratch_shapes=[pltpu.VMEM((tm, tn), jnp.float32)],
        ),
        compiler_params=pltpu.CompilerParams(
            dimension_semantics=("parallel", "parallel", "arbitrary")),
    )(x, w, b.reshape(1, N))


# ----------------------------------------------------------------------------
# Kernel 3: multi-head self-attention
#   - grouped path: heads in the grid, per-group q/k/v BlockSpecs, lane-dense
#     per-group output blocks, query axis tiled.
#   - fallback path: one (1,S,3H) block per batch, heads unrolled in-kernel,
#     single coalesced [S,H] store (used when the group lane width < 128).
# ----------------------------------------------------------------------------

def _mha_grouped_kernel(q_ref, k_ref, v_ref, o_ref, *, heads_per_blk, head_dim):
    q = q_ref[0]                                   # [tq, g*Dh] bf16 (scale folded in Wq)
    k = k_ref[0]                                   # [S,  g*Dh] bf16
    v = v_ref[0]                                   # [S,  g*Dh] bf16
    outs = []
    for h in range(heads_per_blk):                 # g == 1 for Dh % 128 == 0 (no slicing)
        lo = h * head_dim
        s = lax.dot_general(q[:, lo:lo + head_dim], k[:, lo:lo + head_dim],
                            (((1,), (1,)), ((), ())),
                            preferred_element_type=jnp.float32)
        s = s - jnp.max(s, axis=-1, keepdims=True)
        p = jnp.exp(s)
        p = p * pl.reciprocal(jnp.sum(p, axis=-1, keepdims=True), approx=True)
        outs.append(jnp.dot(p.astype(v.dtype), v[:, lo:lo + head_dim],
                            preferred_element_type=jnp.float32))
    o = outs[0] if heads_per_blk == 1 else jnp.concatenate(outs, axis=-1)
    o_ref[0] = o.astype(o_ref.dtype)               # lane-dense [tq, g*Dh] store


def _mha_full_kernel(qkv_ref, o_ref, *, num_heads, head_dim, hidden):
    qkv = qkv_ref[0]                               # [S, 3H] bf16
    outs = []
    for h in range(num_heads):                     # static unroll over heads
        lo = h * head_dim
        q = qkv[:, lo:lo + head_dim]
        k = qkv[:, hidden + lo:hidden + lo + head_dim]
        v = qkv[:, 2 * hidden + lo:2 * hidden + lo + head_dim]
        s = lax.dot_general(q, k, (((1,), (1,)), ((), ())),
                            preferred_element_type=jnp.float32)
        s = s - jnp.max(s, axis=-1, keepdims=True)
        p = jnp.exp(s)
        p = p * pl.reciprocal(jnp.sum(p, axis=-1, keepdims=True), approx=True)
        outs.append(jnp.dot(p.astype(v.dtype), v, preferred_element_type=jnp.float32))
    o = outs[0] if num_heads == 1 else jnp.concatenate(outs, axis=-1)
    o_ref[0] = o.astype(o_ref.dtype)               # single coalesced [S, H] store


def mha_fused(qkv, num_heads, H):
    B, S, H3 = qkv.shape
    Dh = H // num_heads
    g = _head_group(num_heads, Dh)
    gw = g * Dh                                    # lane width of one head group

    if gw % 128 == 0:
        # Optimized path: heads (groups) live on the grid; BlockSpec slices qkv.
        ngrp = num_heads // g
        tq = _pick_tile(S, _ROW_TILES)
        q_spec = pl.BlockSpec((1, tq, gw), lambda b, gi, qi: (b, qi, gi))
        k_spec = pl.BlockSpec((1, S, gw), lambda b, gi, qi: (b, 0, ngrp + gi))
        v_spec = pl.BlockSpec((1, S, gw), lambda b, gi, qi: (b, 0, 2 * ngrp + gi))
        o_spec = pl.BlockSpec((1, tq, gw), lambda b, gi, qi: (b, qi, gi))
        return pl.pallas_call(
            functools.partial(_mha_grouped_kernel, heads_per_blk=g, head_dim=Dh),
            out_shape=jax.ShapeDtypeStruct((B, S, H), qkv.dtype),
            grid=(B, ngrp, S // tq),
            in_specs=[q_spec, k_spec, v_spec],
            out_specs=o_spec,
            compiler_params=pltpu.CompilerParams(
                dimension_semantics=("parallel", "parallel", "parallel")),
        )(qkv, qkv, qkv)

    # Fallback (small / odd head dims, e.g. toy Dh=16): full-width blocks,
    # heads handled in-kernel, single lane-dense [S, H] store.
    blk_in = pl.BlockSpec((1, S, H3), lambda b: (b, 0, 0))
    blk_out = pl.BlockSpec((1, S, H), lambda b: (b, 0, 0))
    return pl.pallas_call(
        functools.partial(_mha_full_kernel, num_heads=num_heads, head_dim=Dh, hidden=H),
        out_shape=jax.ShapeDtypeStruct((B, S, H), qkv.dtype),
        grid=(B,),
        in_specs=[blk_in],
        out_specs=blk_out,
        compiler_params=pltpu.CompilerParams(dimension_semantics=("parallel",)),
    )(qkv)


# ----------------------------------------------------------------------------
# Kernel 4: attention output projection + residual + LayerNorm (fused epilogue)
# ----------------------------------------------------------------------------

def _proj_add_ln_kernel(a_ref, r_ref, w_ref, b_ref, g_ref, be_ref, o_ref, *, eps):
    y = jnp.dot(a_ref[...], w_ref[...], preferred_element_type=jnp.float32) + b_ref[...]
    z = r_ref[...] + y
    o_ref[...] = _layernorm(z, g_ref[...], be_ref[...], eps)


def proj_add_ln(a, res, w, b, gamma, beta, eps):
    M, H = a.shape
    tm = _pick_tile(M, _ROW_TILES, min_steps=2)
    row = pl.BlockSpec((tm, H), lambda i: (i, 0))
    wmat = pl.BlockSpec((H, H), lambda i: (0, 0))    # bf16 resident weight (2 MiB @ H=1024)
    vec = pl.BlockSpec((1, H), lambda i: (0, 0))
    return pl.pallas_call(
        functools.partial(_proj_add_ln_kernel, eps=eps),
        out_shape=jax.ShapeDtypeStruct((M, H), jnp.float32),
        grid=(M // tm,),
        in_specs=[row, row, wmat, vec, vec, vec],
        out_specs=row,
        compiler_params=pltpu.CompilerParams(dimension_semantics=("parallel",)),
    )(a, res, w, b.reshape(1, H), gamma.reshape(1, H), beta.reshape(1, H))


# ----------------------------------------------------------------------------
# Kernel 5: FFN (Linear -> ReLU -> Linear) + residual + LayerNorm, d_ff tiled on
#           the grid so VMEM stays bounded; [tm, tf] intermediate never hits HBM.
# ----------------------------------------------------------------------------

def _ffn_add_ln_kernel(x_ref, w1_ref, b1_ref, w2_ref, b2_ref, g_ref, be_ref, o_ref,
                       acc_ref, *, eps):
    f = pl.program_id(1)

    @pl.when(f == 0)
    def _():
        acc_ref[...] = jnp.zeros_like(acc_ref)

    x = x_ref[...]                                          # [tm, H] f32 residual
    h = jnp.dot(x.astype(jnp.bfloat16), w1_ref[...],
                preferred_element_type=jnp.float32) + b1_ref[...]
    h = jnp.maximum(h, 0.0).astype(jnp.bfloat16)            # bf16 [tm, tf] intermediate
    acc_ref[...] += jnp.dot(h, w2_ref[...], preferred_element_type=jnp.float32)

    @pl.when(f == pl.num_programs(1) - 1)
    def _():
        z = x + acc_ref[...] + b2_ref[...]
        o_ref[...] = _layernorm(z, g_ref[...], be_ref[...], eps)


def ffn_add_ln(x, w1, b1, w2, b2, gamma, beta, eps):
    M, H = x.shape
    F = w1.shape[1]
    tm = _pick_tile(M, _ROW_TILES, min_steps=2)
    tf = _pick_tile(F, _LANE_TILES)                 # bounds w1/w2/intermediate VMEM
    row = pl.BlockSpec((tm, H), lambda i, f: (i, 0))
    w1s = pl.BlockSpec((H, tf), lambda i, f: (0, f))
    b1s = pl.BlockSpec((1, tf), lambda i, f: (0, f))
    w2s = pl.BlockSpec((tf, H), lambda i, f: (f, 0))
    vh = pl.BlockSpec((1, H), lambda i, f: (0, 0))
    return pl.pallas_call(
        functools.partial(_ffn_add_ln_kernel, eps=eps),
        out_shape=jax.ShapeDtypeStruct((M, H), jnp.float32),
        grid_spec=pltpu.PrefetchScalarGridSpec(
            num_scalar_prefetch=0,
            grid=(M // tm, F // tf),
            in_specs=[row, w1s, b1s, w2s, vh, vh, vh],
            out_specs=row,
            scratch_shapes=[pltpu.VMEM((tm, H), jnp.float32)],
        ),
        compiler_params=pltpu.CompilerParams(
            dimension_semantics=("parallel", "arbitrary")),
    )(x, w1, b1.reshape(1, F), w2, b2.reshape(1, H),
      gamma.reshape(1, H), beta.reshape(1, H))


# ----------------------------------------------------------------------------
# Plain-JAX glue: positional encoding, parameters, layer orchestration
# ----------------------------------------------------------------------------

def positional_encoding(S, H):
    pos = jnp.arange(S, dtype=jnp.float32)[:, None]
    i = jnp.arange(H, dtype=jnp.float32)[None, :]
    rates = 1.0 / jnp.power(10000.0, (2.0 * jnp.floor(i / 2.0)) / H)
    angles = pos * rates
    even = (jnp.arange(H)[None, :] % 2) == 0
    pe = jnp.where(even, jnp.sin(angles), jnp.cos(angles))
    return pe[None].astype(jnp.float32)             # [1, S, H]


def init_params(key, N, num_heads, vocab_size, H, d_ff):
    keys = jax.random.split(key, 1 + N * 12)
    ki = 0

    def draw(shape):
        nonlocal ki
        w = jax.random.normal(keys[ki], shape, jnp.float32) * 0.02
        ki += 1
        return w

    Dh = H // num_heads
    inv_sqrt_dh = 1.0 / math.sqrt(Dh)
    # sqrt(H) embedding scale folded into the table.
    params = {"embedding": draw((vocab_size, H)) * math.sqrt(H)}
    layers = []
    for _ in range(N):
        wq, bq = draw((H, H)), draw((H,))
        wk, bk = draw((H, H)), draw((H,))
        wv, bv = draw((H, H)), draw((H,))
        layers.append(dict(
            # fused QKV weight; 1/sqrt(Dh) folded into Q columns; bf16 in HBM.
            wqkv=jnp.concatenate([wq * inv_sqrt_dh, wk, wv], axis=1).astype(jnp.bfloat16),
            bqkv=jnp.concatenate([bq * inv_sqrt_dh, bk, bv], axis=0),
            wo=draw((H, H)).astype(jnp.bfloat16), bo=draw((H,)),
            w1=draw((H, d_ff)).astype(jnp.bfloat16), b1=draw((d_ff,)),
            w2=draw((d_ff, H)).astype(jnp.bfloat16), b2=draw((H,)),
            g1=jnp.ones((H,), jnp.float32), be1=jnp.zeros((H,), jnp.float32),
            g2=jnp.ones((H,), jnp.float32), be2=jnp.zeros((H,), jnp.float32),
        ))
    params["layers"] = layers
    return params


def encoder_forward(tokens, params, num_heads, H, eps=1e-6):
    B, S = tokens.shape

    # Embedding gather (glue; sqrt(H) already folded into the table) + positional add.
    emb = jnp.take(params["embedding"], tokens, axis=0)        # [B, S, H] f32
    pos = positional_encoding(S, H)
    x = embed_pos(emb, pos)                                    # [B, S, H] f32

    for lp in params["layers"]:
        xf = x.reshape(B * S, H)                               # f32 residual stream

        # Fused QKV projection -> bf16 activation (halves qkv HBM traffic).
        qkv = fused_linear(xf, lp["wqkv"], lp["bqkv"])         # [B*S, 3H] bf16

        # Multi-head attention (heads on the grid when lane widths allow).
        a = mha_fused(qkv.reshape(B, S, 3 * H), num_heads, H)  # [B, S, H] bf16

        # Output projection + residual + LayerNorm (fused epilogue, f32 out).
        x1 = proj_add_ln(a.reshape(B * S, H), xf, lp["wo"], lp["bo"],
                         lp["g1"], lp["be1"], eps)

        # FFN + residual + LayerNorm (fused, d_ff grid-tiled, f32 out).
        x2 = ffn_add_ln(x1, lp["w1"], lp["b1"], lp["w2"], lp["b2"],
                        lp["g2"], lp["be2"], eps)

        x = x2.reshape(B, S, H)

    return x


if __name__ == "__main__":
    key = jax.random.PRNGKey(0)

    # Config 1: toy config consistent with Encoder(N=2, head_size=2, vocab_size=50,
    # hidden_size=32, d_ff=64).  Dh=16 -> exercises the full-width attention fallback.
    N, num_heads, vocab_size, H, d_ff = 2, 2, 50, 32, 64
    B, S = 2, 8
    pkey, tkey, key = jax.random.split(key, 3)
    params = init_params(pkey, N, num_heads, vocab_size, H, d_ff)
    tokens = jax.random.randint(tkey, (B, S), 0, vocab_size, dtype=jnp.int32)
    fwd = jax.jit(functools.partial(encoder_forward, num_heads=num_heads, H=H))
    out = fwd(tokens, params)
    jax.block_until_ready(out)
    assert out.shape == (B, S, H) and out.dtype == jnp.float32

    # Config 2: small config with Dh=128 -> exercises the head-in-grid attention path.
    N2, nh2, vs2, H2, ff2 = 1, 2, 50, 256, 512
    B2, S2 = 2, 16
    pkey2, tkey2 = jax.random.split(key)
    params2 = init_params(pkey2, N2, nh2, vs2, H2, ff2)
    tokens2 = jax.random.randint(tkey2, (B2, S2), 0, vs2, dtype=jnp.int32)
    fwd2 = jax.jit(functools.partial(encoder_forward, num_heads=nh2, H=H2))
    out2 = fwd2(tokens2, params2)
    jax.block_until_ready(out2)
    assert out2.shape == (B2, S2, H2) and out2.dtype == jnp.float32

    print("KERNEL_OK")
</pallas_src>

<mosaic_0001>
module attributes {stable_mosaic.version = 11 : i64} {
  func.func @_embed_pos_kernel(%arg0: i32, %arg1: i32, %arg2: memref<1x8x32xf32, #tpu.memory_space<vmem>>, %arg3: memref<1x8x32xf32, #tpu.memory_space<vmem>>, %arg4: memref<1x8x32xf32, #tpu.memory_space<vmem>>) attributes {dimension_semantics = [#tpu.dimension_semantics<parallel>, #tpu.dimension_semantics<parallel>], iteration_bounds = array<i64: 2, 1>, scalar_prefetch = 0 : i64, scratch_operands = 0 : i64, tpu.core_type = #tpu.core_type<tc>, window_params = [{transform_indices = @transform_0, window_bounds = array<i64: 1, 8, 32>}, {transform_indices = @transform_1, window_bounds = array<i64: 1, 8, 32>}, {transform_indices = @transform_2, window_bounds = array<i64: 1, 8, 32>}]} {
    %c0 = arith.constant 0 : index
    %c0_0 = arith.constant 0 : index
    %c0_1 = arith.constant 0 : index
    %0 = vector.load %arg2[%c0, %c0_0, %c0_1] : memref<1x8x32xf32, #tpu.memory_space<vmem>>, vector<1x8x32xf32>
    %c0_2 = arith.constant 0 : index
    %c0_3 = arith.constant 0 : index
    %c0_4 = arith.constant 0 : index
    %1 = vector.load %arg3[%c0_2, %c0_3, %c0_4] : memref<1x8x32xf32, #tpu.memory_space<vmem>>, vector<1x8x32xf32>
    %2 = arith.addf %0, %1 : vector<1x8x32xf32>
    %c0_5 = arith.constant 0 : index
    %c0_6 = arith.constant 0 : index
    %c0_7 = arith.constant 0 : index
    %3 = vector.load %arg4[%c0_5, %c0_6, %c0_7] : memref<1x8x32xf32, #tpu.memory_space<vmem>>, vector<1x8x32xf32>
    tpu.vector_store %arg4[%c0_5, %c0_6, %c0_7], %2 {strides = array<i32>} : memref<1x8x32xf32, #tpu.memory_space<vmem>>, vector<1x8x32xf32>,
    return
  }
  func.func @transform_0(%arg0: i32, %arg1: i32) -> (i32, i32, i32) {
    %c0_i32 = arith.constant 0 : i32
    %c0_i32_0 = arith.constant 0 : i32
    return %arg0, %arg1, %c0_i32 : i32, i32, i32
  }
  func.func @transform_1(%arg0: i32, %arg1: i32) -> (i32, i32, i32) {
    %c0_i32 = arith.constant 0 : i32
    %c0_i32_0 = arith.constant 0 : i32
    %c0_i32_1 = arith.constant 0 : i32
    return %c0_i32, %arg1, %c0_i32_0 : i32, i32, i32
  }
  func.func @transform_2(%arg0: i32, %arg1: i32) -> (i32, i32, i32) {
    %c0_i32 = arith.constant 0 : i32
    %c0_i32_0 = arith.constant 0 : i32
    return %arg0, %arg1, %c0_i32 : i32, i32, i32
  }
}

module attributes {stable_mosaic.version = 11 : i64} {
  func.func @_mha_full_kernel(%arg0: i32, %arg1: memref<1x8x96xbf16, #tpu.memory_space<vmem>>, %arg2: memref<1x8x32xbf16, #tpu.memory_space<vmem>>) attributes {dimension_semantics = [#tpu.dimension_semantics<parallel>], iteration_bounds = array<i64: 2>, scalar_prefetch = 0 : i64, scratch_operands = 0 : i64, tpu.core_type = #tpu.core_type<tc>, window_params = [{transform_indices = @transform_0, window_bounds = array<i64: 1, 8, 96>}, {transform_indices = @transform_1, window_bounds = array<i64: 1, 8, 32>}]} {
    %c0 = arith.constant 0 : index
    %c0_0 = arith.constant 0 : index
    %c0_1 = arith.constant 0 : index
    %0 = vector.load %arg1[%c0, %c0_0, %c0_1] : memref<1x8x96xbf16, #tpu.memory_space<vmem>>, vector<1x8x96xbf16>
    %1 = vector.shape_cast %0 : vector<1x8x96xbf16> to vector<8x96xbf16>
    %2 = vector.extract_strided_slice %1 {offsets = [0, 0], sizes = [8, 16], strides = [1, 1]} : vector<8x96xbf16> to vector<8x16xbf16>
    %3 = vector.extract_strided_slice %1 {offsets = [0, 32], sizes = [8, 16], strides = [1, 1]} : vector<8x96xbf16> to vector<8x16xbf16>
    %4 = vector.extract_strided_slice %1 {offsets = [0, 64], sizes = [8, 16], strides = [1, 1]} : vector<8x96xbf16> to vector<8x16xbf16>
    %cst = arith.constant dense<0.000000e+00> : vector<8x8xf32>
    %5 = tpu.matmul %2, %3, %cst {dimension_numbers = #tpu.dot_dimension_numbers<[1], [1], [0], [0], [0, 0, 1, 0], [], []>} : vector<8x16xbf16>, vector<8x16xbf16>, vector<8x8xf32> -> vector<8x8xf32>
    %cst_2 = arith.constant dense<0xFF800000> : vector<8xf32>
    %6 = vector.multi_reduction <maximumf>, %5, %cst_2 [1] : vector<8x8xf32> to vector<8xf32>
    %7 = vector.shape_cast %6 : vector<8xf32> to vector<8x1xf32>
    %8 = vector.broadcast %7 : vector<8x1xf32> to vector<8x8xf32>
    %9 = arith.subf %5, %8 : vector<8x8xf32>
    %10 = math.exp %9 : vector<8x8xf32>
    %cst_3 = arith.constant dense<0.000000e+00> : vector<8xf32>
    %11 = vector.multi_reduction <add>, %10, %cst_3 [1] : vector<8x8xf32> to vector<8xf32>
    %12 = vector.shape_cast %11 : vector<8xf32> to vector<8x1xf32>
    %13 = tpu.reciprocal %12 {approx = true} : vector<8x1xf32> -> vector<8x1xf32>
    %14 = vector.broadcast %13 : vector<8x1xf32> to vector<8x8xf32>
    %15 = arith.mulf %10, %14 : vector<8x8xf32>
    %16 = arith.truncf %15 : vector<8x8xf32> to vector<8x8xbf16>
    %cst_4 = arith.constant dense<0.000000e+00> : vector<8x16xf32>
    %17 = tpu.matmul %16, %4, %cst_4 {dimension_numbers = #tpu.dot_dimension_numbers<[1], [0], [0], [1], [0, 0, 1, 1], [], []>} : vector<8x8xbf16>, vector<8x16xbf16>, vector<8x16xf32> -> vector<8x16xf32>
    %18 = vector.extract_strided_slice %1 {offsets = [0, 16], sizes = [8, 16], strides = [1, 1]} : vector<8x96xbf16> to vector<8x16xbf16>
    %19 = vector.extract_strided_slice %1 {offsets = [0, 48], sizes = [8, 16], strides = [1, 1]} : vector<8x96xbf16> to vector<8x16xbf16>
    %20 = vector.extract_strided_slice %1 {offsets = [0, 80], sizes = [8, 16], strides = [1, 1]} : vector<8x96xbf16> to vector<8x16xbf16>
    %cst_5 = arith.constant dense<0.000000e+00> : vector<8x8xf32>
    %21 = tpu.matmul %18, %19, %cst_5 {dimension_numbers = #tpu.dot_dimension_numbers<[1], [1], [0], [0], [0, 0, 1, 0], [], []>} : vector<8x16xbf16>, vector<8x16xbf16>, vector<8x8xf32> -> vector<8x8xf32>
    %cst_6 = arith.constant dense<0xFF800000> : vector<8xf32>
    %22 = vector.multi_reduction <maximumf>, %21, %cst_6 [1] : vector<8x8xf32> to vector<8xf32>
    %23 = vector.shape_cast %22 : vector<8xf32> to vector<8x1xf32>
    %24 = vector.broadcast %23 : vector<8x1xf32> to vector<8x8xf32>
    %25 = arith.subf %21, %24 : vector<8x8xf32>
    %26 = math.exp %25 : vector<8x8xf32>
    %cst_7 = arith.constant dense<0.000000e+00> : vector<8xf32>
    %27 = vector.multi_reduction <add>, %26, %cst_7 [1] : vector<8x8xf32> to vector<8xf32>
    %28 = vector.shape_cast %27 : vector<8xf32> to vector<8x1xf32>
    %29 = tpu.reciprocal %28 {approx = true} : vector<8x1xf32> -> vector<8x1xf32>
    %30 = vector.broadcast %29 : vector<8x1xf32> to vector<8x8xf32>
    %31 = arith.mulf %26, %30 : vector<8x8xf32>
    %32 = arith.truncf %31 : vector<8x8xf32> to vector<8x8xbf16>
    %cst_8 = arith.constant dense<0.000000e+00> : vector<8x16xf32>
    %33 = tpu.matmul %32, %20, %cst_8 {dimension_numbers = #tpu.dot_dimension_numbers<[1], [0], [0], [1], [0, 0, 1, 1], [], []>} : vector<8x8xbf16>, vector<8x16xbf16>, vector<8x16xf32> -> vector<8x16xf32>
    %34 = tpu.concatenate %17, %33 in 1 : vector<8x16xf32>, vector<8x16xf32> -> vector<8x32xf32>
    %35 = arith.truncf %34 : vector<8x32xf32> to vector<8x32xbf16>
    %c0_9 = arith.constant 0 : index
    %c0_10 = arith.constant 0 : index
    %c0_11 = arith.constant 0 : index
    %36 = vector.load %arg2[%c0_9, %c0_10, %c0_11] : memref<1x8x32xbf16, #tpu.memory_space<vmem>>, vector<1x8x32xbf16>
    %37 = vector.shape_cast %36 : vector<1x8x32xbf16> to vector<8x32xbf16>
    %38 = vector.shape_cast %35 : vector<8x32xbf16> to vector<1x8x32xbf16>
    tpu.vector_store %arg2[%c0_9, %c0_10, %c0_11], %38 {strides = array<i32>} : memref<1x8x32xbf16, #tpu.memory_space<vmem>>, vector<1x8x32xbf16>,
    return
  }
  func.func @transform_0(%arg0: i32) -> (i32, i32, i32) {
    %c0_i32 = arith.constant 0 : i32
    %c0_i32_0 = arith.constant 0 : i32
    %c0_i32_1 = arith.constant 0 : i32
    return %arg0, %c0_i32, %c0_i32_0 : i32, i32, i32
  }
  func.func @transform_1(%arg0: i32) -> (i32, i32, i32) {
    %c0_i32 = arith.constant 0 : i32
    %c0_i32_0 = arith.constant 0 : i32
    %c0_i32_1 = arith.constant 0 : i32
    return %arg0, %c0_i32, %c0_i32_0 : i32, i32, i32
  }
}

module attributes {stable_mosaic.version = 11 : i64} {
  func.func @_linear_kernel(%arg0: i32, %arg1: i32, %arg2: i32, %arg3: memref<8x32xf32, #tpu.memory_space<vmem>>, %arg4: memref<32x96xbf16, #tpu.memory_space<vmem>>, %arg5: memref<1x96xf32, #tpu.memory_space<vmem>>, %arg6: memref<8x96xbf16, #tpu.memory_space<vmem>>, %arg7: memref<8x96xf32, #tpu.memory_space<vmem>>) attributes {dimension_semantics = [#tpu.dimension_semantics<parallel>, #tpu.dimension_semantics<parallel>, #tpu.dimension_semantics<arbitrary>], iteration_bounds = array<i64: 2, 1, 1>, scalar_prefetch = 0 : i64, scratch_operands = 1 : i64, tpu.core_type = #tpu.core_type<tc>, window_params = [{transform_indices = @transform_0, window_bounds = array<i64: 8, 32>}, {transform_indices = @transform_1, window_bounds = array<i64: 32, 96>}, {transform_indices = @transform_2, window_bounds = array<i64: 1, 96>}, {transform_indices = @transform_3, window_bounds = array<i64: 8, 96>}]} {
    %c0_i32 = arith.constant 0 : i32
    %0 = arith.cmpi eq, %arg2, %c0_i32 : i32
    %1 = arith.extui %0 : i1 to i32
    %c0_i32_0 = arith.constant 0 : i32
    %2 = arith.cmpi ne, %1, %c0_i32_0 : i32
    scf.if %2 {
      %cst_10 = arith.constant 0.000000e+00 : f32
      %13 = vector.broadcast %cst_10 : f32 to vector<8x96xf32>
      %c0_11 = arith.constant 0 : index
      %c0_12 = arith.constant 0 : index
      %14 = vector.load %arg7[%c0_11, %c0_12] : memref<8x96xf32, #tpu.memory_space<vmem>>, vector<8x96xf32>
      tpu.vector_store %arg7[%c0_11, %c0_12], %13 {strides = array<i32>} : memref<8x96xf32, #tpu.memory_space<vmem>>, vector<8x96xf32>,
    } else {
    }
    %c0 = arith.constant 0 : index
    %c0_1 = arith.constant 0 : index
    %3 = vector.load %arg7[%c0, %c0_1] : memref<8x96xf32, #tpu.memory_space<vmem>>, vector<8x96xf32>
    %c0_2 = arith.constant 0 : index
    %c0_3 = arith.constant 0 : index
    %4 = vector.load %arg3[%c0_2, %c0_3] : memref<8x32xf32, #tpu.memory_space<vmem>>, vector<8x32xf32>
    %5 = arith.truncf %4 : vector<8x32xf32> to vector<8x32xbf16>
    %c0_4 = arith.constant 0 : index
    %c0_5 = arith.constant 0 : index
    %6 = vector.load %arg4[%c0_4, %c0_5] : memref<32x96xbf16, #tpu.memory_space<vmem>>, vector<32x96xbf16>
    %cst = arith.constant dense<0.000000e+00> : vector<8x96xf32>
    %7 = tpu.matmul %5, %6, %cst {dimension_numbers = #tpu.dot_dimension_numbers<[1], [0], [0], [1], [0, 0, 1, 1], [], []>} : vector<8x32xbf16>, vector<32x96xbf16>, vector<8x96xf32> -> vector<8x96xf32>
    %8 = arith.addf %3, %7 : vector<8x96xf32>
    %c0_6 = arith.constant 0 : index
    %c0_7 = arith.constant 0 : index
    %9 = vector.load %arg7[%c0_6, %c0_7] : memref<8x96xf32, #tpu.memory_space<vmem>>, vector<8x96xf32>
    tpu.vector_store %arg7[%c0_6, %c0_7], %8 {strides = array<i32>} : memref<8x96xf32, #tpu.memory_space<vmem>>, vector<8x96xf32>,
    %c0_i32_8 = arith.constant 0 : i32
    %10 = arith.cmpi eq, %arg2, %c0_i32_8 : i32
    %11 = arith.extui %10 : i1 to i32
    %c0_i32_9 = arith.constant 0 : i32
    %12 = arith.cmpi ne, %11, %c0_i32_9 : i32
    scf.if %12 {
      %c0_10 = arith.constant 0 : index
      %c0_11 = arith.constant 0 : index
      %13 = vector.load %arg7[%c0_10, %c0_11] : memref<8x96xf32, #tpu.memory_space<vmem>>, vector<8x96xf32>
      %c0_12 = arith.constant 0 : index
      %c0_13 = arith.constant 0 : index
      %14 = vector.load %arg5[%c0_12, %c0_13] : memref<1x96xf32, #tpu.memory_space<vmem>>, vector<1x96xf32>
      %15 = vector.broadcast %14 : vector<1x96xf32> to vector<8x96xf32>
      %16 = arith.addf %13, %15 : vector<8x96xf32>
      %17 = arith.truncf %16 : vector<8x96xf32> to vector<8x96xbf16>
      %c0_14 = arith.constant 0 : index
      %c0_15 = arith.constant 0 : index
      %18 = vector.load %arg6[%c0_14, %c0_15] : memref<8x96xbf16, #tpu.memory_space<vmem>>, vector<8x96xbf16>
      tpu.vector_store %arg6[%c0_14, %c0_15], %17 {strides = array<i32>} : memref<8x96xbf16, #tpu.memory_space<vmem>>, vector<8x96xbf16>,
    } else {
    }
    return
  }
  func.func @transform_0(%arg0: i32, %arg1: i32, %arg2: i32) -> (i32, i32) {
    %c0_i32 = arith.constant 0 : i32
    return %arg0, %arg2 : i32, i32
  }
  func.func @transform_1(%arg0: i32, %arg1: i32, %arg2: i32) -> (i32, i32) {
    %c0_i32 = arith.constant 0 : i32
    return %arg2, %arg1 : i32, i32
  }
  func.func @transform_2(%arg0: i32, %arg1: i32, %arg2: i32) -> (i32, i32) {
    %c0_i32 = arith.constant 0 : i32
    %c0_i32_0 = arith.constant 0 : i32
    return %c0_i32, %arg1 : i32, i32
  }
  func.func @transform_3(%arg0: i32, %arg1: i32, %arg2: i32) -> (i32, i32) {
    %c0_i32 = arith.constant 0 : i32
    return %arg0, %arg1 : i32, i32
  }
}

module attributes {stable_mosaic.version = 11 : i64} {
  func.func @_proj_add_ln_kernel(%arg0: i32, %arg1: memref<8x32xbf16, #tpu.memory_space<vmem>>, %arg2: memref<8x32xf32, #tpu.memory_space<vmem>>, %arg3: memref<32x32xbf16, #tpu.memory_space<vmem>>, %arg4: memref<1x32xf32, #tpu.memory_space<vmem>>, %arg5: memref<1x32xf32, #tpu.memory_space<vmem>>, %arg6: memref<1x32xf32, #tpu.memory_space<vmem>>, %arg7: memref<8x32xf32, #tpu.memory_space<vmem>>) attributes {dimension_semantics = [#tpu.dimension_semantics<parallel>], iteration_bounds = array<i64: 2>, scalar_prefetch = 0 : i64, scratch_operands = 0 : i64, tpu.core_type = #tpu.core_type<tc>, window_params = [{transform_indices = @transform_0, window_bounds = array<i64: 8, 32>}, {transform_indices = @transform_1, window_bounds = array<i64: 8, 32>}, {pipeline_mode = #tpu.pipeline_mode<synchronous>, transform_indices = @transform_2, window_bounds = array<i64: 32, 32>}, {pipeline_mode = #tpu.pipeline_mode<synchronous>, transform_indices = @transform_3, window_bounds = array<i64: 1, 32>}, {pipeline_mode = #tpu.pipeline_mode<synchronous>, transform_indices = @transform_4, window_bounds = array<i64: 1, 32>}, {pipeline_mode = #tpu.pipeline_mode<synchronous>, transform_indices = @transform_5, window_bounds = array<i64: 1, 32>}, {transform_indices = @transform_6, window_bounds = array<i64: 8, 32>}]} {
    %c0 = arith.constant 0 : index
    %c0_0 = arith.constant 0 : index
    %0 = vector.load %arg1[%c0, %c0_0] : memref<8x32xbf16, #tpu.memory_space<vmem>>, vector<8x32xbf16>
    %c0_1 = arith.constant 0 : index
    %c0_2 = arith.constant 0 : index
    %1 = vector.load %arg3[%c0_1, %c0_2] : memref<32x32xbf16, #tpu.memory_space<vmem>>, vector<32x32xbf16>
    %cst = arith.constant dense<0.000000e+00> : vector<8x32xf32>
    %2 = tpu.matmul %0, %1, %cst {dimension_numbers = #tpu.dot_dimension_numbers<[1], [0], [0], [1], [0, 0, 1, 1], [], []>} : vector<8x32xbf16>, vector<32x32xbf16>, vector<8x32xf32> -> vector<8x32xf32>
    %c0_3 = arith.constant 0 : index
    %c0_4 = arith.constant 0 : index
    %3 = vector.load %arg4[%c0_3, %c0_4] : memref<1x32xf32, #tpu.memory_space<vmem>>, vector<1x32xf32>
    %4 = vector.broadcast %3 : vector<1x32xf32> to vector<8x32xf32>
    %5 = arith.addf %2, %4 : vector<8x32xf32>
    %c0_5 = arith.constant 0 : index
    %c0_6 = arith.constant 0 : index
    %6 = vector.load %arg2[%c0_5, %c0_6] : memref<8x32xf32, #tpu.memory_space<vmem>>, vector<8x32xf32>
    %7 = arith.addf %6, %5 : vector<8x32xf32>
    %c0_7 = arith.constant 0 : index
    %c0_8 = arith.constant 0 : index
    %8 = vector.load %arg5[%c0_7, %c0_8] : memref<1x32xf32, #tpu.memory_space<vmem>>, vector<1x32xf32>
    %c0_9 = arith.constant 0 : index
    %c0_10 = arith.constant 0 : index
    %9 = vector.load %arg6[%c0_9, %c0_10] : memref<1x32xf32, #tpu.memory_space<vmem>>, vector<1x32xf32>
    %cst_11 = arith.constant dense<0.000000e+00> : vector<8xf32>
    %10 = vector.multi_reduction <add>, %7, %cst_11 [1] : vector<8x32xf32> to vector<8xf32>
    %11 = vector.shape_cast %10 : vector<8xf32> to vector<8x1xf32>
    %cst_12 = arith.constant 3.200000e+01 : f32
    %12 = vector.broadcast %cst_12 : f32 to vector<8x1xf32>
    %13 = arith.divf %11, %12 : vector<8x1xf32>
    %14 = vector.broadcast %13 : vector<8x1xf32> to vector<8x32xf32>
    %15 = arith.subf %7, %14 : vector<8x32xf32>
    %16 = arith.mulf %15, %15 : vector<8x32xf32>
    %cst_13 = arith.constant dense<0.000000e+00> : vector<8xf32>
    %17 = vector.multi_reduction <add>, %16, %cst_13 [1] : vector<8x32xf32> to vector<8xf32>
    %18 = vector.shape_cast %17 : vector<8xf32> to vector<8x1xf32>
    %cst_14 = arith.constant 3.200000e+01 : f32
    %19 = vector.broadcast %cst_14 : f32 to vector<8x1xf32>
    %20 = arith.divf %18, %19 : vector<8x1xf32>
    %21 = vector.broadcast %13 : vector<8x1xf32> to vector<8x32xf32>
    %22 = arith.subf %7, %21 : vector<8x32xf32>
    %cst_15 = arith.constant 9.99999997E-7 : f32
    %23 = vector.broadcast %cst_15 : f32 to vector<8x1xf32>
    %24 = arith.addf %20, %23 : vector<8x1xf32>
    %25 = math.rsqrt %24 : vector<8x1xf32>
    %26 = vector.broadcast %25 : vector<8x1xf32> to vector<8x32xf32>
    %27 = arith.mulf %22, %26 : vector<8x32xf32>
    %28 = vector.broadcast %8 : vector<1x32xf32> to vector<8x32xf32>
    %29 = arith.mulf %27, %28 : vector<8x32xf32>
    %30 = vector.broadcast %9 : vector<1x32xf32> to vector<8x32xf32>
    %31 = arith.addf %29, %30 : vector<8x32xf32>
    %c0_16 = arith.constant 0 : index
    %c0_17 = arith.constant 0 : index
    %32 = vector.load %arg7[%c0_16, %c0_17] : memref<8x32xf32, #tpu.memory_space<vmem>>, vector<8x32xf32>
    tpu.vector_store %arg7[%c0_16, %c0_17], %31 {strides = array<i32>} : memref<8x32xf32, #tpu.memory_space<vmem>>, vector<8x32xf32>,
    return
  }
  func.func @transform_0(%arg0: i32) -> (i32, i32) {
    %c0_i32 = arith.constant 0 : i32
    %c0_i32_0 = arith.constant 0 : i32
    return %arg0, %c0_i32 : i32, i32
  }
  func.func @transform_1(%arg0: i32) -> (i32, i32) {
    %c0_i32 = arith.constant 0 : i32
    %c0_i32_0 = arith.constant 0 : i32
    return %arg0, %c0_i32 : i32, i32
  }
  func.func @transform_2(%arg0: i32) -> (i32, i32) {
    %c0_i32 = arith.constant 0 : i32
    %c0_i32_0 = arith.constant 0 : i32
    %c0_i32_1 = arith.constant 0 : i32
    return %c0_i32, %c0_i32_0 : i32, i32
  }
  func.func @transform_3(%arg0: i32) -> (i32, i32) {
    %c0_i32 = arith.constant 0 : i32
    %c0_i32_0 = arith.constant 0 : i32
    %c0_i32_1 = arith.constant 0 : i32
    return %c0_i32, %c0_i32_0 : i32, i32
  }
  func.func @transform_4(%arg0: i32) -> (i32, i32) {
    %c0_i32 = arith.constant 0 : i32
    %c0_i32_0 = arith.constant 0 : i32
    %c0_i32_1 = arith.constant 0 : i32
    return %c0_i32, %c0_i32_0 : i32, i32
  }
  func.func @transform_5(%arg0: i32) -> (i32, i32) {
    %c0_i32 = arith.constant 0 : i32
    %c0_i32_0 = arith.constant 0 : i32
    %c0_i32_1 = arith.constant 0 : i32
    return %c0_i32, %c0_i32_0 : i32, i32
  }
  func.func @transform_6(%arg0: i32) -> (i32, i32) {
    %c0_i32 = arith.constant 0 : i32
    %c0_i32_0 = arith.constant 0 : i32
    return %arg0, %c0_i32 : i32, i32
  }
}

module attributes {stable_mosaic.version = 11 : i64} {
  func.func @_ffn_add_ln_kernel(%arg0: i32, %arg1: i32, %arg2: memref<8x32xf32, #tpu.memory_space<vmem>>, %arg3: memref<32x64xbf16, #tpu.memory_space<vmem>>, %arg4: memref<1x64xf32, #tpu.memory_space<vmem>>, %arg5: memref<64x32xbf16, #tpu.memory_space<vmem>>, %arg6: memref<1x32xf32, #tpu.memory_space<vmem>>, %arg7: memref<1x32xf32, #tpu.memory_space<vmem>>, %arg8: memref<1x32xf32, #tpu.memory_space<vmem>>, %arg9: memref<8x32xf32, #tpu.memory_space<vmem>>, %arg10: memref<8x32xf32, #tpu.memory_space<vmem>>) attributes {dimension_semantics = [#tpu.dimension_semantics<parallel>, #tpu.dimension_semantics<arbitrary>], iteration_bounds = array<i64: 2, 1>, scalar_prefetch = 0 : i64, scratch_operands = 1 : i64, tpu.core_type = #tpu.core_type<tc>, window_params = [{transform_indices = @transform_0, window_bounds = array<i64: 8, 32>}, {transform_indices = @transform_1, window_bounds = array<i64: 32, 64>}, {transform_indices = @transform_2, window_bounds = array<i64: 1, 64>}, {transform_indices = @transform_3, window_bounds = array<i64: 64, 32>}, {pipeline_mode = #tpu.pipeline_mode<synchronous>, transform_indices = @transform_4, window_bounds = array<i64: 1, 32>}, {pipeline_mode = #tpu.pipeline_mode<synchronous>, transform_indices = @transform_5, window_bounds = array<i64: 1, 32>}, {pipeline_mode = #tpu.pipeline_mode<synchronous>, transform_indices = @transform_6, window_bounds = array<i64: 1, 32>}, {transform_indices = @transform_7, window_bounds = array<i64: 8, 32>}]} {
    %c0_i32 = arith.constant 0 : i32
    %0 = arith.cmpi eq, %arg1, %c0_i32 : i32
    %1 = arith.extui %0 : i1 to i32
    %c0_i32_0 = arith.constant 0 : i32
    %2 = arith.cmpi ne, %1, %c0_i32_0 : i32
    scf.if %2 {
      %cst_16 = arith.constant 0.000000e+00 : f32
      %21 = vector.broadcast %cst_16 : f32 to vector<8x32xf32>
      %c0_17 = arith.constant 0 : index
      %c0_18 = arith.constant 0 : index
      %22 = vector.load %arg10[%c0_17, %c0_18] : memref<8x32xf32, #tpu.memory_space<vmem>>, vector<8x32xf32>
      tpu.vector_store %arg10[%c0_17, %c0_18], %21 {strides = array<i32>} : memref<8x32xf32, #tpu.memory_space<vmem>>, vector<8x32xf32>,
    } else {
    }
    %c0 = arith.constant 0 : index
    %c0_1 = arith.constant 0 : index
    %3 = vector.load %arg2[%c0, %c0_1] : memref<8x32xf32, #tpu.memory_space<vmem>>, vector<8x32xf32>
    %4 = arith.truncf %3 : vector<8x32xf32> to vector<8x32xbf16>
    %c0_2 = arith.constant 0 : index
    %c0_3 = arith.constant 0 : index
    %5 = vector.load %arg3[%c0_2, %c0_3] : memref<32x64xbf16, #tpu.memory_space<vmem>>, vector<32x64xbf16>
    %cst = arith.constant dense<0.000000e+00> : vector<8x64xf32>
    %6 = tpu.matmul %4, %5, %cst {dimension_numbers = #tpu.dot_dimension_numbers<[1], [0], [0], [1], [0, 0, 1, 1], [], []>} : vector<8x32xbf16>, vector<32x64xbf16>, vector<8x64xf32> -> vector<8x64xf32>
    %c0_4 = arith.constant 0 : index
    %c0_5 = arith.constant 0 : index
    %7 = vector.load %arg4[%c0_4, %c0_5] : memref<1x64xf32, #tpu.memory_space<vmem>>, vector<1x64xf32>
    %8 = vector.broadcast %7 : vector<1x64xf32> to vector<8x64xf32>
    %9 = arith.addf %6, %8 : vector<8x64xf32>
    %cst_6 = arith.constant 0.000000e+00 : f32
    %10 = vector.broadcast %cst_6 : f32 to vector<8x64xf32>
    %11 = arith.maximumf %9, %10 : vector<8x64xf32>
    %12 = arith.truncf %11 : vector<8x64xf32> to vector<8x64xbf16>
    %c0_7 = arith.constant 0 : index
    %c0_8 = arith.constant 0 : index
    %13 = vector.load %arg10[%c0_7, %c0_8] : memref<8x32xf32, #tpu.memory_space<vmem>>, vector<8x32xf32>
    %c0_9 = arith.constant 0 : index
    %c0_10 = arith.constant 0 : index
    %14 = vector.load %arg5[%c0_9, %c0_10] : memref<64x32xbf16, #tpu.memory_space<vmem>>, vector<64x32xbf16>
    %cst_11 = arith.constant dense<0.000000e+00> : vector<8x32xf32>
    %15 = tpu.matmul %12, %14, %cst_11 {dimension_numbers = #tpu.dot_dimension_numbers<[1], [0], [0], [1], [0, 0, 1, 1], [], []>} : vector<8x64xbf16>, vector<64x32xbf16>, vector<8x32xf32> -> vector<8x32xf32>
    %16 = arith.addf %13, %15 : vector<8x32xf32>
    %c0_12 = arith.constant 0 : index
    %c0_13 = arith.constant 0 : index
    %17 = vector.load %arg10[%c0_12, %c0_13] : memref<8x32xf32, #tpu.memory_space<vmem>>, vector<8x32xf32>
    tpu.vector_store %arg10[%c0_12, %c0_13], %16 {strides = array<i32>} : memref<8x32xf32, #tpu.memory_space<vmem>>, vector<8x32xf32>,
    %c0_i32_14 = arith.constant 0 : i32
    %18 = arith.cmpi eq, %arg1, %c0_i32_14 : i32
    %19 = arith.extui %18 : i1 to i32
    %c0_i32_15 = arith.constant 0 : i32
    %20 = arith.cmpi ne, %19, %c0_i32_15 : i32
    scf.if %20 {
      %c0_16 = arith.constant 0 : index
      %c0_17 = arith.constant 0 : index
      %21 = vector.load %arg10[%c0_16, %c0_17] : memref<8x32xf32, #tpu.memory_space<vmem>>, vector<8x32xf32>
      %22 = arith.addf %3, %21 : vector<8x32xf32>
      %c0_18 = arith.constant 0 : index
      %c0_19 = arith.constant 0 : index
      %23 = vector.load %arg6[%c0_18, %c0_19] : memref<1x32xf32, #tpu.memory_space<vmem>>, vector<1x32xf32>
      %24 = vector.broadcast %23 : vector<1x32xf32> to vector<8x32xf32>
      %25 = arith.addf %22, %24 : vector<8x32xf32>
      %c0_20 = arith.constant 0 : index
      %c0_21 = arith.constant 0 : index
      %26 = vector.load %arg7[%c0_20, %c0_21] : memref<1x32xf32, #tpu.memory_space<vmem>>, vector<1x32xf32>
      %c0_22 = arith.constant 0 : index
      %c0_23 = arith.constant 0 : index
      %27 = vector.load %arg8[%c0_22, %c0_23] : memref<1x32xf32, #tpu.memory_space<vmem>>, vector<1x32xf32>
      %cst_24 = arith.constant dense<0.000000e+00> : vector<8xf32>
      %28 = vector.multi_reduction <add>, %25, %cst_24 [1] : vector<8x32xf32> to vector<8xf32>
      %29 = vector.shape_cast %28 : vector<8xf32> to vector<8x1xf32>
      %cst_25 = arith.constant 3.200000e+01 : f32
      %30 = vector.broadcast %cst_25 : f32 to vector<8x1xf32>
      %31 = arith.divf %29, %30 : vector<8x1xf32>
      %32 = vector.broadcast %31 : vector<8x1xf32> to vector<8x32xf32>
      %33 = arith.subf %25, %32 : vector<8x32xf32>
      %34 = arith.mulf %33, %33 : vector<8x32xf32>
      %cst_26 = arith.constant dense<0.000000e+00> : vector<8xf32>
      %35 = vector.multi_reduction <add>, %34, %cst_26 [1] : vector<8x32xf32> to vector<8xf32>
      %36 = vector.shape_cast %35 : vector<8xf32> to vector<8x1xf32>
      %cst_27 = arith.constant 3.200000e+01 : f32
      %37 = vector.broadcast %cst_27 : f32 to vector<8x1xf32>
      %38 = arith.divf %36, %37 : vector<8x1xf32>
      %39 = vector.broadcast %31 : vector<8x1xf32> to vector<8x32xf32>
      %40 = arith.subf %25, %39 : vector<8x32xf32>
      %cst_28 = arith.constant 9.99999997E-7 : f32
      %41 = vector.broadcast %cst_28 : f32 to vector<8x1xf32>
      %42 = arith.addf %38, %41 : vector<8x1xf32>
      %43 = math.rsqrt %42 : vector<8x1xf32>
      %44 = vector.broadcast %43 : vector<8x1xf32> to vector<8x32xf32>
      %45 = arith.mulf %40, %44 : vector<8x32xf32>
      %46 = vector.broadcast %26 : vector<1x32xf32> to vector<8x32xf32>
      %47 = arith.mulf %45, %46 : vector<8x32xf32>
      %48 = vector.broadcast %27 : vector<1x32xf32> to vector<8x32xf32>
      %49 = arith.addf %47, %48 : vector<8x32xf32>
      %c0_29 = arith.constant 0 : index
      %c0_30 = arith.constant 0 : index
      %50 = vector.load %arg9[%c0_29, %c0_30] : memref<8x32xf32, #tpu.memory_space<vmem>>, vector<8x32xf32>
      tpu.vector_store %arg9[%c0_29, %c0_30], %49 {strides = array<i32>} : memref<8x32xf32, #tpu.memory_space<vmem>>, vector<8x32xf32>,
    } else {
    }
    return
  }
  func.func @transform_0(%arg0: i32, %arg1: i32) -> (i32, i32) {
    %c0_i32 = arith.constant 0 : i32
    %c0_i32_0 = arith.constant 0 : i32
    return %arg0, %c0_i32 : i32, i32
  }
  func.func @transform_1(%arg0: i32, %arg1: i32) -> (i32, i32) {
    %c0_i32 = arith.constant 0 : i32
    %c0_i32_0 = arith.constant 0 : i32
    return %c0_i32, %arg1 : i32, i32
  }
  func.func @transform_2(%arg0: i32, %arg1: i32) -> (i32, i32) {
    %c0_i32 = arith.constant 0 : i32
    %c0_i32_0 = arith.constant 0 : i32
    return %c0_i32, %arg1 : i32, i32
  }
  func.func @transform_3(%arg0: i32, %arg1: i32) -> (i32, i32) {
    %c0_i32 = arith.constant 0 : i32
    %c0_i32_0 = arith.constant 0 : i32
    return %arg1, %c0_i32 : i32, i32
  }
  func.func @transform_4(%arg0: i32, %arg1: i32) -> (i32, i32) {
    %c0_i32 = arith.constant 0 : i32
    %c0_i32_0 = arith.constant 0 : i32
    %c0_i32_1 = arith.constant 0 : i32
    return %c0_i32, %c0_i32_0 : i32, i32
  }
  func.func @transform_5(%arg0: i32, %arg1: i32) -> (i32, i32) {
    %c0_i32 = arith.constant 0 : i32
    %c0_i32_0 = arith.constant 0 : i32
    %c0_i32_1 = arith.constant 0 : i32
    return %c0_i32, %c0_i32_0 : i32, i32
  }
  func.func @transform_6(%arg0: i32, %arg1: i32) -> (i32, i32) {
    %c0_i32 = arith.constant 0 : i32
    %c0_i32_0 = arith.constant 0 : i32
    %c0_i32_1 = arith.constant 0 : i32
    return %c0_i32, %c0_i32_0 : i32, i32
  }
  func.func @transform_7(%arg0: i32, %arg1: i32) -> (i32, i32) {
    %c0_i32 = arith.constant 0 : i32
    %c0_i32_0 = arith.constant 0 : i32
    return %arg0, %c0_i32 : i32, i32
  }
}

module attributes {stable_mosaic.version = 11 : i64} {
  func.func @_ffn_add_ln_kernel(%arg0: i32, %arg1: i32, %arg2: memref<8x32xf32, #tpu.memory_space<vmem>>, %arg3: memref<32x64xbf16, #tpu.memory_space<vmem>>, %arg4: memref<1x64xf32, #tpu.memory_space<vmem>>, %arg5: memref<64x32xbf16, #tpu.memory_space<vmem>>, %arg6: memref<1x32xf32, #tpu.memory_space<vmem>>, %arg7: memref<1x32xf32, #tpu.memory_space<vmem>>, %arg8: memref<1x32xf32, #tpu.memory_space<vmem>>, %arg9: memref<8x32xf32, #tpu.memory_space<vmem>>, %arg10: memref<8x32xf32, #tpu.memory_space<vmem>>) attributes {dimension_semantics = [#tpu.dimension_semantics<parallel>, #tpu.dimension_semantics<arbitrary>], iteration_bounds = array<i64: 2, 1>, scalar_prefetch = 0 : i64, scratch_operands = 1 : i64, tpu.core_type = #tpu.core_type<tc>, window_params = [{transform_indices = @transform_0, window_bounds = array<i64: 8, 32>}, {transform_indices = @transform_1, window_bounds = array<i64: 32, 64>}, {transform_indices = @transform_2, window_bounds = array<i64: 1, 64>}, {transform_indices = @transform_3, window_bounds = array<i64: 64, 32>}, {pipeline_mode = #tpu.pipeline_mode<synchronous>, transform_indices = @transform_4, window_bounds = array<i64: 1, 32>}, {pipeline_mode = #tpu.pipeline_mode<synchronous>, transform_indices = @transform_5, window_bounds = array<i64: 1, 32>}, {pipeline_mode = #tpu.pipeline_mode<synchronous>, transform_indices = @transform_6, window_bounds = array<i64: 1, 32>}, {transform_indices = @transform_7, window_bounds = array<i64: 8, 32>}]} {
    %c0_i32 = arith.constant 0 : i32
    %0 = arith.cmpi eq, %arg1, %c0_i32 : i32
    %1 = arith.extui %0 : i1 to i32
    %c0_i32_0 = arith.constant 0 : i32
    %2 = arith.cmpi ne, %1, %c0_i32_0 : i32
    scf.if %2 {
      %cst_16 = arith.constant 0.000000e+00 : f32
      %21 = vector.broadcast %cst_16 : f32 to vector<8x32xf32>
      %c0_17 = arith.constant 0 : index
      %c0_18 = arith.constant 0 : index
      %22 = vector.load %arg10[%c0_17, %c0_18] : memref<8x32xf32, #tpu.memory_space<vmem>>, vector<8x32xf32>
      tpu.vector_store %arg10[%c0_17, %c0_18], %21 {strides = array<i32>} : memref<8x32xf32, #tpu.memory_space<vmem>>, vector<8x32xf32>,
    } else {
    }
    %c0 = arith.constant 0 : index
    %c0_1 = arith.constant 0 : index
    %3 = vector.load %arg2[%c0, %c0_1] : memref<8x32xf32, #tpu.memory_space<vmem>>, vector<8x32xf32>
    %4 = arith.truncf %3 : vector<8x32xf32> to vector<8x32xbf16>
    %c0_2 = arith.constant 0 : index
    %c0_3 = arith.constant 0 : index
    %5 = vector.load %arg3[%c0_2, %c0_3] : memref<32x64xbf16, #tpu.memory_space<vmem>>, vector<32x64xbf16>
    %cst = arith.constant dense<0.000000e+00> : vector<8x64xf32>
    %6 = tpu.matmul %4, %5, %cst {dimension_numbers = #tpu.dot_dimension_numbers<[1], [0], [0], [1], [0, 0, 1, 1], [], []>} : vector<8x32xbf16>, vector<32x64xbf16>, vector<8x64xf32> -> vector<8x64xf32>
    %c0_4 = arith.constant 0 : index
    %c0_5 = arith.constant 0 : index
    %7 = vector.load %arg4[%c0_4, %c0_5] : memref<1x64xf32, #tpu.memory_space<vmem>>, vector<1x64xf32>
    %8 = vector.broadcast %7 : vector<1x64xf32> to vector<8x64xf32>
    %9 = arith.addf %6, %8 : vector<8x64xf32>
    %cst_6 = arith.constant 0.000000e+00 : f32
    %10 = vector.broadcast %cst_6 : f32 to vector<8x64xf32>
    %11 = arith.maximumf %9, %10 : vector<8x64xf32>
    %12 = arith.truncf %11 : vector<8x64xf32> to vector<8x64xbf16>
    %c0_7 = arith.constant 0 : index
    %c0_8 = arith.constant 0 : index
    %13 = vector.load %arg10[%c0_7, %c0_8] : memref<8x32xf32, #tpu.memory_space<vmem>>, vector<8x32xf32>
    %c0_9 = arith.constant 0 : index
    %c0_10 = arith.constant 0 : index
    %14 = vector.load %arg5[%c0_9, %c0_10] : memref<64x32xbf16, #tpu.memory_space<vmem>>, vector<64x32xbf16>
    %cst_11 = arith.constant dense<0.000000e+00> : vector<8x32xf32>
    %15 = tpu.matmul %12, %14, %cst_11 {dimension_numbers = #tpu.dot_dimension_numbers<[1], [0], [0], [1], [0, 0, 1, 1], [], []>} : vector<8x64xbf16>, vector<64x32xbf16>, vector<8x32xf32> -> vector<8x32xf32>
    %16 = arith.addf %13, %15 : vector<8x32xf32>
    %c0_12 = arith.constant 0 : index
    %c0_13 = arith.constant 0 : index
    %17 = vector.load %arg10[%c0_12, %c0_13] : memref<8x32xf32, #tpu.memory_space<vmem>>, vector<8x32xf32>
    tpu.vector_store %arg10[%c0_12, %c0_13], %16 {strides = array<i32>} : memref<8x32xf32, #tpu.memory_space<vmem>>, vector<8x32xf32>,
    %c0_i32_14 = arith.constant 0 : i32
    %18 = arith.cmpi eq, %arg1, %c0_i32_14 : i32
    %19 = arith.extui %18 : i1 to i32
    %c0_i32_15 = arith.constant 0 : i32
    %20 = arith.cmpi ne, %19, %c0_i32_15 : i32
    scf.if %20 {
      %c0_16 = arith.constant 0 : index
      %c0_17 = arith.constant 0 : index
      %21 = vector.load %arg10[%c0_16, %c0_17] : memref<8x32xf32, #tpu.memory_space<vmem>>, vector<8x32xf32>
      %22 = arith.addf %3, %21 : vector<8x32xf32>
      %c0_18 = arith.constant 0 : index
      %c0_19 = arith.constant 0 : index
      %23 = vector.load %arg6[%c0_18, %c0_19] : memref<1x32xf32, #tpu.memory_space<vmem>>, vector<1x32xf32>
      %24 = vector.broadcast %23 : vector<1x32xf32> to vector<8x32xf32>
      %25 = arith.addf %22, %24 : vector<8x32xf32>
      %c0_20 = arith.constant 0 : index
      %c0_21 = arith.constant 0 : index
      %26 = vector.load %arg7[%c0_20, %c0_21] : memref<1x32xf32, #tpu.memory_space<vmem>>, vector<1x32xf32>
      %c0_22 = arith.constant 0 : index
      %c0_23 = arith.constant 0 : index
      %27 = vector.load %arg8[%c0_22, %c0_23] : memref<1x32xf32, #tpu.memory_space<vmem>>, vector<1x32xf32>
      %cst_24 = arith.constant dense<0.000000e+00> : vector<8xf32>
      %28 = vector.multi_reduction <add>, %25, %cst_24 [1] : vector<8x32xf32> to vector<8xf32>
      %29 = vector.shape_cast %28 : vector<8xf32> to vector<8x1xf32>
      %cst_25 = arith.constant 3.200000e+01 : f32
      %30 = vector.broadcast %cst_25 : f32 to vector<8x1xf32>
      %31 = arith.divf %29, %30 : vector<8x1xf32>
      %32 = vector.broadcast %31 : vector<8x1xf32> to vector<8x32xf32>
      %33 = arith.subf %25, %32 : vector<8x32xf32>
      %34 = arith.mulf %33, %33 : vector<8x32xf32>
      %cst_26 = arith.constant dense<0.000000e+00> : vector<8xf32>
      %35 = vector.multi_reduction <add>, %34, %cst_26 [1] : vector<8x32xf32> to vector<8xf32>
      %36 = vector.shape_cast %35 : vector<8xf32> to vector<8x1xf32>
      %cst_27 = arith.constant 3.200000e+01 : f32
      %37 = vector.broadcast %cst_27 : f32 to vector<8x1xf32>
      %38 = arith.divf %36, %37 : vector<8x1xf32>
      %39 = vector.broadcast %31 : vector<8x1xf32> to vector<8x32xf32>
      %40 = arith.subf %25, %39 : vector<8x32xf32>
      %cst_28 = arith.constant 9.99999997E-7 : f32
      %41 = vector.broadcast %cst_28 : f32 to vector<8x1xf32>
      %42 = arith.addf %38, %41 : vector<8x1xf32>
      %43 = math.rsqrt %42 : vector<8x1xf32>
      %44 = vector.broadcast %43 : vector<8x1xf32> to vector<8x32xf32>
      %45 = arith.mulf %40, %44 : vector<8x32xf32>
      %46 = vector.broadcast %26 : vector<1x32xf32> to vector<8x32xf32>
      %47 = arith.mulf %45, %46 : vector<8x32xf32>
      %48 = vector.broadcast %27 : vector<1x32xf32> to vector<8x32xf32>
      %49 = arith.addf %47, %48 : vector<8x32xf32>
      %c0_29 = arith.constant 0 : index
      %c0_30 = arith.constant 0 : index
      %50 = vector.load %arg9[%c0_29, %c0_30] : memref<8x32xf32, #tpu.memory_space<vmem>>, vector<8x32xf32>
      tpu.vector_store %arg9[%c0_29, %c0_30], %49 {strides = array<i32>} : memref<8x32xf32, #tpu.memory_space<vmem>>, vector<8x32xf32>,
    } else {
    }
    return
  }
  func.func @transform_0(%arg0: i32, %arg1: i32) -> (i32, i32) {
    %c0_i32 = arith.constant 0 : i32
    %c0_i32_0 = arith.constant 0 : i32
    return %arg0, %c0_i32 : i32, i32
  }
  func.func @transform_1(%arg0: i32, %arg1: i32) -> (i32, i32) {
    %c0_i32 = arith.constant 0 : i32
    %c0_i32_0 = arith.constant 0 : i32
    return %c0_i32, %arg1 : i32, i32
  }
  func.func @transform_2(%arg0: i32, %arg1: i32) -> (i32, i32) {
    %c0_i32 = arith.constant 0 : i32
    %c0_i32_0 = arith.constant 0 : i32
    return %c0_i32, %arg1 : i32, i32
  }
  func.func @transform_3(%arg0: i32, %arg1: i32) -> (i32, i32) {
    %c0_i32 = arith.constant 0 : i32
    %c0_i32_0 = arith.constant 0 : i32
    return %arg1, %c0_i32 : i32, i32
  }
  func.func @transform_4(%arg0: i32, %arg1: i32) -> (i32, i32) {
    %c0_i32 = arith.constant 0 : i32
    %c0_i32_0 = arith.constant 0 : i32
    %c0_i32_1 = arith.constant 0 : i32
    return %c0_i32, %c0_i32_0 : i32, i32
  }
  func.func @transform_5(%arg0: i32, %arg1: i32) -> (i32, i32) {
    %c0_i32 = arith.constant 0 : i32
    %c0_i32_0 = arith.constant 0 : i32
    %c0_i32_1 = arith.constant 0 : i32
    return %c0_i32, %c0_i32_0 : i32, i32
  }
  func.func @transform_6(%arg0: i32, %arg1: i32) -> (i32, i32) {
    %c0_i32 = arith.constant 0 : i32
    %c0_i32_0 = arith.constant 0 : i32
    %c0_i32_1 = arith.constant 0 : i32
    return %c0_i32, %c0_i32_0 : i32, i32
  }
  func.func @transform_7(%arg0: i32, %arg1: i32) -> (i32, i32) {
    %c0_i32 = arith.constant 0 : i32
    %c0_i32_0 = arith.constant 0 : i32
    return %arg0, %c0_i32 : i32, i32
  }
}

</mosaic_0001>

<llo_original>
// kernel: encoder_forward.9
$region0: #{encoder_forward.9}
  #allocation0 [shape = 'u32[]', space=smem, size = 0x4, offset = 0x4, fixed_abs, tag = 'smem constant byte address 0x4 - core index']
  #allocation1 [shape = 'u32[144,128]{1,0:T(1,128)}', space=vmem, size = 0x12000, scoped, tag = 'internal scratch']
  %s0 = inlined_call_operand.vmem [shape: f32[2,8,32], index: 0, kind: input, shape index: {}]
  %s1 = inlined_call_operand.vmem [shape: f32[1,8,32], index: 1, kind: input, shape index: {}]
  %s2 = inlined_call_operand.vmem [shape: f32[2,8,32], index: 2, kind: output, shape index: {}]
  %s3 = sld [smem:[#allocation0]]
  $region41: #{encoder_forward.9} parent=0
    _
  %s5 = ssub.s32 1, %s3
  %s6 = scalar_select 0, %s5, %s3
  loop: start=0, step=1, limit=4
  $region2: #{encoder_forward.9} parent=0 // loop_pre_header
    _
  $region3: #{encoder_forward.9} parent=0 // loop_header
    %s8 = sphi 0, %s12
    %p9 = scmp.ge.s32.totalorder %s8, 4
    %s15 = sphi 0, %s27
    %s16 = sphi 0, %s23
    %s17 = sphi 0, %s15
    %s18 = sphi 0, %s16
    %s19 = sphi 0, %s17
    %s20 = sphi 0, %s18
    %s32 = sphi 0, %s34
    %s35 = sphi 0, %s32
    %s36 = sphi 0, %s35
    %s52 = sphi 0, %s36
    %s58 = sphi 0, %s60
    %s61 = sphi 0, %s58
    %s62 = sphi 0, %s61
    %s78 = sphi 0, %s62
    %s86 = sphi 0, %s88
    %s89 = sphi 0, %s86
    %s90 = sphi 0, %s89
    %s106 = sphi 0, %s90
  $region4: #{encoder_forward.9} parent=0 // loop_header_branch
    %11 = sbr.rel (%p9) target = $region8
  $region5: #{encoder_forward.9} parent=0 // loop_body
    %s13 = ssub.s32 %s8, 1
    %s14 = ssub.s32 %s8, 2
    %s21 = sadd.s32 1, %s16
    %p22 = scmp.ge.s32.totalorder %s21, 1
    %s23 = scalar_select %p22, 0, %s21
    %s24 = sadd.s32 1, %s15
    %s25 = scalar_select %p22, %s24, %s15
    %p26 = scmp.ge.s32.totalorder %s25, 2
    %s27 = scalar_select %p26, 0, %s25
    %s28 = ssub.s32 %s15, %s27
    %s29 = ssub.s32 %s16, %s23
    %s30 = sor.u32 %s28, %s29
    %p31 = scmp.eq.s32.totalorder %s30, 0
    %s33 = sadd.s32 %s32, 1
    %s34 = scalar_select %p31, %s32, %s33
    %p37 = pneg %p31
    %p38 = scmp.eq.s32.totalorder %s8, 1
    %p39 = por %p37, %p38
    %p40 = scmp.ne.s32.totalorder %s32, %s35
    %p41 = scmp.eq.s32.totalorder %s8, 0
    %p42 = por %p40, %p41
    %p43 = scmp.ne.s32.totalorder %s32, %s35
    %p44 = scmp.eq.s32.totalorder %s13, 1
    %p45 = por %p43, %p44
    %p46 = scmp.ne.s32.totalorder %s35, %s36
    %p47 = scmp.eq.s32.totalorder %s13, 0
    %p48 = por %p46, %p47
    %p49 = scmp.ne.s32.totalorder %s35, %s36
    %p50 = scmp.eq.s32.totalorder %s14, 1
    %p51 = por %p49, %p50
    %p53 = scmp.ne.s32.totalorder %s36, %s52
    %p54 = scmp.eq.s32.totalorder %s14, 0
    %p55 = por %p53, %p54
    %s56 = ssub.s32 %s16, %s23
    %p57 = scmp.eq.s32.totalorder %s56, 0
    %s59 = sadd.s32 %s58, 1
    %s60 = scalar_select %p57, %s58, %s59
    %p63 = pneg %p57
    %p64 = scmp.eq.s32.totalorder %s8, 1
    %p65 = por %p63, %p64
    %p66 = scmp.ne.s32.totalorder %s58, %s61
    %p67 = scmp.eq.s32.totalorder %s8, 0
    %p68 = por %p66, %p67
    %p69 = scmp.ne.s32.totalorder %s58, %s61
    %p70 = scmp.eq.s32.totalorder %s13, 1
    %p71 = por %p69, %p70
    %p72 = scmp.ne.s32.totalorder %s61, %s62
    %p73 = scmp.eq.s32.totalorder %s13, 0
    %p74 = por %p72, %p73
    %p75 = scmp.ne.s32.totalorder %s61, %s62
    %p76 = scmp.eq.s32.totalorder %s14, 1
    %p77 = por %p75, %p76
    %p79 = scmp.ne.s32.totalorder %s62, %s78
    %p80 = scmp.eq.s32.totalorder %s14, 0
    %p81 = por %p79, %p80
    %s82 = ssub.s32 %s15, %s27
    %s83 = ssub.s32 %s16, %s23
    %s84 = sor.u32 %s82, %s83
    %p85 = scmp.eq.s32.totalorder %s84, 0
    %s87 = sadd.s32 %s86, 1
    %s88 = scalar_select %p85, %s86, %s87
    %p91 = pneg %p85
    %p92 = scmp.eq.s32.totalorder %s8, 1
    %p93 = por %p91, %p92
    %p94 = scmp.ne.s32.totalorder %s86, %s89
    %p95 = scmp.eq.s32.totalorder %s8, 0
    %p96 = por %p94, %p95
    %p97 = scmp.ne.s32.totalorder %s86, %s89
    %p98 = scmp.eq.s32.totalorder %s13, 1
    %p99 = por %p97, %p98
    %p100 = scmp.ne.s32.totalorder %s89, %s90
    %p101 = scmp.eq.s32.totalorder %s13, 0
    %p102 = por %p100, %p101
    %p103 = scmp.ne.s32.totalorder %s89, %s90
    %p104 = scmp.eq.s32.totalorder %s14, 1
    %p105 = por %p103, %p104
    %p107 = scmp.ne.s32.totalorder %s90, %s106
    %p108 = scmp.eq.s32.totalorder %s14, 0
    %p109 = por %p107, %p108
    %p110 = scmp.le.s32.totalorder 1, %s8
    %p111 = scmp.lt.s32.totalorder %s8, 3
    %p112 = pnand %p110, %p111
    %p113 = pneg %p112
    // Predicated region
    $region9: #{encoder_forward.9} parent=5 // pred_check
      _
    $region10: #{encoder_forward.9} parent=5 // pred_check_branch
      %115 = sbr.rel (%p112) target = $region12
    $region11: #{encoder_forward.9} parent=5 // pred_region
      %s116 = ssub.s32 %s8, 1
      // Predicated region
      $region13: #{encoder_forward.9} parent=11 // pred_check
        %p117 = pneg %p74
      $region14: #{encoder_forward.9} parent=11 // pred_check_branch
        %119 = sbr.rel (%p117) target = $region16
      $region15: #{encoder_forward.9} parent=11 // pred_region
        %p120 = scmp.lt.s32.totalorder %s18, 0
        %s121 = scalar_select %p120, %s18, 0
        %s122 = smul.addr %s121, 8
        %s123 = scalar_lea.vmem %s1, %s122
      $region16: #{encoder_forward.9} parent=11 // pred_fallthru
        _
    $region12: #{encoder_forward.9} parent=5 // pred_fallthru
      _
    %p124 = scmp.lt.s32.totalorder %s8, 2
    // Predicated region
    $region17: #{encoder_forward.9} parent=5 // pred_check
      %p125 = pneg %p124
    $region18: #{encoder_forward.9} parent=5 // pred_check_branch
      %127 = sbr.rel (%p125) target = $region20
    $region19: #{encoder_forward.9} parent=5 // pred_region
      // Predicated region
      $region21: #{encoder_forward.9} parent=19 // pred_check
        %p128 = pneg %p42
      $region22: #{encoder_forward.9} parent=19 // pred_check_branch
        %130 = sbr.rel (%p128) target = $region24
      $region23: #{encoder_forward.9} parent=19 // pred_region
        %p131 = scmp.lt.s32.totalorder %s15, 1
        %s132 = scalar_select %p131, %s15, 1
        %p133 = scmp.lt.s32.totalorder %s16, 0
        %s134 = scalar_select %p133, %s16, 0
        %s135 = sadd.s32 %s134, %s132
        %s136 = smul.addr %s135, 8
        %s137 = scalar_lea.vmem %s0, %s136
      $region24: #{encoder_forward.9} parent=19 // pred_fallthru
        _
    $region20: #{encoder_forward.9} parent=5 // pred_fallthru
      _
    %p138 = scmp.le.s32.totalorder 1, %s8
    %p139 = scmp.lt.s32.totalorder %s8, 3
    %p140 = pnand %p138, %p139
    %p141 = pneg %p140
    // Predicated region
    $region25: #{encoder_forward.9} parent=5 // pred_check
      _
    $region26: #{encoder_forward.9} parent=5 // pred_check_branch
      %143 = sbr.rel (%p140) target = $region28
    $region27: #{encoder_forward.9} parent=5 // pred_region
      %s144 = ssub.s32 %s8, 1
      %p145 = scmp.lt.s32.totalorder %s17, 1
      %s146 = scalar_select %p145, %s17, 1
      %p147 = scmp.lt.s32.totalorder %s18, 0
      %s148 = scalar_select %p147, %s18, 0
      %s149 = sadd.s32 %s148, %s146
      %s150 = smul.addr %s149, 8
      %s151 = scalar_lea.vmem %s0, %s150
      %p152 = pneg %p48
      %p153 = pneg %p45
      %p154 = scmp.lt.s32.totalorder %s18, 0
      %s155 = scalar_select %p154, %s18, 0
      %s156 = smul.addr %s155, 8
      %s157 = scalar_lea.vmem %s1, %s156
      %p158 = pneg %p74
      %p159 = pneg %p71
      %p160 = pneg %p102
      %p161 = pneg %p99
      %p162 = scmp.lt.s32.totalorder %s17, 1
      %s163 = scalar_select %p162, %s17, 1
      %p164 = scmp.lt.s32.totalorder %s18, 0
      %s165 = scalar_select %p164, %s18, 0
      %s166 = sadd.s32 %s165, %s163
      %s167 = smul.addr %s166, 8
      %s168 = scalar_lea.vmem %s2, %s167
      %p169 = scmp.lt.s32.totalorder %s17, 1
      %s170 = scalar_select %p169, %s17, 1
      %p171 = scmp.lt.s32.totalorder %s18, 0
      %s172 = scalar_select %p171, %s18, 0
      %s173 = sadd.s32 %s172, %s170
      %s174 = smul.addr %s173, 8
      %s175 = scalar_lea.vmem %s0, %s174
      %p176 = scmp.lt.s32.totalorder %s18, 0
      %s177 = scalar_select %p176, %s18, 0
      %s178 = smul.addr %s177, 8
      %s179 = scalar_lea.vmem %s1, %s178
      %p180 = scmp.lt.s32.totalorder %s17, 1
      %s181 = scalar_select %p180, %s17, 1
      %p182 = scmp.lt.s32.totalorder %s18, 0
      %s183 = scalar_select %p182, %s18, 0
      %s184 = sadd.s32 %s183, %s181
      %s185 = smul.addr %s184, 8
      %s186 = scalar_lea.vmem %s2, %s185
      %v187 = vld [vmem:[%s175] sm:$0xff]
      %v188 = vld [vmem:[%s179] sm:$0xff]
      %v189 = vadd.f32 %v187, %v188
      %vm190 = vcmask 261120
      %191 = vst.msk [vmem:[%s186] sm:$0xff] %vm190, %v189
      %p192 = scmp.lt.s32.totalorder %s17, 1
      %s193 = scalar_select %p192, %s17, 1
      %p194 = scmp.lt.s32.totalorder %s18, 0
      %s195 = scalar_select %p194, %s18, 0
      %s196 = sadd.s32 %s195, %s193
      %s197 = smul.addr %s196, 8
      %s198 = scalar_lea.vmem %s2, %s197
      // Predicated region
      $region29: #{encoder_forward.9} parent=27 // pred_check
        %p199 = pneg %p99
      $region30: #{encoder_forward.9} parent=27 // pred_check_branch
        %201 = sbr.rel (%p199) target = $region32
      $region31: #{encoder_forward.9} parent=27 // pred_region
        _
      $region32: #{encoder_forward.9} parent=27 // pred_fallthru
        _
    $region28: #{encoder_forward.9} parent=5 // pred_fallthru
      _
    %p202 = scmp.le.s32.totalorder 2, %s8
    // Predicated region
    $region33: #{encoder_forward.9} parent=5 // pred_check
      %p203 = pneg %p202
    $region34: #{encoder_forward.9} parent=5 // pred_check_branch
      %205 = sbr.rel (%p203) target = $region36
    $region35: #{encoder_forward.9} parent=5 // pred_region
      %s206 = ssub.s32 %s8, 2
      // Predicated region
      $region37: #{encoder_forward.9} parent=35 // pred_check
        %p207 = pneg %p105
      $region38: #{encoder_forward.9} parent=35 // pred_check_branch
        %209 = sbr.rel (%p207) target = $region40
      $region39: #{encoder_forward.9} parent=35 // pred_region
        %p210 = scmp.lt.s32.totalorder %s19, 1
        %s211 = scalar_select %p210, %s19, 1
        %p212 = scmp.lt.s32.totalorder %s20, 0
        %s213 = scalar_select %p212, %s20, 0
        %s214 = sadd.s32 %s213, %s211
        %s215 = smul.addr %s214, 8
        %s216 = scalar_lea.vmem %s2, %s215
      $region40: #{encoder_forward.9} parent=35 // pred_fallthru
        _
    $region36: #{encoder_forward.9} parent=5 // pred_fallthru
      _
  $region6: #{encoder_forward.9} parent=0 // loop_footer
    %s12 = sadd.s32 1, %s8
  $region7: #{encoder_forward.9} parent=0 // loop_footer_branch
    %7 = sbr.rel target = $region3
  $region8: #{encoder_forward.9} parent=0 // loop_exit
    _

// kernel: encoder_forward.10
$region0: #{encoder_forward.10}
  #allocation0 [shape = 'u32[]', space=smem, size = 0x4, offset = 0x4, fixed_abs, tag = 'smem constant byte address 0x4 - core index']
  #allocation1 [shape = 'u32[144,128]{1,0:T(1,128)}', space=vmem, size = 0x12000, scoped, tag = 'internal scratch']
  #allocation2 [shape = 'f32[8,96]{1,0:T(8,128)}', space=vmem, size = 0x1000, scoped, tag = 'scratch operand']
  %s0 = inlined_call_operand.vmem [shape: f32[16,32], index: 0, kind: input, shape index: {}]
  %s1 = inlined_call_operand.vmem [shape: bf16[32,96], index: 1, kind: input, shape index: {}]
  %s2 = inlined_call_operand.vmem [shape: f32[1,96], index: 2, kind: input, shape index: {}]
  %s3 = inlined_call_operand.vmem [shape: bf16[16,96], index: 3, kind: output, shape index: {}]
  %s4 = sld [smem:[#allocation0]]
  $region53: #{encoder_forward.10} parent=0
    _
  %s6 = ssub.s32 1, %s4
  %s7 = scalar_select 0, %s6, %s4
  loop: start=0, step=1, limit=4
  $region2: #{encoder_forward.10} parent=0 // loop_pre_header
    _
  $region3: #{encoder_forward.10} parent=0 // loop_header
    %s9 = sphi 0, %s13
    %p10 = scmp.ge.s32.totalorder %s9, 4
    %s16 = sphi 0, %s35
    %s17 = sphi 0, %s31
    %s18 = sphi 0, %s27
    %s19 = sphi 0, %s16
    %s20 = sphi 0, %s17
    %s21 = sphi 0, %s18
    %s22 = sphi 0, %s19
    %s23 = sphi 0, %s20
    %s24 = sphi 0, %s21
    %s40 = sphi 0, %s42
    %s43 = sphi 0, %s40
    %s44 = sphi 0, %s43
    %s60 = sphi 0, %s44
    %s68 = sphi 0, %s70
    %s71 = sphi 0, %s68
    %s72 = sphi 0, %s71
    %s88 = sphi 0, %s72
    %s94 = sphi 0, %s96
    %s97 = sphi 0, %s94
    %s98 = sphi 0, %s97
    %s114 = sphi 0, %s98
    %s122 = sphi 0, %s124
    %s125 = sphi 0, %s122
    %s126 = sphi 0, %s125
    %s142 = sphi 0, %s126
  $region4: #{encoder_forward.10} parent=0 // loop_header_branch
    %12 = sbr.rel (%p10) target = $region8
  $region5: #{encoder_forward.10} parent=0 // loop_body
    %s14 = ssub.s32 %s9, 1
    %s15 = ssub.s32 %s9, 2
    %s25 = sadd.s32 1, %s18
    %p26 = scmp.ge.s32.totalorder %s25, 1
    %s27 = scalar_select %p26, 0, %s25
    %s28 = sadd.s32 1, %s17
    %s29 = scalar_select %p26, %s28, %s17
    %p30 = scmp.ge.s32.totalorder %s29, 1
    %s31 = scalar_select %p30, 0, %s29
    %s32 = sadd.s32 1, %s16
    %s33 = scalar_select %p30, %s32, %s16
    %p34 = scmp.ge.s32.totalorder %s33, 2
    %s35 = scalar_select %p34, 0, %s33
    %s36 = ssub.s32 %s16, %s35
    %s37 = ssub.s32 %s18, %s27
    %s38 = sor.u32 %s36, %s37
    %p39 = scmp.eq.s32.totalorder %s38, 0
    %s41 = sadd.s32 %s40, 1
    %s42 = scalar_select %p39, %s40, %s41
    %p45 = pneg %p39
    %p46 = scmp.eq.s32.totalorder %s9, 1
    %p47 = por %p45, %p46
    %p48 = scmp.ne.s32.totalorder %s40, %s43
    %p49 = scmp.eq.s32.totalorder %s9, 0
    %p50 = por %p48, %p49
    %p51 = scmp.ne.s32.totalorder %s40, %s43
    %p52 = scmp.eq.s32.totalorder %s14, 1
    %p53 = por %p51, %p52
    %p54 = scmp.ne.s32.totalorder %s43, %s44
    %p55 = scmp.eq.s32.totalorder %s14, 0
    %p56 = por %p54, %p55
    %p57 = scmp.ne.s32.totalorder %s43, %s44
    %p58 = scmp.eq.s32.totalorder %s15, 1
    %p59 = por %p57, %p58
    %p61 = scmp.ne.s32.totalorder %s44, %s60
    %p62 = scmp.eq.s32.totalorder %s15, 0
    %p63 = por %p61, %p62
    %s64 = ssub.s32 %s18, %s27
    %s65 = ssub.s32 %s17, %s31
    %s66 = sor.u32 %s64, %s65
    %p67 = scmp.eq.s32.totalorder %s66, 0
    %s69 = sadd.s32 %s68, 1
    %s70 = scalar_select %p67, %s68, %s69
    %p73 = pneg %p67
    %p74 = scmp.eq.s32.totalorder %s9, 1
    %p75 = por %p73, %p74
    %p76 = scmp.ne.s32.totalorder %s68, %s71
    %p77 = scmp.eq.s32.totalorder %s9, 0
    %p78 = por %p76, %p77
    %p79 = scmp.ne.s32.totalorder %s68, %s71
    %p80 = scmp.eq.s32.totalorder %s14, 1
    %p81 = por %p79, %p80
    %p82 = scmp.ne.s32.totalorder %s71, %s72
    %p83 = scmp.eq.s32.totalorder %s14, 0
    %p84 = por %p82, %p83
    %p85 = scmp.ne.s32.totalorder %s71, %s72
    %p86 = scmp.eq.s32.totalorder %s15, 1
    %p87 = por %p85, %p86
    %p89 = scmp.ne.s32.totalorder %s72, %s88
    %p90 = scmp.eq.s32.totalorder %s15, 0
    %p91 = por %p89, %p90
    %s92 = ssub.s32 %s17, %s31
    %p93 = scmp.eq.s32.totalorder %s92, 0
    %s95 = sadd.s32 %s94, 1
    %s96 = scalar_select %p93, %s94, %s95
    %p99 = pneg %p93
    %p100 = scmp.eq.s32.totalorder %s9, 1
    %p101 = por %p99, %p100
    %p102 = scmp.ne.s32.totalorder %s94, %s97
    %p103 = scmp.eq.s32.totalorder %s9, 0
    %p104 = por %p102, %p103
    %p105 = scmp.ne.s32.totalorder %s94, %s97
    %p106 = scmp.eq.s32.totalorder %s14, 1
    %p107 = por %p105, %p106
    %p108 = scmp.ne.s32.totalorder %s97, %s98
    %p109 = scmp.eq.s32.totalorder %s14, 0
    %p110 = por %p108, %p109
    %p111 = scmp.ne.s32.totalorder %s97, %s98
    %p112 = scmp.eq.s32.totalorder %s15, 1
    %p113 = por %p111, %p112
    %p115 = scmp.ne.s32.totalorder %s98, %s114
    %p116 = scmp.eq.s32.totalorder %s15, 0
    %p117 = por %p115, %p116
    %s118 = ssub.s32 %s16, %s35
    %s119 = ssub.s32 %s17, %s31
    %s120 = sor.u32 %s118, %s119
    %p121 = scmp.eq.s32.totalorder %s120, 0
    %s123 = sadd.s32 %s122, 1
    %s124 = scalar_select %p121, %s122, %s123
    %p127 = pneg %p121
    %p128 = scmp.eq.s32.totalorder %s9, 1
    %p129 = por %p127, %p128
    %p130 = scmp.ne.s32.totalorder %s122, %s125
    %p131 = scmp.eq.s32.totalorder %s9, 0
    %p132 = por %p130, %p131
    %p133 = scmp.ne.s32.totalorder %s122, %s125
    %p134 = scmp.eq.s32.totalorder %s14, 1
    %p135 = por %p133, %p134
    %p136 = scmp.ne.s32.totalorder %s125, %s126
    %p137 = scmp.eq.s32.totalorder %s14, 0
    %p138 = por %p136, %p137
    %p139 = scmp.ne.s32.totalorder %s125, %s126
    %p140 = scmp.eq.s32.totalorder %s15, 1
    %p141 = por %p139, %p140
    %p143 = scmp.ne.s32.totalorder %s126, %s142
    %p144 = scmp.eq.s32.totalorder %s15, 0
    %p145 = por %p143, %p144
    %p146 = scmp.le.s32.totalorder 1, %s9
    %p147 = scmp.lt.s32.totalorder %s9, 3
    %p148 = pnand %p146, %p147
    %p149 = pneg %p148
    // Predicated region
    $region9: #{encoder_forward.10} parent=5 // pred_check
      _
    $region10: #{encoder_forward.10} parent=5 // pred_check_branch
      %151 = sbr.rel (%p148) target = $region12
    $region11: #{encoder_forward.10} parent=5 // pred_region
      %s152 = ssub.s32 %s9, 1
      // Predicated region
      $region13: #{encoder_forward.10} parent=11 // pred_check
        %p153 = pneg %p84
      $region14: #{encoder_forward.10} parent=11 // pred_check_branch
        %155 = sbr.rel (%p153) target = $region16
      $region15: #{encoder_forward.10} parent=11 // pred_region
        %s156 = smul.u32 4, %s21
        %p157 = scmp.lt.s32.totalorder %s156, 3
        %s158 = scalar_select %p157, %s156, 3
        %p159 = scmp.lt.s32.totalorder %s20, 0
        %s160 = scalar_select %p159, %s20, 0
        %s161 = sadd.s32 %s160, %s158
        %s162 = smul.addr %s161, 4
        %s163 = scalar_lea.vmem %s1, %s162
        %s164 = smul.u32 4, %s21
      $region16: #{encoder_forward.10} parent=11 // pred_fallthru
        _
      // Predicated region
      $region17: #{encoder_forward.10} parent=11 // pred_check
        %p165 = pneg %p110
      $region18: #{encoder_forward.10} parent=11 // pred_check_branch
        %167 = sbr.rel (%p165) target = $region20
      $region19: #{encoder_forward.10} parent=11 // pred_region
        %p168 = scmp.lt.s32.totalorder %s20, 0
        %s169 = scalar_select %p168, %s20, 0
        %s170 = scalar_lea.vmem %s2, %s169
      $region20: #{encoder_forward.10} parent=11 // pred_fallthru
        _
    $region12: #{encoder_forward.10} parent=5 // pred_fallthru
      _
    %p171 = scmp.lt.s32.totalorder %s9, 2
    // Predicated region
    $region21: #{encoder_forward.10} parent=5 // pred_check
      %p172 = pneg %p171
    $region22: #{encoder_forward.10} parent=5 // pred_check_branch
      %174 = sbr.rel (%p172) target = $region24
    $region23: #{encoder_forward.10} parent=5 // pred_region
      // Predicated region
      $region25: #{encoder_forward.10} parent=23 // pred_check
        %p175 = pneg %p50
      $region26: #{encoder_forward.10} parent=23 // pred_check_branch
        %177 = sbr.rel (%p175) target = $region28
      $region27: #{encoder_forward.10} parent=23 // pred_region
        %p178 = scmp.lt.s32.totalorder %s16, 1
        %s179 = scalar_select %p178, %s16, 1
        %p180 = scmp.lt.s32.totalorder %s18, 0
        %s181 = scalar_select %p180, %s18, 0
        %s182 = sadd.s32 %s181, %s179
        %s183 = smul.addr %s182, 8
        %s184 = scalar_lea.vmem %s0, %s183
      $region28: #{encoder_forward.10} parent=23 // pred_fallthru
        _
    $region24: #{encoder_forward.10} parent=5 // pred_fallthru
      _
    %p185 = scmp.le.s32.totalorder 1, %s9
    %p186 = scmp.lt.s32.totalorder %s9, 3
    %p187 = pnand %p185, %p186
    %p188 = pneg %p187
    // Predicated region
    $region29: #{encoder_forward.10} parent=5 // pred_check
      _
    $region30: #{encoder_forward.10} parent=5 // pred_check_branch
      %190 = sbr.rel (%p187) target = $region32
    $region31: #{encoder_forward.10} parent=5 // pred_region
      %s191 = ssub.s32 %s9, 1
      %p192 = scmp.lt.s32.totalorder %s19, 1
      %s193 = scalar_select %p192, %s19, 1
      %p194 = scmp.lt.s32.totalorder %s21, 0
      %s195 = scalar_select %p194, %s21, 0
      %s196 = sadd.s32 %s195, %s193
      %s197 = smul.addr %s196, 8
      %s198 = scalar_lea.vmem %s0, %s197
      %p199 = pneg %p56
      %p200 = pneg %p53
      %s201 = smul.u32 4, %s21
      %p202 = scmp.lt.s32.totalorder %s201, 3
      %s203 = scalar_select %p202, %s201, 3
      %p204 = scmp.lt.s32.totalorder %s20, 0
      %s205 = scalar_select %p204, %s20, 0
      %s206 = sadd.s32 %s205, %s203
      %s207 = smul.addr %s206, 4
      %s208 = scalar_lea.vmem %s1, %s207
      %p209 = pneg %p84
      %p210 = pneg %p81
      %p211 = scmp.lt.s32.totalorder %s20, 0
      %s212 = scalar_select %p211, %s20, 0
      %s213 = scalar_lea.vmem %s2, %s212
      %p214 = pneg %p110
      %p215 = pneg %p107
      %p216 = pneg %p138
      %p217 = pneg %p135
      %p218 = scmp.lt.s32.totalorder %s19, 1
      %s219 = scalar_select %p218, %s19, 1
      %p220 = scmp.lt.s32.totalorder %s20, 0
      %s221 = scalar_select %p220, %s20, 0
      %s222 = sadd.s32 %s221, %s219
      %s223 = smul.addr %s222, 4
      %s224 = scalar_lea.vmem %s3, %s223
      %p225 = scmp.lt.s32.totalorder %s19, 1
      %s226 = scalar_select %p225, %s19, 1
      %p227 = scmp.lt.s32.totalorder %s21, 0
      %s228 = scalar_select %p227, %s21, 0
      %s229 = sadd.s32 %s228, %s226
      %s230 = smul.addr %s229, 8
      %s231 = scalar_lea.vmem %s0, %s230
      %s232 = smul.u32 4, %s21
      %p233 = scmp.lt.s32.totalorder %s232, 3
      %s234 = scalar_select %p233, %s232, 3
      %p235 = scmp.lt.s32.totalorder %s20, 0
      %s236 = scalar_select %p235, %s20, 0
      %s237 = sadd.s32 %s236, %s234
      %s238 = smul.addr %s237, 4
      %s239 = scalar_lea.vmem %s1, %s238
      %s240 = smul.u32 4, %s21
      %p241 = scmp.lt.s32.totalorder %s20, 0
      %s242 = scalar_select %p241, %s20, 0
      %s243 = scalar_lea.vmem %s2, %s242
      %p244 = scmp.lt.s32.totalorder %s19, 1
      %s245 = scalar_select %p244, %s19, 1
      %p246 = scmp.lt.s32.totalorder %s20, 0
      %s247 = scalar_select %p246, %s20, 0
      %s248 = sadd.s32 %s247, %s245
      %s249 = smul.addr %s248, 4
      %s250 = scalar_lea.vmem %s3, %s249
      %p252 = scmp.eq.s32.totalorder %s21, 0
      // Predicated region
      $region33: #{encoder_forward.10} parent=31 // pred_check
        %p253 = pneg %p252
      $region34: #{encoder_forward.10} parent=31 // pred_check_branch
        %255 = sbr.rel (%p253) target = $region36
      $region35: #{encoder_forward.10} parent=31 // pred_region
        %vm256 = vcmask 785408
        %257 = vst.msk [vmem:[#allocation2] sm:$0xff] %vm256, 0.0
      $region36: #{encoder_forward.10} parent=31 // pred_fallthru
        _
      %v258 = vld [vmem:[#allocation2] sm:$0xff]
      %v259 = vld [vmem:[%s231] sm:$0xff]
      %v260 = vpack.c.bf16 %v259, %v259
      %v261 = vld [vmem:[%s239] sm:$0xf]
      %v262 = vld [vmem:[%s239 + $0x4] sm:$0xf]
      %v263 = vld [vmem:[%s239 + $0x8] sm:$0xf]
      %v264 = vld [vmem:[%s239 + $0xc] sm:$0xf]
      %v269 = vunpack.c.l.b16 %v261
      %v270 = vunpack.c.l.b16 %v262
      %v271 = vunpack.c.l.b16 %v263
      %v272 = vunpack.c.l.b16 %v264
      %v273 = vpack.c.b16 %v270, %v269
      %v274 = vpack.c.b16 %v272, %v271
      %vm277 = vcmask 261120
      %v279 = vsel %vm277, %v260, 0
      %281 = vmatprep.subr.bf16.mxu0 0
      %282 = vmatpush1.bf16.msra.mxu0 0
      %283 = vmatprep.subr.bf16.mxu0 0
      %284 = vmatpush1.bf16.msra.mxu0 0
      %285 = vmatprep.subr.bf16.mxu0 0
      %286 = vmatpush1.bf16.msra.mxu0 0
      %287 = vmatprep.subr.bf16.mxu0 0
      %288 = vmatpush1.bf16.msra.mxu0 0
      %289 = vmatprep.subr.bf16.mxu0 0
      %290 = vmatpush1.bf16.msra.mxu0 0
      %291 = vmatprep.subr.bf16.mxu0 0
      %292 = vmatpush1.bf16.msra.mxu0 0
      %293 = vmatprep.subr.bf16.mxu0 0
      %294 = vmatpush1.bf16.msra.mxu0 %v274
      %295 = vmatprep.subr.bf16.mxu0 0
      %296 = vmatpush1.bf16.msra.mxu0 %v273
      %297 = vmatprep.subr.bf16.mxu0 0
      %298 = vmatpush2.bf16.msra.mxu0 0
      %299 = vmatprep.subr.bf16.mxu0 0
      %300 = vmatpush2.bf16.msra.mxu0 0
      %301 = vmatprep.subr.bf16.mxu0 0
      %302 = vmatpush2.bf16.msra.mxu0 0
      %303 = vmatprep.subr.bf16.mxu0 0
      %304 = vmatpush2.bf16.msra.mxu0 0
      %305 = vmatprep.subr.bf16.mxu0 0
      %306 = vmatpush2.bf16.msra.mxu0 0
      %307 = vmatprep.subr.bf16.mxu0 0
      %308 = vmatpush2.bf16.msra.mxu0 0
      %309 = vmatprep.subr.bf16.mxu0 0
      %310 = vmatpush2.bf16.msra.mxu0 0
      %311 = vmatprep.subr.bf16.mxu0 0
      %312 = vmatpush2.bf16.msra.mxu0 0
      %313 = vmatprep.mubr.bf16.mxu0 0
      %314 = vmatmul.mubr.bf16.gmra.mxu0 %v279
      %v315 = vpop.f32.mrf.mxu0
      %v316 = vadd.f32 0.0, %v315
      %v317 = vpop.f32.mrf.mxu0
      %v318 = vpop.f32.mrf.mxu0
      %v319 = vpop.f32.mrf.mxu0
      %320 = vdwg.mxu0
      %v321 = vadd.f32 %v258, %v316
      %vm322 = vcmask 785408
      %323 = vst.msk [vmem:[#allocation2] sm:$0xff] %vm322, %v321
      // Predicated region
      $region37: #{encoder_forward.10} parent=31 // pred_check
        %p324 = pneg %p252
      $region38: #{encoder_forward.10} parent=31 // pred_check_branch
        %326 = sbr.rel (%p324) target = $region40
      $region39: #{encoder_forward.10} parent=31 // pred_region
        %v327 = vld [vmem:[#allocation2] sm:$0xff]
        %v328 = vld [vmem:[%s243] sm:$0x1]
        %v330 = vlaneseq
        %v331 = vshrl.u32 %v330, 7
        %v332 = vsub.s32 0, %v331
        %v333 = vrot.slane %v328, %v332
        %v335 = vadd.f32 %v327, %v333
        %v336 = vpack.c.bf16 %v335, %v335
        %vm337 = vcmask 781312
        %338 = vst.msk [vmem:[%s250] sm:$0xf] %vm337, %v336
      $region40: #{encoder_forward.10} parent=31 // pred_fallthru
        _
      %p339 = scmp.lt.s32.totalorder %s19, 1
      %s340 = scalar_select %p339, %s19, 1
      %p341 = scmp.lt.s32.totalorder %s20, 0
      %s342 = scalar_select %p341, %s20, 0
      %s343 = sadd.s32 %s342, %s340
      %s344 = smul.addr %s343, 4
      %s345 = scalar_lea.vmem %s3, %s344
      // Predicated region
      $region41: #{encoder_forward.10} parent=31 // pred_check
        %p346 = pneg %p135
      $region42: #{encoder_forward.10} parent=31 // pred_check_branch
        %348 = sbr.rel (%p346) target = $region44
      $region43: #{encoder_forward.10} parent=31 // pred_region
        _
      $region44: #{encoder_forward.10} parent=31 // pred_fallthru
        _
    $region32: #{encoder_forward.10} parent=5 // pred_fallthru
      _
    %p349 = scmp.le.s32.totalorder 2, %s9
    // Predicated region
    $region45: #{encoder_forward.10} parent=5 // pred_check
      %p350 = pneg %p349
    $region46: #{encoder_forward.10} parent=5 // pred_check_branch
      %352 = sbr.rel (%p350) target = $region48
    $region47: #{encoder_forward.10} parent=5 // pred_region
      %s353 = ssub.s32 %s9, 2
      // Predicated region
      $region49: #{encoder_forward.10} parent=47 // pred_check
        %p354 = pneg %p141
      $region50: #{encoder_forward.10} parent=47 // pred_check_branch
        %356 = sbr.rel (%p354) target = $region52
      $region51: #{encoder_forward.10} parent=47 // pred_region
        %p357 = scmp.lt.s32.totalorder %s22, 1
        %s358 = scalar_select %p357, %s22, 1
        %p359 = scmp.lt.s32.totalorder %s23, 0
        %s360 = scalar_select %p359, %s23, 0
        %s361 = sadd.s32 %s360, %s358
        %s362 = smul.addr %s361, 4
        %s363 = scalar_lea.vmem %s3, %s362
      $region52: #{encoder_forward.10} parent=47 // pred_fallthru
        _
    $region48: #{encoder_forward.10} parent=5 // pred_fallthru
      _
  $region6: #{encoder_forward.10} parent=0 // loop_footer
    %s13 = sadd.s32 1, %s9
  $region7: #{encoder_forward.10} parent=0 // loop_footer_branch
    %8 = sbr.rel target = $region3
  $region8: #{encoder_forward.10} parent=0 // loop_exit
    _

// kernel: encoder_forward.11
$region0: #{encoder_forward.11}
  #allocation0 [shape = 'u32[]', space=smem, size = 0x4, offset = 0x4, fixed_abs, tag = 'smem constant byte address 0x4 - core index']
  #allocation1 [shape = 'u32[144,128]{1,0:T(1,128)}', space=vmem, size = 0x12000, scoped, tag = 'internal scratch']
  %s0 = inlined_call_operand.vmem [shape: bf16[2,8,96], index: 0, kind: input, shape index: {}]
  %s1 = inlined_call_operand.vmem [shape: bf16[2,8,32], index: 1, kind: output, shape index: {}]
  %s2 = sld [smem:[#allocation0]]
  $region37: #{encoder_forward.11} parent=0
    _
  %s4 = ssub.s32 1, %s2
  %s5 = scalar_select 0, %s4, %s2
  loop: start=0, step=1, limit=4
  $region2: #{encoder_forward.11} parent=0 // loop_pre_header
    _
  $region3: #{encoder_forward.11} parent=0 // loop_header
    %s7 = sphi 0, %s11
    %p8 = scmp.ge.s32.totalorder %s7, 4
    %s17 = sphi 0, %s19
    %s20 = sphi 0, %s17
    %s21 = sphi 0, %s20
    %s37 = sphi 0, %s21
    %s43 = sphi 0, %s45
    %s46 = sphi 0, %s43
    %s47 = sphi 0, %s46
    %s63 = sphi 0, %s47
  $region4: #{encoder_forward.11} parent=0 // loop_header_branch
    %10 = sbr.rel (%p8) target = $region8
  $region5: #{encoder_forward.11} parent=0 // loop_body
    %s12 = ssub.s32 %s7, 1
    %s13 = ssub.s32 %s7, 2
    %s14 = sadd.s32 %s7, 1
    %s15 = ssub.s32 %s7, %s14
    %p16 = scmp.eq.s32.totalorder %s15, 0
    %s18 = sadd.s32 %s17, 1
    %s19 = scalar_select %p16, %s17, %s18
    %p22 = pneg %p16
    %p23 = scmp.eq.s32.totalorder %s7, 1
    %p24 = por %p22, %p23
    %p25 = scmp.ne.s32.totalorder %s17, %s20
    %p26 = scmp.eq.s32.totalorder %s7, 0
    %p27 = por %p25, %p26
    %p28 = scmp.ne.s32.totalorder %s17, %s20
    %p29 = scmp.eq.s32.totalorder %s12, 1
    %p30 = por %p28, %p29
    %p31 = scmp.ne.s32.totalorder %s20, %s21
    %p32 = scmp.eq.s32.totalorder %s12, 0
    %p33 = por %p31, %p32
    %p34 = scmp.ne.s32.totalorder %s20, %s21
    %p35 = scmp.eq.s32.totalorder %s13, 1
    %p36 = por %p34, %p35
    %p38 = scmp.ne.s32.totalorder %s21, %s37
    %p39 = scmp.eq.s32.totalorder %s13, 0
    %p40 = por %p38, %p39
    %s41 = ssub.s32 %s7, %s14
    %p42 = scmp.eq.s32.totalorder %s41, 0
    %s44 = sadd.s32 %s43, 1
    %s45 = scalar_select %p42, %s43, %s44
    %p48 = pneg %p42
    %p49 = scmp.eq.s32.totalorder %s7, 1
    %p50 = por %p48, %p49
    %p51 = scmp.ne.s32.totalorder %s43, %s46
    %p52 = scmp.eq.s32.totalorder %s7, 0
    %p53 = por %p51, %p52
    %p54 = scmp.ne.s32.totalorder %s43, %s46
    %p55 = scmp.eq.s32.totalorder %s12, 1
    %p56 = por %p54, %p55
    %p57 = scmp.ne.s32.totalorder %s46, %s47
    %p58 = scmp.eq.s32.totalorder %s12, 0
    %p59 = por %p57, %p58
    %p60 = scmp.ne.s32.totalorder %s46, %s47
    %p61 = scmp.eq.s32.totalorder %s13, 1
    %p62 = por %p60, %p61
    %p64 = scmp.ne.s32.totalorder %s47, %s63
    %p65 = scmp.eq.s32.totalorder %s13, 0
    %p66 = por %p64, %p65
    %p67 = scmp.le.s32.totalorder 1, %s7
    %p68 = scmp.lt.s32.totalorder %s7, 3
    %p69 = pnand %p67, %p68
    %p70 = pneg %p69
    // Predicated region
    $region9: #{encoder_forward.11} parent=5 // pred_check
      _
    $region10: #{encoder_forward.11} parent=5 // pred_check_branch
      %72 = sbr.rel (%p69) target = $region12
    $region11: #{encoder_forward.11} parent=5 // pred_region
      %s73 = ssub.s32 %s7, 1
    $region12: #{encoder_forward.11} parent=5 // pred_fallthru
      _
    %p74 = scmp.lt.s32.totalorder %s7, 2
    // Predicated region
    $region13: #{encoder_forward.11} parent=5 // pred_check
      %p75 = pneg %p74
    $region14: #{encoder_forward.11} parent=5 // pred_check_branch
      %77 = sbr.rel (%p75) target = $region16
    $region15: #{encoder_forward.11} parent=5 // pred_region
      // Predicated region
      $region17: #{encoder_forward.11} parent=15 // pred_check
        %p78 = pneg %p27
      $region18: #{encoder_forward.11} parent=15 // pred_check_branch
        %80 = sbr.rel (%p78) target = $region20
      $region19: #{encoder_forward.11} parent=15 // pred_region
        %p81 = scmp.lt.s32.totalorder %s7, 1
        %s82 = scalar_select %p81, %s7, 1
        %s83 = smul.addr %s82, 4
        %s84 = scalar_lea.vmem %s0, %s83
      $region20: #{encoder_forward.11} parent=15 // pred_fallthru
        _
    $region16: #{encoder_forward.11} parent=5 // pred_fallthru
      _
    %p85 = scmp.le.s32.totalorder 1, %s7
    %p86 = scmp.lt.s32.totalorder %s7, 3
    %p87 = pnand %p85, %p86
    %p88 = pneg %p87
    // Predicated region
    $region21: #{encoder_forward.11} parent=5 // pred_check
      _
    $region22: #{encoder_forward.11} parent=5 // pred_check_branch
      %90 = sbr.rel (%p87) target = $region24
    $region23: #{encoder_forward.11} parent=5 // pred_region
      %s91 = ssub.s32 %s7, 1
      %p92 = scmp.lt.s32.totalorder %s12, 1
      %s93 = scalar_select %p92, %s12, 1
      %s94 = smul.addr %s93, 4
      %s95 = scalar_lea.vmem %s0, %s94
      %p96 = pneg %p33
      %p97 = pneg %p30
      %p98 = pneg %p59
      %p99 = pneg %p56
      %p100 = scmp.lt.s32.totalorder %s12, 1
      %s101 = scalar_select %p100, %s12, 1
      %s102 = smul.addr %s101, 4
      %s103 = scalar_lea.vmem %s1, %s102
      %p104 = scmp.lt.s32.totalorder %s12, 1
      %s105 = scalar_select %p104, %s12, 1
      %s106 = smul.addr %s105, 4
      %s107 = scalar_lea.vmem %s0, %s106
      %p108 = scmp.lt.s32.totalorder %s12, 1
      %s109 = scalar_select %p108, %s12, 1
      %s110 = smul.addr %s109, 4
      %s111 = scalar_lea.vmem %s1, %s110
      %v113 = vld [vmem:[%s107] sm:$0xf]
      %v115 = vunpack.c.l.b16 %v113
      %v116 = vpack.c.b16 %v115, %v115
      %117 = vrot.lane.b32.xlu0 %v116, 96
      %v118 = vpop.permute.xlu0 %117
      %vm119 = vcmask 130048
      %v121 = vsel %vm119, %v113, 0
      %v124 = vsel %vm119, %v118, 0
      %126 = vmatprep.subr.bf16.mxu0 0
      %127 = vmatpush1.bf16.xpose.msra.mxu0 0
      %128 = vmatprep.subr.bf16.mxu0 0
      %129 = vmatpush1.bf16.xpose.msra.mxu0 0
      %130 = vmatprep.subr.bf16.mxu0 0
      %131 = vmatpush1.bf16.xpose.msra.mxu0 0
      %132 = vmatprep.subr.bf16.mxu0 0
      %133 = vmatpush1.bf16.xpose.msra.mxu0 0
      %134 = vmatprep.subr.bf16.mxu0 0
      %135 = vmatpush1.bf16.xpose.msra.mxu0 0
      %136 = vmatprep.subr.bf16.mxu0 0
      %137 = vmatpush1.bf16.xpose.msra.mxu0 0
      %138 = vmatprep.subr.bf16.mxu0 0
      %139 = vmatpush1.bf16.xpose.msra.mxu0 0
      %140 = vmatprep.subr.bf16.mxu0 0
      %141 = vmatpush1.bf16.xpose.msra.mxu0 %v124
      %142 = vmatprep.subr.bf16.mxu0 0
      %143 = vmatpush2.bf16.xpose.msra.mxu0 0
      %144 = vmatprep.subr.bf16.mxu0 0
      %145 = vmatpush2.bf16.xpose.msra.mxu0 0
      %146 = vmatprep.subr.bf16.mxu0 0
      %147 = vmatpush2.bf16.xpose.msra.mxu0 0
      %148 = vmatprep.subr.bf16.mxu0 0
      %149 = vmatpush2.bf16.xpose.msra.mxu0 0
      %150 = vmatprep.subr.bf16.mxu0 0
      %151 = vmatpush2.bf16.xpose.msra.mxu0 0
      %152 = vmatprep.subr.bf16.mxu0 0
      %153 = vmatpush2.bf16.xpose.msra.mxu0 0
      %154 = vmatprep.subr.bf16.mxu0 0
      %155 = vmatpush2.bf16.xpose.msra.mxu0 0
      %156 = vmatprep.subr.bf16.mxu0 0
      %157 = vmatpush2.bf16.xpose.msra.mxu0 0
      %158 = vmatprep.mubr.bf16.mxu0 0
      %159 = vmatmul.mubr.bf16.gmra.mxu0 %v121
      %v160 = vpop.f32.mrf.mxu0
      %v161 = vadd.f32 0.0, %v160
      %v162 = vpop.f32.mrf.mxu0
      %v163 = vpop.f32.mrf.mxu0
      %v164 = vpop.f32.mrf.mxu0
      %165 = vdwg.mxu0
      %vm166 = vcmask 64512
      %v167 = vsel %vm166, %v161, -inf
      %168 = vmax.xlane.f32.xlu0 %v167
      %v169 = vpop.xlane.xlu0 %168
      %v170 = vsub.f32 %v161, %v169
      %v171 = vmul.f32 %v170, 1.442695
      %v172 = vpow.pop %v171
      %v173 = vsel %vm166, %v172, 0.0
      %174 = vadd.xlane.f32.xlu0 %v173
      %v175 = vpop.xlane.xlu0 %174
      %v176 = vrcp.pop %v175
      %v177 = vmul.f32 %v172, %v176
      %v178 = vpack.c.bf16 %v177, %v177
      %179 = vrot.lane.b32.xlu0 %v116, 64
      %v180 = vpop.permute.xlu0 %179
      %v182 = vsel %vm166, %v178, 0
      %vm184 = vcmask 1043456
      %v186 = vsel %vm184, %v180, 0
      %188 = vmatprep.subr.bf16.mxu0 0
      %189 = vmatpush1.bf16.msra.mxu0 0
      %190 = vmatprep.subr.bf16.mxu0 0
      %191 = vmatpush1.bf16.msra.mxu0 0
      %192 = vmatprep.subr.bf16.mxu0 0
      %193 = vmatpush1.bf16.msra.mxu0 0
      %194 = vmatprep.subr.bf16.mxu0 0
      %195 = vmatpush1.bf16.msra.mxu0 0
      %196 = vmatprep.subr.bf16.mxu0 0
      %197 = vmatpush1.bf16.msra.mxu0 0
      %198 = vmatprep.subr.bf16.mxu0 0
      %199 = vmatpush1.bf16.msra.mxu0 0
      %200 = vmatprep.subr.bf16.mxu0 0
      %201 = vmatpush1.bf16.msra.mxu0 0
      %202 = vmatprep.subr.bf16.mxu0 0
      %203 = vmatpush1.bf16.msra.mxu0 %v186
      %204 = vmatprep.subr.bf16.mxu0 0
      %205 = vmatpush2.bf16.msra.mxu0 0
      %206 = vmatprep.subr.bf16.mxu0 0
      %207 = vmatpush2.bf16.msra.mxu0 0
      %208 = vmatprep.subr.bf16.mxu0 0
      %209 = vmatpush2.bf16.msra.mxu0 0
      %210 = vmatprep.subr.bf16.mxu0 0
      %211 = vmatpush2.bf16.msra.mxu0 0
      %212 = vmatprep.subr.bf16.mxu0 0
      %213 = vmatpush2.bf16.msra.mxu0 0
      %214 = vmatprep.subr.bf16.mxu0 0
      %215 = vmatpush2.bf16.msra.mxu0 0
      %216 = vmatprep.subr.bf16.mxu0 0
      %217 = vmatpush2.bf16.msra.mxu0 0
      %218 = vmatprep.subr.bf16.mxu0 0
      %219 = vmatpush2.bf16.msra.mxu0 0
      %220 = vmatprep.mubr.bf16.mxu0 0
      %221 = vmatmul.mubr.bf16.gmra.mxu0 %v182
      %v222 = vpop.f32.mrf.mxu0
      %v223 = vadd.f32 0.0, %v222
      %v224 = vpop.f32.mrf.mxu0
      %v225 = vpop.f32.mrf.mxu0
      %v226 = vpop.f32.mrf.mxu0
      %227 = vdwg.mxu0
      %228 = vrot.lane.b32.xlu0 %v116, 112
      %v229 = vpop.permute.xlu0 %228
      %230 = vrot.lane.b32.xlu0 %v116, 80
      %v231 = vpop.permute.xlu0 %230
      %v233 = vsel %vm119, %v229, 0
      %v236 = vsel %vm119, %v231, 0
      %238 = vmatprep.subr.bf16.mxu0 0
      %239 = vmatpush1.bf16.xpose.msra.mxu0 0
      %240 = vmatprep.subr.bf16.mxu0 0
      %241 = vmatpush1.bf16.xpose.msra.mxu0 0
      %242 = vmatprep.subr.bf16.mxu0 0
      %243 = vmatpush1.bf16.xpose.msra.mxu0 0
      %244 = vmatprep.subr.bf16.mxu0 0
      %245 = vmatpush1.bf16.xpose.msra.mxu0 0
      %246 = vmatprep.subr.bf16.mxu0 0
      %247 = vmatpush1.bf16.xpose.msra.mxu0 0
      %248 = vmatprep.subr.bf16.mxu0 0
      %249 = vmatpush1.bf16.xpose.msra.mxu0 0
      %250 = vmatprep.subr.bf16.mxu0 0
      %251 = vmatpush1.bf16.xpose.msra.mxu0 0
      %252 = vmatprep.subr.bf16.mxu0 0
      %253 = vmatpush1.bf16.xpose.msra.mxu0 %v236
      %254 = vmatprep.subr.bf16.mxu0 0
      %255 = vmatpush2.bf16.xpose.msra.mxu0 0
      %256 = vmatprep.subr.bf16.mxu0 0
      %257 = vmatpush2.bf16.xpose.msra.mxu0 0
      %258 = vmatprep.subr.bf16.mxu0 0
      %259 = vmatpush2.bf16.xpose.msra.mxu0 0
      %260 = vmatprep.subr.bf16.mxu0 0
      %261 = vmatpush2.bf16.xpose.msra.mxu0 0
      %262 = vmatprep.subr.bf16.mxu0 0
      %263 = vmatpush2.bf16.xpose.msra.mxu0 0
      %264 = vmatprep.subr.bf16.mxu0 0
      %265 = vmatpush2.bf16.xpose.msra.mxu0 0
      %266 = vmatprep.subr.bf16.mxu0 0
      %267 = vmatpush2.bf16.xpose.msra.mxu0 0
      %268 = vmatprep.subr.bf16.mxu0 0
      %269 = vmatpush2.bf16.xpose.msra.mxu0 0
      %270 = vmatprep.mubr.bf16.mxu0 0
      %271 = vmatmul.mubr.bf16.gmra.mxu0 %v233
      %v272 = vpop.f32.mrf.mxu0
      %v273 = vadd.f32 0.0, %v272
      %v274 = vpop.f32.mrf.mxu0
      %v275 = vpop.f32.mrf.mxu0
      %v276 = vpop.f32.mrf.mxu0
      %277 = vdwg.mxu0
      %v278 = vsel %vm166, %v273, -inf
      %279 = vmax.xlane.f32.xlu0 %v278
      %v280 = vpop.xlane.xlu0 %279
      %v281 = vsub.f32 %v273, %v280
      %v282 = vmul.f32 %v281, 1.442695
      %v283 = vpow.pop %v282
      %v284 = vsel %vm166, %v283, 0.0
      %285 = vadd.xlane.f32.xlu0 %v284
      %v286 = vpop.xlane.xlu0 %285
      %v287 = vrcp.pop %v286
      %v288 = vmul.f32 %v283, %v287
      %v289 = vpack.c.bf16 %v288, %v288
      %290 = vrot.lane.b32.xlu0 %v116, 48
      %v291 = vpop.permute.xlu0 %290
      %v293 = vsel %vm166, %v289, 0
      %v296 = vsel %vm184, %v291, 0
      %298 = vmatprep.subr.bf16.mxu0 0
      %299 = vmatpush1.bf16.msra.mxu0 0
      %300 = vmatprep.subr.bf16.mxu0 0
      %301 = vmatpush1.bf16.msra.mxu0 0
      %302 = vmatprep.subr.bf16.mxu0 0
      %303 = vmatpush1.bf16.msra.mxu0 0
      %304 = vmatprep.subr.bf16.mxu0 0
      %305 = vmatpush1.bf16.msra.mxu0 0
      %306 = vmatprep.subr.bf16.mxu0 0
      %307 = vmatpush1.bf16.msra.mxu0 0
      %308 = vmatprep.subr.bf16.mxu0 0
      %309 = vmatpush1.bf16.msra.mxu0 0
      %310 = vmatprep.subr.bf16.mxu0 0
      %311 = vmatpush1.bf16.msra.mxu0 0
      %312 = vmatprep.subr.bf16.mxu0 0
      %313 = vmatpush1.bf16.msra.mxu0 %v296
      %314 = vmatprep.subr.bf16.mxu0 0
      %315 = vmatpush2.bf16.msra.mxu0 0
      %316 = vmatprep.subr.bf16.mxu0 0
      %317 = vmatpush2.bf16.msra.mxu0 0
      %318 = vmatprep.subr.bf16.mxu0 0
      %319 = vmatpush2.bf16.msra.mxu0 0
      %320 = vmatprep.subr.bf16.mxu0 0
      %321 = vmatpush2.bf16.msra.mxu0 0
      %322 = vmatprep.subr.bf16.mxu0 0
      %323 = vmatpush2.bf16.msra.mxu0 0
      %324 = vmatprep.subr.bf16.mxu0 0
      %325 = vmatpush2.bf16.msra.mxu0 0
      %326 = vmatprep.subr.bf16.mxu0 0
      %327 = vmatpush2.bf16.msra.mxu0 0
      %328 = vmatprep.subr.bf16.mxu0 0
      %329 = vmatpush2.bf16.msra.mxu0 0
      %330 = vmatprep.mubr.bf16.mxu0 0
      %331 = vmatmul.mubr.bf16.gmra.mxu0 %v293
      %v332 = vpop.f32.mrf.mxu0
      %v333 = vadd.f32 0.0, %v332
      %v334 = vpop.f32.mrf.mxu0
      %v335 = vpop.f32.mrf.mxu0
      %v336 = vpop.f32.mrf.mxu0
      %337 = vdwg.mxu0
      %339 = vrot.lane.b32.xlu0 %v333, 16
      %v340 = vpop.permute.xlu0 %339
      %v342 = vsel %vm119, %v223, %v340
      %v343 = vpack.c.bf16 %v342, %v342
      %vm344 = vcmask 257024
      %345 = vst.msk [vmem:[%s111] sm:$0xf] %vm344, %v343
      %p346 = scmp.lt.s32.totalorder %s12, 1
      %s347 = scalar_select %p346, %s12, 1
      %s348 = smul.addr %s347, 4
      %s349 = scalar_lea.vmem %s1, %s348
      // Predicated region
      $region25: #{encoder_forward.11} parent=23 // pred_check
        %p350 = pneg %p56
      $region26: #{encoder_forward.11} parent=23 // pred_check_branch
        %352 = sbr.rel (%p350) target = $region28
      $region27: #{encoder_forward.11} parent=23 // pred_region
        _
      $region28: #{encoder_forward.11} parent=23 // pred_fallthru
        _
    $region24: #{encoder_forward.11} parent=5 // pred_fallthru
      _
    %p353 = scmp.le.s32.totalorder 2, %s7
    // Predicated region
    $region29: #{encoder_forward.11} parent=5 // pred_check
      %p354 = pneg %p353
    $region30: #{encoder_forward.11} parent=5 // pred_check_branch
      %356 = sbr.rel (%p354) target = $region32
    $region31: #{encoder_forward.11} parent=5 // pred_region
      %s357 = ssub.s32 %s7, 2
      // Predicated region
      $region33: #{encoder_forward.11} parent=31 // pred_check
        %p358 = pneg %p62
      $region34: #{encoder_forward.11} parent=31 // pred_check_branch
        %360 = sbr.rel (%p358) target = $region36
      $region35: #{encoder_forward.11} parent=31 // pred_region
        %p361 = scmp.lt.s32.totalorder %s13, 1
        %s362 = scalar_select %p361, %s13, 1
        %s363 = smul.addr %s362, 4
        %s364 = scalar_lea.vmem %s1, %s363
      $region36: #{encoder_forward.11} parent=31 // pred_fallthru
        _
    $region32: #{encoder_forward.11} parent=5 // pred_fallthru
      _
  $region6: #{encoder_forward.11} parent=0 // loop_footer
    %s11 = sadd.s32 1, %s7
  $region7: #{encoder_forward.11} parent=0 // loop_footer_branch
    %6 = sbr.rel target = $region3
  $region8: #{encoder_forward.11} parent=0 // loop_exit
    _

// kernel: encoder_forward.12
$region0: #{encoder_forward.12}
  #allocation0 [shape = 'u32[]', space=smem, size = 0x4, offset = 0x4, fixed_abs, tag = 'smem constant byte address 0x4 - core index']
  #allocation1 [shape = 'u32[144,128]{1,0:T(1,128)}', space=vmem, size = 0x12000, scoped, tag = 'internal scratch']
  %s0 = inlined_call_operand.vmem [shape: bf16[16,32], index: 0, kind: input, shape index: {}]
  %s1 = inlined_call_operand.vmem [shape: f32[16,32], index: 1, kind: input, shape index: {}]
  %s2 = inlined_call_operand.vmem [shape: bf16[32,32], index: 2, kind: input, shape index: {}]
  %s3 = inlined_call_operand.vmem [shape: f32[1,32], index: 3, kind: input, shape index: {}]
  %s4 = inlined_call_operand.vmem [shape: f32[1,32], index: 4, kind: input, shape index: {}]
  %s5 = inlined_call_operand.vmem [shape: f32[1,32], index: 5, kind: input, shape index: {}]
  %s6 = inlined_call_operand.vmem [shape: f32[16,32], index: 6, kind: output, shape index: {}]
  %s7 = sld [smem:[#allocation0]]
  $region57: #{encoder_forward.12} parent=0
    _
  %s9 = ssub.s32 1, %s7
  %s10 = scalar_select 0, %s9, %s7
  loop: start=0, step=1, limit=4
  $region2: #{encoder_forward.12} parent=0 // loop_pre_header
    _
  $region3: #{encoder_forward.12} parent=0 // loop_header
    %s12 = sphi 0, %s16
    %p13 = scmp.ge.s32.totalorder %s12, 4
    %s22 = sphi 0, %s24
    %s25 = sphi 0, %s22
    %s26 = sphi 0, %s25
    %s42 = sphi 0, %s26
    %s48 = sphi 0, %s50
    %s51 = sphi 0, %s48
    %s52 = sphi 0, %s51
    %s68 = sphi 0, %s52
    %s72 = sphi 0, %s72
    %s74 = sphi 0, %s72
    %s75 = sphi 0, %s74
    %s89 = sphi 0, %s75
    %s93 = sphi 0, %s93
    %s95 = sphi 0, %s93
    %s96 = sphi 0, %s95
    %s110 = sphi 0, %s96
    %s114 = sphi 0, %s114
    %s116 = sphi 0, %s114
    %s117 = sphi 0, %s116
    %s131 = sphi 0, %s117
    %s135 = sphi 0, %s135
    %s137 = sphi 0, %s135
    %s138 = sphi 0, %s137
    %s152 = sphi 0, %s138
    %s158 = sphi 0, %s160
    %s161 = sphi 0, %s158
    %s162 = sphi 0, %s161
    %s178 = sphi 0, %s162
  $region4: #{encoder_forward.12} parent=0 // loop_header_branch
    %15 = sbr.rel (%p13) target = $region8
  $region5: #{encoder_forward.12} parent=0 // loop_body
    %s17 = ssub.s32 %s12, 1
    %s18 = ssub.s32 %s12, 2
    %s19 = sadd.s32 %s12, 1
    %s20 = ssub.s32 %s12, %s19
    %p21 = scmp.eq.s32.totalorder %s20, 0
    %s23 = sadd.s32 %s22, 1
    %s24 = scalar_select %p21, %s22, %s23
    %p27 = pneg %p21
    %p28 = scmp.eq.s32.totalorder %s12, 1
    %p29 = por %p27, %p28
    %p30 = scmp.ne.s32.totalorder %s22, %s25
    %p31 = scmp.eq.s32.totalorder %s12, 0
    %p32 = por %p30, %p31
    %p33 = scmp.ne.s32.totalorder %s22, %s25
    %p34 = scmp.eq.s32.totalorder %s17, 1
    %p35 = por %p33, %p34
    %p36 = scmp.ne.s32.totalorder %s25, %s26
    %p37 = scmp.eq.s32.totalorder %s17, 0
    %p38 = por %p36, %p37
    %p39 = scmp.ne.s32.totalorder %s25, %s26
    %p40 = scmp.eq.s32.totalorder %s18, 1
    %p41 = por %p39, %p40
    %p43 = scmp.ne.s32.totalorder %s26, %s42
    %p44 = scmp.eq.s32.totalorder %s18, 0
    %p45 = por %p43, %p44
    %s46 = ssub.s32 %s12, %s19
    %p47 = scmp.eq.s32.totalorder %s46, 0
    %s49 = sadd.s32 %s48, 1
    %s50 = scalar_select %p47, %s48, %s49
    %p53 = pneg %p47
    %p54 = scmp.eq.s32.totalorder %s12, 1
    %p55 = por %p53, %p54
    %p56 = scmp.ne.s32.totalorder %s48, %s51
    %p57 = scmp.eq.s32.totalorder %s12, 0
    %p58 = por %p56, %p57
    %p59 = scmp.ne.s32.totalorder %s48, %s51
    %p60 = scmp.eq.s32.totalorder %s17, 1
    %p61 = por %p59, %p60
    %p62 = scmp.ne.s32.totalorder %s51, %s52
    %p63 = scmp.eq.s32.totalorder %s17, 0
    %p64 = por %p62, %p63
    %p65 = scmp.ne.s32.totalorder %s51, %s52
    %p66 = scmp.eq.s32.totalorder %s18, 1
    %p67 = por %p65, %p66
    %p69 = scmp.ne.s32.totalorder %s52, %s68
    %p70 = scmp.eq.s32.totalorder %s18, 0
    %p71 = por %p69, %p70
    %s73 = sadd.s32 %s72, 1
    %p76 = scmp.eq.s32.totalorder %s12, 1
    %p77 = scmp.ne.s32.totalorder %s72, %s74
    %p78 = scmp.eq.s32.totalorder %s12, 0
    %p79 = por %p77, %p78
    %p80 = scmp.ne.s32.totalorder %s72, %s74
    %p81 = scmp.eq.s32.totalorder %s17, 1
    %p82 = por %p80, %p81
    %p83 = scmp.ne.s32.totalorder %s74, %s75
    %p84 = scmp.eq.s32.totalorder %s17, 0
    %p85 = por %p83, %p84
    %p86 = scmp.ne.s32.totalorder %s74, %s75
    %p87 = scmp.eq.s32.totalorder %s18, 1
    %p88 = por %p86, %p87
    %p90 = scmp.ne.s32.totalorder %s75, %s89
    %p91 = scmp.eq.s32.totalorder %s18, 0
    %p92 = por %p90, %p91
    %s94 = sadd.s32 %s93, 1
    %p97 = scmp.eq.s32.totalorder %s12, 1
    %p98 = scmp.ne.s32.totalorder %s93, %s95
    %p99 = scmp.eq.s32.totalorder %s12, 0
    %p100 = por %p98, %p99
    %p101 = scmp.ne.s32.totalorder %s93, %s95
    %p102 = scmp.eq.s32.totalorder %s17, 1
    %p103 = por %p101, %p102
    %p104 = scmp.ne.s32.totalorder %s95, %s96
    %p105 = scmp.eq.s32.totalorder %s17, 0
    %p106 = por %p104, %p105
    %p107 = scmp.ne.s32.totalorder %s95, %s96
    %p108 = scmp.eq.s32.totalorder %s18, 1
    %p109 = por %p107, %p108
    %p111 = scmp.ne.s32.totalorder %s96, %s110
    %p112 = scmp.eq.s32.totalorder %s18, 0
    %p113 = por %p111, %p112
    %s115 = sadd.s32 %s114, 1
    %p118 = scmp.eq.s32.totalorder %s12, 1
    %p119 = scmp.ne.s32.totalorder %s114, %s116
    %p120 = scmp.eq.s32.totalorder %s12, 0
    %p121 = por %p119, %p120
    %p122 = scmp.ne.s32.totalorder %s114, %s116
    %p123 = scmp.eq.s32.totalorder %s17, 1
    %p124 = por %p122, %p123
    %p125 = scmp.ne.s32.totalorder %s116, %s117
    %p126 = scmp.eq.s32.totalorder %s17, 0
    %p127 = por %p125, %p126
    %p128 = scmp.ne.s32.totalorder %s116, %s117
    %p129 = scmp.eq.s32.totalorder %s18, 1
    %p130 = por %p128, %p129
    %p132 = scmp.ne.s32.totalorder %s117, %s131
    %p133 = scmp.eq.s32.totalorder %s18, 0
    %p134 = por %p132, %p133
    %s136 = sadd.s32 %s135, 1
    %p139 = scmp.eq.s32.totalorder %s12, 1
    %p140 = scmp.ne.s32.totalorder %s135, %s137
    %p141 = scmp.eq.s32.totalorder %s12, 0
    %p142 = por %p140, %p141
    %p143 = scmp.ne.s32.totalorder %s135, %s137
    %p144 = scmp.eq.s32.totalorder %s17, 1
    %p145 = por %p143, %p144
    %p146 = scmp.ne.s32.totalorder %s137, %s138
    %p147 = scmp.eq.s32.totalorder %s17, 0
    %p148 = por %p146, %p147
    %p149 = scmp.ne.s32.totalorder %s137, %s138
    %p150 = scmp.eq.s32.totalorder %s18, 1
    %p151 = por %p149, %p150
    %p153 = scmp.ne.s32.totalorder %s138, %s152
    %p154 = scmp.eq.s32.totalorder %s18, 0
    %p155 = por %p153, %p154
    %s156 = ssub.s32 %s12, %s19
    %p157 = scmp.eq.s32.totalorder %s156, 0
    %s159 = sadd.s32 %s158, 1
    %s160 = scalar_select %p157, %s158, %s159
    %p163 = pneg %p157
    %p164 = scmp.eq.s32.totalorder %s12, 1
    %p165 = por %p163, %p164
    %p166 = scmp.ne.s32.totalorder %s158, %s161
    %p167 = scmp.eq.s32.totalorder %s12, 0
    %p168 = por %p166, %p167
    %p169 = scmp.ne.s32.totalorder %s158, %s161
    %p170 = scmp.eq.s32.totalorder %s17, 1
    %p171 = por %p169, %p170
    %p172 = scmp.ne.s32.totalorder %s161, %s162
    %p173 = scmp.eq.s32.totalorder %s17, 0
    %p174 = por %p172, %p173
    %p175 = scmp.ne.s32.totalorder %s161, %s162
    %p176 = scmp.eq.s32.totalorder %s18, 1
    %p177 = por %p175, %p176
    %p179 = scmp.ne.s32.totalorder %s162, %s178
    %p180 = scmp.eq.s32.totalorder %s18, 0
    %p181 = por %p179, %p180
    %p182 = scmp.le.s32.totalorder 1, %s12
    %p183 = scmp.lt.s32.totalorder %s12, 3
    %p184 = pnand %p182, %p183
    %p185 = pneg %p184
    // Predicated region
    $region9: #{encoder_forward.12} parent=5 // pred_check
      _
    $region10: #{encoder_forward.12} parent=5 // pred_check_branch
      %187 = sbr.rel (%p184) target = $region12
    $region11: #{encoder_forward.12} parent=5 // pred_region
      %s188 = ssub.s32 %s12, 1
      // Predicated region
      $region13: #{encoder_forward.12} parent=11 // pred_check
        %p189 = pneg %p85
      $region14: #{encoder_forward.12} parent=11 // pred_check_branch
        %191 = sbr.rel (%p189) target = $region16
      $region15: #{encoder_forward.12} parent=11 // pred_region
        _
      $region16: #{encoder_forward.12} parent=11 // pred_fallthru
        _
      // Predicated region
      $region17: #{encoder_forward.12} parent=11 // pred_check
        %p192 = pneg %p106
      $region18: #{encoder_forward.12} parent=11 // pred_check_branch
        %194 = sbr.rel (%p192) target = $region20
      $region19: #{encoder_forward.12} parent=11 // pred_region
        _
      $region20: #{encoder_forward.12} parent=11 // pred_fallthru
        _
      // Predicated region
      $region21: #{encoder_forward.12} parent=11 // pred_check
        %p195 = pneg %p127
      $region22: #{encoder_forward.12} parent=11 // pred_check_branch
        %197 = sbr.rel (%p195) target = $region24
      $region23: #{encoder_forward.12} parent=11 // pred_region
        _
      $region24: #{encoder_forward.12} parent=11 // pred_fallthru
        _
      // Predicated region
      $region25: #{encoder_forward.12} parent=11 // pred_check
        %p198 = pneg %p148
      $region26: #{encoder_forward.12} parent=11 // pred_check_branch
        %200 = sbr.rel (%p198) target = $region28
      $region27: #{encoder_forward.12} parent=11 // pred_region
        _
      $region28: #{encoder_forward.12} parent=11 // pred_fallthru
        _
    $region12: #{encoder_forward.12} parent=5 // pred_fallthru
      _
    %p201 = scmp.lt.s32.totalorder %s12, 2
    // Predicated region
    $region29: #{encoder_forward.12} parent=5 // pred_check
      %p202 = pneg %p201
    $region30: #{encoder_forward.12} parent=5 // pred_check_branch
      %204 = sbr.rel (%p202) target = $region32
    $region31: #{encoder_forward.12} parent=5 // pred_region
      // Predicated region
      $region33: #{encoder_forward.12} parent=31 // pred_check
        %p205 = pneg %p32
      $region34: #{encoder_forward.12} parent=31 // pred_check_branch
        %207 = sbr.rel (%p205) target = $region36
      $region35: #{encoder_forward.12} parent=31 // pred_region
        %p208 = scmp.lt.s32.totalorder %s12, 1
        %s209 = scalar_select %p208, %s12, 1
        %s210 = smul.addr %s209, 4
        %s211 = scalar_lea.vmem %s0, %s210
      $region36: #{encoder_forward.12} parent=31 // pred_fallthru
        _
      // Predicated region
      $region37: #{encoder_forward.12} parent=31 // pred_check
        %p212 = pneg %p58
      $region38: #{encoder_forward.12} parent=31 // pred_check_branch
        %214 = sbr.rel (%p212) target = $region40
      $region39: #{encoder_forward.12} parent=31 // pred_region
        %p215 = scmp.lt.s32.totalorder %s12, 1
        %s216 = scalar_select %p215, %s12, 1
        %s217 = smul.addr %s216, 8
        %s218 = scalar_lea.vmem %s1, %s217
      $region40: #{encoder_forward.12} parent=31 // pred_fallthru
        _
    $region32: #{encoder_forward.12} parent=5 // pred_fallthru
      _
    %p219 = scmp.le.s32.totalorder 1, %s12
    %p220 = scmp.lt.s32.totalorder %s12, 3
    %p221 = pnand %p219, %p220
    %p222 = pneg %p221
    // Predicated region
    $region41: #{encoder_forward.12} parent=5 // pred_check
      _
    $region42: #{encoder_forward.12} parent=5 // pred_check_branch
      %224 = sbr.rel (%p221) target = $region44
    $region43: #{encoder_forward.12} parent=5 // pred_region
      %s225 = ssub.s32 %s12, 1
      %p226 = scmp.lt.s32.totalorder %s17, 1
      %s227 = scalar_select %p226, %s17, 1
      %s228 = smul.addr %s227, 4
      %s229 = scalar_lea.vmem %s0, %s228
      %p230 = pneg %p38
      %p231 = pneg %p35
      %p232 = scmp.lt.s32.totalorder %s17, 1
      %s233 = scalar_select %p232, %s17, 1
      %s234 = smul.addr %s233, 8
      %s235 = scalar_lea.vmem %s1, %s234
      %p236 = pneg %p64
      %p237 = pneg %p61
      %p238 = pneg %p85
      %p239 = pneg %p82
      %p240 = pneg %p106
      %p241 = pneg %p103
      %p242 = pneg %p127
      %p243 = pneg %p124
      %p244 = pneg %p148
      %p245 = pneg %p145
      %p246 = pneg %p174
      %p247 = pneg %p171
      %p248 = scmp.lt.s32.totalorder %s17, 1
      %s249 = scalar_select %p248, %s17, 1
      %s250 = smul.addr %s249, 8
      %s251 = scalar_lea.vmem %s6, %s250
      %p252 = scmp.lt.s32.totalorder %s17, 1
      %s253 = scalar_select %p252, %s17, 1
      %s254 = smul.addr %s253, 4
      %s255 = scalar_lea.vmem %s0, %s254
      %p256 = scmp.lt.s32.totalorder %s17, 1
      %s257 = scalar_select %p256, %s17, 1
      %s258 = smul.addr %s257, 8
      %s259 = scalar_lea.vmem %s1, %s258
      %p260 = scmp.lt.s32.totalorder %s17, 1
      %s261 = scalar_select %p260, %s17, 1
      %s262 = smul.addr %s261, 8
      %s263 = scalar_lea.vmem %s6, %s262
      %v265 = vld [vmem:[%s255] sm:$0xf]
      %v266 = vld [vmem:[%s2] sm:$0xf]
      %v267 = vld [vmem:[%s2 + $0x4] sm:$0xf]
      %v268 = vld [vmem:[%s2 + $0x8] sm:$0xf]
      %v269 = vld [vmem:[%s2 + $0xc] sm:$0xf]
      %v270 = vld [vmem:[%s3] sm:$0x1]
      %v272 = vlaneseq
      %v273 = vshrl.u32 %v272, 7
      %v274 = vsub.s32 0, %v273
      %v275 = vrot.slane %v270, %v274
      %v281 = vunpack.c.l.b16 %v266
      %v282 = vunpack.c.l.b16 %v267
      %v283 = vunpack.c.l.b16 %v268
      %v284 = vunpack.c.l.b16 %v269
      %v285 = vpack.c.b16 %v282, %v281
      %v286 = vpack.c.b16 %v284, %v283
      %vm289 = vcmask 261120
      %v291 = vsel %vm289, %v265, 0
      %293 = vmatprep.subr.bf16.mxu0 0
      %294 = vmatpush1.bf16.msra.mxu0 0
      %295 = vmatprep.subr.bf16.mxu0 0
      %296 = vmatpush1.bf16.msra.mxu0 0
      %297 = vmatprep.subr.bf16.mxu0 0
      %298 = vmatpush1.bf16.msra.mxu0 0
      %299 = vmatprep.subr.bf16.mxu0 0
      %300 = vmatpush1.bf16.msra.mxu0 0
      %301 = vmatprep.subr.bf16.mxu0 0
      %302 = vmatpush1.bf16.msra.mxu0 0
      %303 = vmatprep.subr.bf16.mxu0 0
      %304 = vmatpush1.bf16.msra.mxu0 0
      %305 = vmatprep.subr.bf16.mxu0 0
      %306 = vmatpush1.bf16.msra.mxu0 %v286
      %307 = vmatprep.subr.bf16.mxu0 0
      %308 = vmatpush1.bf16.msra.mxu0 %v285
      %309 = vmatprep.subr.bf16.mxu0 0
      %310 = vmatpush2.bf16.msra.mxu0 0
      %311 = vmatprep.subr.bf16.mxu0 0
      %312 = vmatpush2.bf16.msra.mxu0 0
      %313 = vmatprep.subr.bf16.mxu0 0
      %314 = vmatpush2.bf16.msra.mxu0 0
      %315 = vmatprep.subr.bf16.mxu0 0
      %316 = vmatpush2.bf16.msra.mxu0 0
      %317 = vmatprep.subr.bf16.mxu0 0
      %318 = vmatpush2.bf16.msra.mxu0 0
      %319 = vmatprep.subr.bf16.mxu0 0
      %320 = vmatpush2.bf16.msra.mxu0 0
      %321 = vmatprep.subr.bf16.mxu0 0
      %322 = vmatpush2.bf16.msra.mxu0 0
      %323 = vmatprep.subr.bf16.mxu0 0
      %324 = vmatpush2.bf16.msra.mxu0 0
      %325 = vmatprep.mubr.bf16.mxu0 0
      %326 = vmatmul.mubr.bf16.gmra.mxu0 %v291
      %v327 = vpop.f32.mrf.mxu0
      %v328 = vadd.f32 %v275, %v327
      %v329 = vpop.f32.mrf.mxu0
      %v330 = vpop.f32.mrf.mxu0
      %v331 = vpop.f32.mrf.mxu0
      %332 = vdwg.mxu0
      %v333 = vld [vmem:[%s259] sm:$0xff]
      %v334 = vadd.f32 %v333, %v328
      %v335 = vld [vmem:[%s4] sm:$0x1]
      %v336 = vld [vmem:[%s5] sm:$0x1]
      %v337 = vsel %vm289, %v334, 0.0
      %338 = vadd.xlane.f32.xlu0 %v337
      %v339 = vpop.xlane.xlu0 %338
      %v340 = vrcp.pop 32.0
      %v341 = vmul.f32 %v339, %v340
      %v342 = vsub.f32 %v334, %v341
      %v343 = vmul.f32 %v342, %v342
      %v344 = vsel %vm289, %v343, 0.0
      %345 = vadd.xlane.f32.xlu0 %v344
      %v346 = vpop.xlane.xlu0 %345
      %v347 = vmul.f32 %v346, %v340
      %v348 = vadd.f32 %v347, 1e-06
      %v349 = vrsqrt.pop %v348
      %v350 = vmul.f32 %v342, %v349
      %v352 = vlaneseq
      %v353 = vshrl.u32 %v352, 7
      %v354 = vsub.s32 0, %v353
      %v355 = vrot.slane %v335, %v354
      %v357 = vmul.f32 %v350, %v355
      %v359 = vlaneseq
      %v360 = vshrl.u32 %v359, 7
      %v361 = vsub.s32 0, %v360
      %v362 = vrot.slane %v336, %v361
      %v364 = vadd.f32 %v357, %v362
      %365 = vst.msk [vmem:[%s263] sm:$0xff] %vm289, %v364
      %p366 = scmp.lt.s32.totalorder %s17, 1
      %s367 = scalar_select %p366, %s17, 1
      %s368 = smul.addr %s367, 8
      %s369 = scalar_lea.vmem %s6, %s368
      // Predicated region
      $region45: #{encoder_forward.12} parent=43 // pred_check
        %p370 = pneg %p171
      $region46: #{encoder_forward.12} parent=43 // pred_check_branch
        %372 = sbr.rel (%p370) target = $region48
      $region47: #{encoder_forward.12} parent=43 // pred_region
        _
      $region48: #{encoder_forward.12} parent=43 // pred_fallthru
        _
    $region44: #{encoder_forward.12} parent=5 // pred_fallthru
      _
    %p373 = scmp.le.s32.totalorder 2, %s12
    // Predicated region
    $region49: #{encoder_forward.12} parent=5 // pred_check
      %p374 = pneg %p373
    $region50: #{encoder_forward.12} parent=5 // pred_check_branch
      %376 = sbr.rel (%p374) target = $region52
    $region51: #{encoder_forward.12} parent=5 // pred_region
      %s377 = ssub.s32 %s12, 2
      // Predicated region
      $region53: #{encoder_forward.12} parent=51 // pred_check
        %p378 = pneg %p177
      $region54: #{encoder_forward.12} parent=51 // pred_check_branch
        %380 = sbr.rel (%p378) target = $region56
      $region55: #{encoder_forward.12} parent=51 // pred_region
        %p381 = scmp.lt.s32.totalorder %s18, 1
        %s382 = scalar_select %p381, %s18, 1
        %s383 = smul.addr %s382, 8
        %s384 = scalar_lea.vmem %s6, %s383
      $region56: #{encoder_forward.12} parent=51 // pred_fallthru
        _
    $region52: #{encoder_forward.12} parent=5 // pred_fallthru
      _
  $region6: #{encoder_forward.12} parent=0 // loop_footer
    %s16 = sadd.s32 1, %s12
  $region7: #{encoder_forward.12} parent=0 // loop_footer_branch
    %11 = sbr.rel target = $region3
  $region8: #{encoder_forward.12} parent=0 // loop_exit
    _

// kernel: encoder_forward.13
$region0: #{encoder_forward.13}
  #allocation0 [shape = 'u32[]', space=smem, size = 0x4, offset = 0x4, fixed_abs, tag = 'smem constant byte address 0x4 - core index']
  #allocation1 [shape = 'u32[144,128]{1,0:T(1,128)}', space=vmem, size = 0x12000, scoped, tag = 'internal scratch']
  #allocation2 [shape = 'f32[8,32]{1,0:T(8,128)}', space=vmem, size = 0x1000, scoped, tag = 'scratch operand']
  %s0 = inlined_call_operand.vmem [shape: f32[16,32], index: 0, kind: input, shape index: {}]
  %s1 = inlined_call_operand.vmem [shape: bf16[32,64], index: 1, kind: input, shape index: {}]
  %s2 = inlined_call_operand.vmem [shape: f32[1,64], index: 2, kind: input, shape index: {}]
  %s3 = inlined_call_operand.vmem [shape: bf16[64,32], index: 3, kind: input, shape index: {}]
  %s4 = inlined_call_operand.vmem [shape: f32[1,32], index: 4, kind: input, shape index: {}]
  %s5 = inlined_call_operand.vmem [shape: f32[1,32], index: 5, kind: input, shape index: {}]
  %s6 = inlined_call_operand.vmem [shape: f32[1,32], index: 6, kind: input, shape index: {}]
  %s7 = inlined_call_operand.vmem [shape: f32[16,32], index: 7, kind: output, shape index: {}]
  %s8 = sld [smem:[#allocation0]]
  $region69: #{encoder_forward.13} parent=0
    _
  %s10 = ssub.s32 1, %s8
  %s11 = scalar_select 0, %s10, %s8
  loop: start=0, step=1, limit=4
  $region2: #{encoder_forward.13} parent=0 // loop_pre_header
    _
  $region3: #{encoder_forward.13} parent=0 // loop_header
    %s13 = sphi 0, %s17
    %p14 = scmp.ge.s32.totalorder %s13, 4
    %s20 = sphi 0, %s32
    %s21 = sphi 0, %s28
    %s22 = sphi 0, %s20
    %s23 = sphi 0, %s21
    %s24 = sphi 0, %s22
    %s25 = sphi 0, %s23
    %s35 = sphi 0, %s37
    %s38 = sphi 0, %s35
    %s39 = sphi 0, %s38
    %s55 = sphi 0, %s39
    %s61 = sphi 0, %s63
    %s64 = sphi 0, %s61
    %s65 = sphi 0, %s64
    %s81 = sphi 0, %s65
    %s87 = sphi 0, %s89
    %s90 = sphi 0, %s87
    %s91 = sphi 0, %s90
    %s107 = sphi 0, %s91
    %s113 = sphi 0, %s115
    %s116 = sphi 0, %s113
    %s117 = sphi 0, %s116
    %s133 = sphi 0, %s117
    %s137 = sphi 0, %s137
    %s139 = sphi 0, %s137
    %s140 = sphi 0, %s139
    %s154 = sphi 0, %s140
    %s158 = sphi 0, %s158
    %s160 = sphi 0, %s158
    %s161 = sphi 0, %s160
    %s175 = sphi 0, %s161
    %s179 = sphi 0, %s179
    %s181 = sphi 0, %s179
    %s182 = sphi 0, %s181
    %s196 = sphi 0, %s182
    %s202 = sphi 0, %s204
    %s205 = sphi 0, %s202
    %s206 = sphi 0, %s205
    %s222 = sphi 0, %s206
  $region4: #{encoder_forward.13} parent=0 // loop_header_branch
    %16 = sbr.rel (%p14) target = $region8
  $region5: #{encoder_forward.13} parent=0 // loop_body
    %s18 = ssub.s32 %s13, 1
    %s19 = ssub.s32 %s13, 2
    %s26 = sadd.s32 1, %s21
    %p27 = scmp.ge.s32.totalorder %s26, 1
    %s28 = scalar_select %p27, 0, %s26
    %s29 = sadd.s32 1, %s20
    %s30 = scalar_select %p27, %s29, %s20
    %p31 = scmp.ge.s32.totalorder %s30, 2
    %s32 = scalar_select %p31, 0, %s30
    %s33 = ssub.s32 %s20, %s32
    %p34 = scmp.eq.s32.totalorder %s33, 0
    %s36 = sadd.s32 %s35, 1
    %s37 = scalar_select %p34, %s35, %s36
    %p40 = pneg %p34
    %p41 = scmp.eq.s32.totalorder %s13, 1
    %p42 = por %p40, %p41
    %p43 = scmp.ne.s32.totalorder %s35, %s38
    %p44 = scmp.eq.s32.totalorder %s13, 0
    %p45 = por %p43, %p44
    %p46 = scmp.ne.s32.totalorder %s35, %s38
    %p47 = scmp.eq.s32.totalorder %s18, 1
    %p48 = por %p46, %p47
    %p49 = scmp.ne.s32.totalorder %s38, %s39
    %p50 = scmp.eq.s32.totalorder %s18, 0
    %p51 = por %p49, %p50
    %p52 = scmp.ne.s32.totalorder %s38, %s39
    %p53 = scmp.eq.s32.totalorder %s19, 1
    %p54 = por %p52, %p53
    %p56 = scmp.ne.s32.totalorder %s39, %s55
    %p57 = scmp.eq.s32.totalorder %s19, 0
    %p58 = por %p56, %p57
    %s59 = ssub.s32 %s21, %s28
    %p60 = scmp.eq.s32.totalorder %s59, 0
    %s62 = sadd.s32 %s61, 1
    %s63 = scalar_select %p60, %s61, %s62
    %p66 = pneg %p60
    %p67 = scmp.eq.s32.totalorder %s13, 1
    %p68 = por %p66, %p67
    %p69 = scmp.ne.s32.totalorder %s61, %s64
    %p70 = scmp.eq.s32.totalorder %s13, 0
    %p71 = por %p69, %p70
    %p72 = scmp.ne.s32.totalorder %s61, %s64
    %p73 = scmp.eq.s32.totalorder %s18, 1
    %p74 = por %p72, %p73
    %p75 = scmp.ne.s32.totalorder %s64, %s65
    %p76 = scmp.eq.s32.totalorder %s18, 0
    %p77 = por %p75, %p76
    %p78 = scmp.ne.s32.totalorder %s64, %s65
    %p79 = scmp.eq.s32.totalorder %s19, 1
    %p80 = por %p78, %p79
    %p82 = scmp.ne.s32.totalorder %s65, %s81
    %p83 = scmp.eq.s32.totalorder %s19, 0
    %p84 = por %p82, %p83
    %s85 = ssub.s32 %s21, %s28
    %p86 = scmp.eq.s32.totalorder %s85, 0
    %s88 = sadd.s32 %s87, 1
    %s89 = scalar_select %p86, %s87, %s88
    %p92 = pneg %p86
    %p93 = scmp.eq.s32.totalorder %s13, 1
    %p94 = por %p92, %p93
    %p95 = scmp.ne.s32.totalorder %s87, %s90
    %p96 = scmp.eq.s32.totalorder %s13, 0
    %p97 = por %p95, %p96
    %p98 = scmp.ne.s32.totalorder %s87, %s90
    %p99 = scmp.eq.s32.totalorder %s18, 1
    %p100 = por %p98, %p99
    %p101 = scmp.ne.s32.totalorder %s90, %s91
    %p102 = scmp.eq.s32.totalorder %s18, 0
    %p103 = por %p101, %p102
    %p104 = scmp.ne.s32.totalorder %s90, %s91
    %p105 = scmp.eq.s32.totalorder %s19, 1
    %p106 = por %p104, %p105
    %p108 = scmp.ne.s32.totalorder %s91, %s107
    %p109 = scmp.eq.s32.totalorder %s19, 0
    %p110 = por %p108, %p109
    %s111 = ssub.s32 %s21, %s28
    %p112 = scmp.eq.s32.totalorder %s111, 0
    %s114 = sadd.s32 %s113, 1
    %s115 = scalar_select %p112, %s113, %s114
    %p118 = pneg %p112
    %p119 = scmp.eq.s32.totalorder %s13, 1
    %p120 = por %p118, %p119
    %p121 = scmp.ne.s32.totalorder %s113, %s116
    %p122 = scmp.eq.s32.totalorder %s13, 0
    %p123 = por %p121, %p122
    %p124 = scmp.ne.s32.totalorder %s113, %s116
    %p125 = scmp.eq.s32.totalorder %s18, 1
    %p126 = por %p124, %p125
    %p127 = scmp.ne.s32.totalorder %s116, %s117
    %p128 = scmp.eq.s32.totalorder %s18, 0
    %p129 = por %p127, %p128
    %p130 = scmp.ne.s32.totalorder %s116, %s117
    %p131 = scmp.eq.s32.totalorder %s19, 1
    %p132 = por %p130, %p131
    %p134 = scmp.ne.s32.totalorder %s117, %s133
    %p135 = scmp.eq.s32.totalorder %s19, 0
    %p136 = por %p134, %p135
    %s138 = sadd.s32 %s137, 1
    %p141 = scmp.eq.s32.totalorder %s13, 1
    %p142 = scmp.ne.s32.totalorder %s137, %s139
    %p143 = scmp.eq.s32.totalorder %s13, 0
    %p144 = por %p142, %p143
    %p145 = scmp.ne.s32.totalorder %s137, %s139
    %p146 = scmp.eq.s32.totalorder %s18, 1
    %p147 = por %p145, %p146
    %p148 = scmp.ne.s32.totalorder %s139, %s140
    %p149 = scmp.eq.s32.totalorder %s18, 0
    %p150 = por %p148, %p149
    %p151 = scmp.ne.s32.totalorder %s139, %s140
    %p152 = scmp.eq.s32.totalorder %s19, 1
    %p153 = por %p151, %p152
    %p155 = scmp.ne.s32.totalorder %s140, %s154
    %p156 = scmp.eq.s32.totalorder %s19, 0
    %p157 = por %p155, %p156
    %s159 = sadd.s32 %s158, 1
    %p162 = scmp.eq.s32.totalorder %s13, 1
    %p163 = scmp.ne.s32.totalorder %s158, %s160
    %p164 = scmp.eq.s32.totalorder %s13, 0
    %p165 = por %p163, %p164
    %p166 = scmp.ne.s32.totalorder %s158, %s160
    %p167 = scmp.eq.s32.totalorder %s18, 1
    %p168 = por %p166, %p167
    %p169 = scmp.ne.s32.totalorder %s160, %s161
    %p170 = scmp.eq.s32.totalorder %s18, 0
    %p171 = por %p169, %p170
    %p172 = scmp.ne.s32.totalorder %s160, %s161
    %p173 = scmp.eq.s32.totalorder %s19, 1
    %p174 = por %p172, %p173
    %p176 = scmp.ne.s32.totalorder %s161, %s175
    %p177 = scmp.eq.s32.totalorder %s19, 0
    %p178 = por %p176, %p177
    %s180 = sadd.s32 %s179, 1
    %p183 = scmp.eq.s32.totalorder %s13, 1
    %p184 = scmp.ne.s32.totalorder %s179, %s181
    %p185 = scmp.eq.s32.totalorder %s13, 0
    %p186 = por %p184, %p185
    %p187 = scmp.ne.s32.totalorder %s179, %s181
    %p188 = scmp.eq.s32.totalorder %s18, 1
    %p189 = por %p187, %p188
    %p190 = scmp.ne.s32.totalorder %s181, %s182
    %p191 = scmp.eq.s32.totalorder %s18, 0
    %p192 = por %p190, %p191
    %p193 = scmp.ne.s32.totalorder %s181, %s182
    %p194 = scmp.eq.s32.totalorder %s19, 1
    %p195 = por %p193, %p194
    %p197 = scmp.ne.s32.totalorder %s182, %s196
    %p198 = scmp.eq.s32.totalorder %s19, 0
    %p199 = por %p197, %p198
    %s200 = ssub.s32 %s20, %s32
    %p201 = scmp.eq.s32.totalorder %s200, 0
    %s203 = sadd.s32 %s202, 1
    %s204 = scalar_select %p201, %s202, %s203
    %p207 = pneg %p201
    %p208 = scmp.eq.s32.totalorder %s13, 1
    %p209 = por %p207, %p208
    %p210 = scmp.ne.s32.totalorder %s202, %s205
    %p211 = scmp.eq.s32.totalorder %s13, 0
    %p212 = por %p210, %p211
    %p213 = scmp.ne.s32.totalorder %s202, %s205
    %p214 = scmp.eq.s32.totalorder %s18, 1
    %p215 = por %p213, %p214
    %p216 = scmp.ne.s32.totalorder %s205, %s206
    %p217 = scmp.eq.s32.totalorder %s18, 0
    %p218 = por %p216, %p217
    %p219 = scmp.ne.s32.totalorder %s205, %s206
    %p220 = scmp.eq.s32.totalorder %s19, 1
    %p221 = por %p219, %p220
    %p223 = scmp.ne.s32.totalorder %s206, %s222
    %p224 = scmp.eq.s32.totalorder %s19, 0
    %p225 = por %p223, %p224
    %p226 = scmp.le.s32.totalorder 1, %s13
    %p227 = scmp.lt.s32.totalorder %s13, 3
    %p228 = pnand %p226, %p227
    %p229 = pneg %p228
    // Predicated region
    $region9: #{encoder_forward.13} parent=5 // pred_check
      _
    $region10: #{encoder_forward.13} parent=5 // pred_check_branch
      %231 = sbr.rel (%p228) target = $region12
    $region11: #{encoder_forward.13} parent=5 // pred_region
      %s232 = ssub.s32 %s13, 1
      // Predicated region
      $region13: #{encoder_forward.13} parent=11 // pred_check
        %p233 = pneg %p77
      $region14: #{encoder_forward.13} parent=11 // pred_check_branch
        %235 = sbr.rel (%p233) target = $region16
      $region15: #{encoder_forward.13} parent=11 // pred_region
        %p236 = scmp.lt.s32.totalorder %s23, 0
        %s237 = scalar_select %p236, %s23, 0
        %s238 = smul.addr %s237, 4
        %s239 = scalar_lea.vmem %s1, %s238
      $region16: #{encoder_forward.13} parent=11 // pred_fallthru
        _
      // Predicated region
      $region17: #{encoder_forward.13} parent=11 // pred_check
        %p240 = pneg %p103
      $region18: #{encoder_forward.13} parent=11 // pred_check_branch
        %242 = sbr.rel (%p240) target = $region20
      $region19: #{encoder_forward.13} parent=11 // pred_region
        %p243 = scmp.lt.s32.totalorder %s23, 0
        %s244 = scalar_select %p243, %s23, 0
        %s245 = scalar_lea.vmem %s2, %s244
      $region20: #{encoder_forward.13} parent=11 // pred_fallthru
        _
      // Predicated region
      $region21: #{encoder_forward.13} parent=11 // pred_check
        %p246 = pneg %p129
      $region22: #{encoder_forward.13} parent=11 // pred_check_branch
        %248 = sbr.rel (%p246) target = $region24
      $region23: #{encoder_forward.13} parent=11 // pred_region
        %s249 = smul.u32 8, %s23
        %p250 = scmp.lt.s32.totalorder %s249, 7
        %s251 = scalar_select %p250, %s249, 7
        %s252 = smul.addr %s251, 4
        %s253 = scalar_lea.vmem %s3, %s252
        %s254 = smul.u32 8, %s23
      $region24: #{encoder_forward.13} parent=11 // pred_fallthru
        _
      // Predicated region
      $region25: #{encoder_forward.13} parent=11 // pred_check
        %p255 = pneg %p150
      $region26: #{encoder_forward.13} parent=11 // pred_check_branch
        %257 = sbr.rel (%p255) target = $region28
      $region27: #{encoder_forward.13} parent=11 // pred_region
        _
      $region28: #{encoder_forward.13} parent=11 // pred_fallthru
        _
      // Predicated region
      $region29: #{encoder_forward.13} parent=11 // pred_check
        %p258 = pneg %p171
      $region30: #{encoder_forward.13} parent=11 // pred_check_branch
        %260 = sbr.rel (%p258) target = $region32
      $region31: #{encoder_forward.13} parent=11 // pred_region
        _
      $region32: #{encoder_forward.13} parent=11 // pred_fallthru
        _
      // Predicated region
      $region33: #{encoder_forward.13} parent=11 // pred_check
        %p261 = pneg %p192
      $region34: #{encoder_forward.13} parent=11 // pred_check_branch
        %263 = sbr.rel (%p261) target = $region36
      $region35: #{encoder_forward.13} parent=11 // pred_region
        _
      $region36: #{encoder_forward.13} parent=11 // pred_fallthru
        _
    $region12: #{encoder_forward.13} parent=5 // pred_fallthru
      _
    %p264 = scmp.lt.s32.totalorder %s13, 2
    // Predicated region
    $region37: #{encoder_forward.13} parent=5 // pred_check
      %p265 = pneg %p264
    $region38: #{encoder_forward.13} parent=5 // pred_check_branch
      %267 = sbr.rel (%p265) target = $region40
    $region39: #{encoder_forward.13} parent=5 // pred_region
      // Predicated region
      $region41: #{encoder_forward.13} parent=39 // pred_check
        %p268 = pneg %p45
      $region42: #{encoder_forward.13} parent=39 // pred_check_branch
        %270 = sbr.rel (%p268) target = $region44
      $region43: #{encoder_forward.13} parent=39 // pred_region
        %p271 = scmp.lt.s32.totalorder %s20, 1
        %s272 = scalar_select %p271, %s20, 1
        %s273 = smul.addr %s272, 8
        %s274 = scalar_lea.vmem %s0, %s273
      $region44: #{encoder_forward.13} parent=39 // pred_fallthru
        _
    $region40: #{encoder_forward.13} parent=5 // pred_fallthru
      _
    %p275 = scmp.le.s32.totalorder 1, %s13
    %p276 = scmp.lt.s32.totalorder %s13, 3
    %p277 = pnand %p275, %p276
    %p278 = pneg %p277
    // Predicated region
    $region45: #{encoder_forward.13} parent=5 // pred_check
      _
    $region46: #{encoder_forward.13} parent=5 // pred_check_branch
      %280 = sbr.rel (%p277) target = $region48
    $region47: #{encoder_forward.13} parent=5 // pred_region
      %s281 = ssub.s32 %s13, 1
      %p282 = scmp.lt.s32.totalorder %s22, 1
      %s283 = scalar_select %p282, %s22, 1
      %s284 = smul.addr %s283, 8
      %s285 = scalar_lea.vmem %s0, %s284
      %p286 = pneg %p51
      %p287 = pneg %p48
      %p288 = scmp.lt.s32.totalorder %s23, 0
      %s289 = scalar_select %p288, %s23, 0
      %s290 = smul.addr %s289, 4
      %s291 = scalar_lea.vmem %s1, %s290
      %p292 = pneg %p77
      %p293 = pneg %p74
      %p294 = scmp.lt.s32.totalorder %s23, 0
      %s295 = scalar_select %p294, %s23, 0
      %s296 = scalar_lea.vmem %s2, %s295
      %p297 = pneg %p103
      %p298 = pneg %p100
      %s299 = smul.u32 8, %s23
      %p300 = scmp.lt.s32.totalorder %s299, 7
      %s301 = scalar_select %p300, %s299, 7
      %s302 = smul.addr %s301, 4
      %s303 = scalar_lea.vmem %s3, %s302
      %p304 = pneg %p129
      %p305 = pneg %p126
      %p306 = pneg %p150
      %p307 = pneg %p147
      %p308 = pneg %p171
      %p309 = pneg %p168
      %p310 = pneg %p192
      %p311 = pneg %p189
      %p312 = pneg %p218
      %p313 = pneg %p215
      %p314 = scmp.lt.s32.totalorder %s22, 1
      %s315 = scalar_select %p314, %s22, 1
      %s316 = smul.addr %s315, 8
      %s317 = scalar_lea.vmem %s7, %s316
      %p318 = scmp.lt.s32.totalorder %s22, 1
      %s319 = scalar_select %p318, %s22, 1
      %s320 = smul.addr %s319, 8
      %s321 = scalar_lea.vmem %s0, %s320
      %p322 = scmp.lt.s32.totalorder %s23, 0
      %s323 = scalar_select %p322, %s23, 0
      %s324 = smul.addr %s323, 4
      %s325 = scalar_lea.vmem %s1, %s324
      %p326 = scmp.lt.s32.totalorder %s23, 0
      %s327 = scalar_select %p326, %s23, 0
      %s328 = scalar_lea.vmem %s2, %s327
      %s329 = smul.u32 8, %s23
      %p330 = scmp.lt.s32.totalorder %s329, 7
      %s331 = scalar_select %p330, %s329, 7
      %s332 = smul.addr %s331, 4
      %s333 = scalar_lea.vmem %s3, %s332
      %s334 = smul.u32 8, %s23
      %p335 = scmp.lt.s32.totalorder %s22, 1
      %s336 = scalar_select %p335, %s22, 1
      %s337 = smul.addr %s336, 8
      %s338 = scalar_lea.vmem %s7, %s337
      %p340 = scmp.eq.s32.totalorder %s23, 0
      // Predicated region
      $region49: #{encoder_forward.13} parent=47 // pred_check
        %p341 = pneg %p340
      $region50: #{encoder_forward.13} parent=47 // pred_check_branch
        %343 = sbr.rel (%p341) target = $region52
      $region51: #{encoder_forward.13} parent=47 // pred_region
        %vm344 = vcmask 261120
        %345 = vst.msk [vmem:[#allocation2] sm:$0xff] %vm344, 0.0
      $region52: #{encoder_forward.13} parent=47 // pred_fallthru
        _
      %v346 = vld [vmem:[%s321] sm:$0xff]
      %v347 = vpack.c.bf16 %v346, %v346
      %v348 = vld [vmem:[%s325] sm:$0xf]
      %v349 = vld [vmem:[%s325 + $0x4] sm:$0xf]
      %v350 = vld [vmem:[%s325 + $0x8] sm:$0xf]
      %v351 = vld [vmem:[%s325 + $0xc] sm:$0xf]
      %v352 = vld [vmem:[%s328] sm:$0x1]
      %v354 = vlaneseq
      %v355 = vshrl.u32 %v354, 7
      %v356 = vsub.s32 0, %v355
      %v357 = vrot.slane %v352, %v356
      %v363 = vunpack.c.l.b16 %v348
      %v364 = vunpack.c.l.b16 %v349
      %v365 = vunpack.c.l.b16 %v350
      %v366 = vunpack.c.l.b16 %v351
      %v367 = vpack.c.b16 %v364, %v363
      %v368 = vpack.c.b16 %v366, %v365
      %vm371 = vcmask 261120
      %v373 = vsel %vm371, %v347, 0
      %375 = vmatprep.subr.bf16.mxu0 0
      %376 = vmatpush1.bf16.msra.mxu0 0
      %377 = vmatprep.subr.bf16.mxu0 0
      %378 = vmatpush1.bf16.msra.mxu0 0
      %379 = vmatprep.subr.bf16.mxu0 0
      %380 = vmatpush1.bf16.msra.mxu0 0
      %381 = vmatprep.subr.bf16.mxu0 0
      %382 = vmatpush1.bf16.msra.mxu0 0
      %383 = vmatprep.subr.bf16.mxu0 0
      %384 = vmatpush1.bf16.msra.mxu0 0
      %385 = vmatprep.subr.bf16.mxu0 0
      %386 = vmatpush1.bf16.msra.mxu0 0
      %387 = vmatprep.subr.bf16.mxu0 0
      %388 = vmatpush1.bf16.msra.mxu0 %v368
      %389 = vmatprep.subr.bf16.mxu0 0
      %390 = vmatpush1.bf16.msra.mxu0 %v367
      %391 = vmatprep.subr.bf16.mxu0 0
      %392 = vmatpush2.bf16.msra.mxu0 0
      %393 = vmatprep.subr.bf16.mxu0 0
      %394 = vmatpush2.bf16.msra.mxu0 0
      %395 = vmatprep.subr.bf16.mxu0 0
      %396 = vmatpush2.bf16.msra.mxu0 0
      %397 = vmatprep.subr.bf16.mxu0 0
      %398 = vmatpush2.bf16.msra.mxu0 0
      %399 = vmatprep.subr.bf16.mxu0 0
      %400 = vmatpush2.bf16.msra.mxu0 0
      %401 = vmatprep.subr.bf16.mxu0 0
      %402 = vmatpush2.bf16.msra.mxu0 0
      %403 = vmatprep.subr.bf16.mxu0 0
      %404 = vmatpush2.bf16.msra.mxu0 0
      %405 = vmatprep.subr.bf16.mxu0 0
      %406 = vmatpush2.bf16.msra.mxu0 0
      %407 = vmatprep.mubr.bf16.mxu0 0
      %408 = vmatmul.mubr.bf16.gmra.mxu0 %v373
      %v409 = vpop.f32.mrf.mxu0
      %v410 = vadd.f32 %v357, %v409
      %v411 = vpop.f32.mrf.mxu0
      %v412 = vpop.f32.mrf.mxu0
      %v413 = vpop.f32.mrf.mxu0
      %414 = vdwg.mxu0
      %v415 = vmax.f32 %v410, 0.0
      %v416 = vpack.c.bf16 %v415, %v415
      %v417 = vld [vmem:[#allocation2] sm:$0xff]
      %v418 = vld [vmem:[%s333] sm:$0xf]
      %v419 = vld [vmem:[%s333 + $0x4] sm:$0xf]
      %v420 = vld [vmem:[%s333 + $0x8] sm:$0xf]
      %v421 = vld [vmem:[%s333 + $0xc] sm:$0xf]
      %v422 = vld [vmem:[%s333 + $0x10] sm:$0xf]
      %v423 = vld [vmem:[%s333 + $0x14] sm:$0xf]
      %v424 = vld [vmem:[%s333 + $0x18] sm:$0xf]
      %v425 = vld [vmem:[%s333 + $0x1c] sm:$0xf]
      %v434 = vunpack.c.l.b16 %v418
      %v435 = vunpack.c.l.b16 %v419
      %v436 = vunpack.c.l.b16 %v420
      %v437 = vunpack.c.l.b16 %v421
      %v438 = vunpack.c.l.b16 %v422
      %v439 = vunpack.c.l.b16 %v423
      %v440 = vunpack.c.l.b16 %v424
      %v441 = vunpack.c.l.b16 %v425
      %v442 = vpack.c.b16 %v435, %v434
      %v443 = vpack.c.b16 %v437, %v436
      %v444 = vpack.c.b16 %v439, %v438
      %v445 = vpack.c.b16 %v441, %v440
      %vm450 = vcmask 523264
      %v452 = vsel %vm450, %v416, 0
      %454 = vmatprep.subr.bf16.mxu0 0
      %455 = vmatpush1.bf16.msra.mxu0 0
      %456 = vmatprep.subr.bf16.mxu0 0
      %457 = vmatpush1.bf16.msra.mxu0 0
      %458 = vmatprep.subr.bf16.mxu0 0
      %459 = vmatpush1.bf16.msra.mxu0 0
      %460 = vmatprep.subr.bf16.mxu0 0
      %461 = vmatpush1.bf16.msra.mxu0 0
      %462 = vmatprep.subr.bf16.mxu0 0
      %463 = vmatpush1.bf16.msra.mxu0 %v445
      %464 = vmatprep.subr.bf16.mxu0 0
      %465 = vmatpush1.bf16.msra.mxu0 %v444
      %466 = vmatprep.subr.bf16.mxu0 0
      %467 = vmatpush1.bf16.msra.mxu0 %v443
      %468 = vmatprep.subr.bf16.mxu0 0
      %469 = vmatpush1.bf16.msra.mxu0 %v442
      %470 = vmatprep.subr.bf16.mxu0 0
      %471 = vmatpush2.bf16.msra.mxu0 0
      %472 = vmatprep.subr.bf16.mxu0 0
      %473 = vmatpush2.bf16.msra.mxu0 0
      %474 = vmatprep.subr.bf16.mxu0 0
      %475 = vmatpush2.bf16.msra.mxu0 0
      %476 = vmatprep.subr.bf16.mxu0 0
      %477 = vmatpush2.bf16.msra.mxu0 0
      %478 = vmatprep.subr.bf16.mxu0 0
      %479 = vmatpush2.bf16.msra.mxu0 0
      %480 = vmatprep.subr.bf16.mxu0 0
      %481 = vmatpush2.bf16.msra.mxu0 0
      %482 = vmatprep.subr.bf16.mxu0 0
      %483 = vmatpush2.bf16.msra.mxu0 0
      %484 = vmatprep.subr.bf16.mxu0 0
      %485 = vmatpush2.bf16.msra.mxu0 0
      %486 = vmatprep.mubr.bf16.mxu0 0
      %487 = vmatmul.mubr.bf16.gmra.mxu0 %v452
      %v488 = vpop.f32.mrf.mxu0
      %v489 = vadd.f32 0.0, %v488
      %v490 = vpop.f32.mrf.mxu0
      %v491 = vpop.f32.mrf.mxu0
      %v492 = vpop.f32.mrf.mxu0
      %493 = vdwg.mxu0
      %v494 = vadd.f32 %v417, %v489
      %495 = vst.msk [vmem:[#allocation2] sm:$0xff] %vm371, %v494
      // Predicated region
      $region53: #{encoder_forward.13} parent=47 // pred_check
        %p496 = pneg %p340
      $region54: #{encoder_forward.13} parent=47 // pred_check_branch
        %498 = sbr.rel (%p496) target = $region56
      $region55: #{encoder_forward.13} parent=47 // pred_region
        %v499 = vld [vmem:[#allocation2] sm:$0xff]
        %v500 = vadd.f32 %v346, %v499
        %v501 = vld [vmem:[%s4] sm:$0x1]
        %v503 = vlaneseq
        %v504 = vshrl.u32 %v503, 7
        %v505 = vsub.s32 0, %v504
        %v506 = vrot.slane %v501, %v505
        %v508 = vadd.f32 %v500, %v506
        %v509 = vld [vmem:[%s5] sm:$0x1]
        %v510 = vld [vmem:[%s6] sm:$0x1]
        %v511 = vsel %vm371, %v508, 0.0
        %512 = vadd.xlane.f32.xlu0 %v511
        %v513 = vpop.xlane.xlu0 %512
        %v514 = vrcp.pop 32.0
        %v515 = vmul.f32 %v513, %v514
        %v516 = vsub.f32 %v508, %v515
        %v517 = vmul.f32 %v516, %v516
        %v518 = vsel %vm371, %v517, 0.0
        %519 = vadd.xlane.f32.xlu0 %v518
        %v520 = vpop.xlane.xlu0 %519
        %v521 = vmul.f32 %v520, %v514
        %v522 = vadd.f32 %v521, 1e-06
        %v523 = vrsqrt.pop %v522
        %v524 = vmul.f32 %v516, %v523
        %v526 = vlaneseq
        %v527 = vshrl.u32 %v526, 7
        %v528 = vsub.s32 0, %v527
        %v529 = vrot.slane %v509, %v528
        %v531 = vmul.f32 %v524, %v529
        %v533 = vlaneseq
        %v534 = vshrl.u32 %v533, 7
        %v535 = vsub.s32 0, %v534
        %v536 = vrot.slane %v510, %v535
        %v538 = vadd.f32 %v531, %v536
        %539 = vst.msk [vmem:[%s338] sm:$0xff] %vm371, %v538
      $region56: #{encoder_forward.13} parent=47 // pred_fallthru
        _
      %p540 = scmp.lt.s32.totalorder %s22, 1
      %s541 = scalar_select %p540, %s22, 1
      %s542 = smul.addr %s541, 8
      %s543 = scalar_lea.vmem %s7, %s542
      // Predicated region
      $region57: #{encoder_forward.13} parent=47 // pred_check
        %p544 = pneg %p215
      $region58: #{encoder_forward.13} parent=47 // pred_check_branch
        %546 = sbr.rel (%p544) target = $region60
      $region59: #{encoder_forward.13} parent=47 // pred_region
        _
      $region60: #{encoder_forward.13} parent=47 // pred_fallthru
        _
    $region48: #{encoder_forward.13} parent=5 // pred_fallthru
      _
    %p547 = scmp.le.s32.totalorder 2, %s13
    // Predicated region
    $region61: #{encoder_forward.13} parent=5 // pred_check
      %p548 = pneg %p547
    $region62: #{encoder_forward.13} parent=5 // pred_check_branch
      %550 = sbr.rel (%p548) target = $region64
    $region63: #{encoder_forward.13} parent=5 // pred_region
      %s551 = ssub.s32 %s13, 2
      // Predicated region
      $region65: #{encoder_forward.13} parent=63 // pred_check
        %p552 = pneg %p221
      $region66: #{encoder_forward.13} parent=63 // pred_check_branch
        %554 = sbr.rel (%p552) target = $region68
      $region67: #{encoder_forward.13} parent=63 // pred_region
        %p555 = scmp.lt.s32.totalorder %s24, 1
        %s556 = scalar_select %p555, %s24, 1
        %s557 = smul.addr %s556, 8
        %s558 = scalar_lea.vmem %s7, %s557
      $region68: #{encoder_forward.13} parent=63 // pred_fallthru
        _
    $region64: #{encoder_forward.13} parent=5 // pred_fallthru
      _
  $region6: #{encoder_forward.13} parent=0 // loop_footer
    %s17 = sadd.s32 1, %s13
  $region7: #{encoder_forward.13} parent=0 // loop_footer_branch
    %12 = sbr.rel target = $region3
  $region8: #{encoder_forward.13} parent=0 // loop_exit
    _

// kernel: encoder_forward.17
$region0: #{encoder_forward.17}
  #allocation0 [shape = 'u32[]', space=smem, size = 0x4, offset = 0x4, fixed_abs, tag = 'smem constant byte address 0x4 - core index']
  #allocation1 [shape = 'u32[144,128]{1,0:T(1,128)}', space=vmem, size = 0x12000, scoped, tag = 'internal scratch']
  #allocation2 [shape = 'f32[8,32]{1,0:T(8,128)}', space=vmem, size = 0x1000, scoped, tag = 'scratch operand']
  %s0 = inlined_call_operand.vmem [shape: f32[16,32], index: 0, kind: input, shape index: {}]
  %s1 = inlined_call_operand.vmem [shape: bf16[32,64], index: 1, kind: input, shape index: {}]
  %s2 = inlined_call_operand.vmem [shape: f32[1,64], index: 2, kind: input, shape index: {}]
  %s3 = inlined_call_operand.vmem [shape: bf16[64,32], index: 3, kind: input, shape index: {}]
  %s4 = inlined_call_operand.vmem [shape: f32[1,32], index: 4, kind: input, shape index: {}]
  %s5 = inlined_call_operand.vmem [shape: f32[1,32], index: 5, kind: input, shape index: {}]
  %s6 = inlined_call_operand.vmem [shape: f32[1,32], index: 6, kind: input, shape index: {}]
  %s7 = inlined_call_operand.hbm [shape: f32[16,32], index: 7, kind: output, shape index: {}]
  %s8 = sld [smem:[#allocation0]]
  $region69: #{encoder_forward.17} parent=0
    _
  %s10 = ssub.s32 1, %s8
  %s11 = scalar_select 0, %s10, %s8
  $region1: #{encoder_forward.17} parent=0
    #allocation3 [shape = 'u8[8192]{0}', space=vmem, size = 0x2000, scoped, tag = 'output window, operand 0']
    #allocation4 [shape = 's32[2]{0}', space=sflag, size = 0x8, scoped, tag = 'scoped memory for encoder_forward.17']
    %12 = vsyncpa [#allocation4], 0
    %s13 = scalar_lea.sflag [#allocation4], 1
    %14 = vsyncpa %s13, 0
    loop: start=0, step=1, limit=4
    $region2: #{encoder_forward.17} parent=1 // loop_pre_header
      _
    $region3: #{encoder_forward.17} parent=1 // loop_header
      %s16 = sphi 0, %s20
      %p17 = scmp.ge.s32.totalorder %s16, 4
      %s23 = sphi 0, %s35
      %s24 = sphi 0, %s31
      %s25 = sphi 0, %s23
      %s26 = sphi 0, %s24
      %s27 = sphi 0, %s25
      %s28 = sphi 0, %s26
      %s38 = sphi 0, %s40
      %s41 = sphi 0, %s38
      %s42 = sphi 0, %s41
      %s58 = sphi 0, %s42
      %s64 = sphi 0, %s66
      %s67 = sphi 0, %s64
      %s68 = sphi 0, %s67
      %s84 = sphi 0, %s68
      %s90 = sphi 0, %s92
      %s93 = sphi 0, %s90
      %s94 = sphi 0, %s93
      %s110 = sphi 0, %s94
      %s116 = sphi 0, %s118
      %s119 = sphi 0, %s116
      %s120 = sphi 0, %s119
      %s136 = sphi 0, %s120
      %s140 = sphi 0, %s140
      %s142 = sphi 0, %s140
      %s143 = sphi 0, %s142
      %s157 = sphi 0, %s143
      %s161 = sphi 0, %s161
      %s163 = sphi 0, %s161
      %s164 = sphi 0, %s163
      %s178 = sphi 0, %s164
      %s182 = sphi 0, %s182
      %s184 = sphi 0, %s182
      %s185 = sphi 0, %s184
      %s199 = sphi 0, %s185
      %s205 = sphi 0, %s207
      %s208 = sphi 0, %s205
      %s209 = sphi 0, %s208
      %s225 = sphi 0, %s209
    $region4: #{encoder_forward.17} parent=1 // loop_header_branch
      %19 = sbr.rel (%p17) target = $region8
    $region5: #{encoder_forward.17} parent=1 // loop_body
      %s21 = ssub.s32 %s16, 1
      %s22 = ssub.s32 %s16, 2
      %s29 = sadd.s32 1, %s24
      %p30 = scmp.ge.s32.totalorder %s29, 1
      %s31 = scalar_select %p30, 0, %s29
      %s32 = sadd.s32 1, %s23
      %s33 = scalar_select %p30, %s32, %s23
      %p34 = scmp.ge.s32.totalorder %s33, 2
      %s35 = scalar_select %p34, 0, %s33
      %s36 = ssub.s32 %s23, %s35
      %p37 = scmp.eq.s32.totalorder %s36, 0
      %s39 = sadd.s32 %s38, 1
      %s40 = scalar_select %p37, %s38, %s39
      %p43 = pneg %p37
      %p44 = scmp.eq.s32.totalorder %s16, 1
      %p45 = por %p43, %p44
      %p46 = scmp.ne.s32.totalorder %s38, %s41
      %p47 = scmp.eq.s32.totalorder %s16, 0
      %p48 = por %p46, %p47
      %p49 = scmp.ne.s32.totalorder %s38, %s41
      %p50 = scmp.eq.s32.totalorder %s21, 1
      %p51 = por %p49, %p50
      %p52 = scmp.ne.s32.totalorder %s41, %s42
      %p53 = scmp.eq.s32.totalorder %s21, 0
      %p54 = por %p52, %p53
      %p55 = scmp.ne.s32.totalorder %s41, %s42
      %p56 = scmp.eq.s32.totalorder %s22, 1
      %p57 = por %p55, %p56
      %p59 = scmp.ne.s32.totalorder %s42, %s58
      %p60 = scmp.eq.s32.totalorder %s22, 0
      %p61 = por %p59, %p60
      %s62 = ssub.s32 %s24, %s31
      %p63 = scmp.eq.s32.totalorder %s62, 0
      %s65 = sadd.s32 %s64, 1
      %s66 = scalar_select %p63, %s64, %s65
      %p69 = pneg %p63
      %p70 = scmp.eq.s32.totalorder %s16, 1
      %p71 = por %p69, %p70
      %p72 = scmp.ne.s32.totalorder %s64, %s67
      %p73 = scmp.eq.s32.totalorder %s16, 0
      %p74 = por %p72, %p73
      %p75 = scmp.ne.s32.totalorder %s64, %s67
      %p76 = scmp.eq.s32.totalorder %s21, 1
      %p77 = por %p75, %p76
      %p78 = scmp.ne.s32.totalorder %s67, %s68
      %p79 = scmp.eq.s32.totalorder %s21, 0
      %p80 = por %p78, %p79
      %p81 = scmp.ne.s32.totalorder %s67, %s68
      %p82 = scmp.eq.s32.totalorder %s22, 1
      %p83 = por %p81, %p82
      %p85 = scmp.ne.s32.totalorder %s68, %s84
      %p86 = scmp.eq.s32.totalorder %s22, 0
      %p87 = por %p85, %p86
      %s88 = ssub.s32 %s24, %s31
      %p89 = scmp.eq.s32.totalorder %s88, 0
      %s91 = sadd.s32 %s90, 1
      %s92 = scalar_select %p89, %s90, %s91
      %p95 = pneg %p89
      %p96 = scmp.eq.s32.totalorder %s16, 1
      %p97 = por %p95, %p96
      %p98 = scmp.ne.s32.totalorder %s90, %s93
      %p99 = scmp.eq.s32.totalorder %s16, 0
      %p100 = por %p98, %p99
      %p101 = scmp.ne.s32.totalorder %s90, %s93
      %p102 = scmp.eq.s32.totalorder %s21, 1
      %p103 = por %p101, %p102
      %p104 = scmp.ne.s32.totalorder %s93, %s94
      %p105 = scmp.eq.s32.totalorder %s21, 0
      %p106 = por %p104, %p105
      %p107 = scmp.ne.s32.totalorder %s93, %s94
      %p108 = scmp.eq.s32.totalorder %s22, 1
      %p109 = por %p107, %p108
      %p111 = scmp.ne.s32.totalorder %s94, %s110
      %p112 = scmp.eq.s32.totalorder %s22, 0
      %p113 = por %p111, %p112
      %s114 = ssub.s32 %s24, %s31
      %p115 = scmp.eq.s32.totalorder %s114, 0
      %s117 = sadd.s32 %s116, 1
      %s118 = scalar_select %p115, %s116, %s117
      %p121 = pneg %p115
      %p122 = scmp.eq.s32.totalorder %s16, 1
      %p123 = por %p121, %p122
      %p124 = scmp.ne.s32.totalorder %s116, %s119
      %p125 = scmp.eq.s32.totalorder %s16, 0
      %p126 = por %p124, %p125
      %p127 = scmp.ne.s32.totalorder %s116, %s119
      %p128 = scmp.eq.s32.totalorder %s21, 1
      %p129 = por %p127, %p128
      %p130 = scmp.ne.s32.totalorder %s119, %s120
      %p131 = scmp.eq.s32.totalorder %s21, 0
      %p132 = por %p130, %p131
      %p133 = scmp.ne.s32.totalorder %s119, %s120
      %p134 = scmp.eq.s32.totalorder %s22, 1
      %p135 = por %p133, %p134
      %p137 = scmp.ne.s32.totalorder %s120, %s136
      %p138 = scmp.eq.s32.totalorder %s22, 0
      %p139 = por %p137, %p138
      %s141 = sadd.s32 %s140, 1
      %p144 = scmp.eq.s32.totalorder %s16, 1
      %p145 = scmp.ne.s32.totalorder %s140, %s142
      %p146 = scmp.eq.s32.totalorder %s16, 0
      %p147 = por %p145, %p146
      %p148 = scmp.ne.s32.totalorder %s140, %s142
      %p149 = scmp.eq.s32.totalorder %s21, 1
      %p150 = por %p148, %p149
      %p151 = scmp.ne.s32.totalorder %s142, %s143
      %p152 = scmp.eq.s32.totalorder %s21, 0
      %p153 = por %p151, %p152
      %p154 = scmp.ne.s32.totalorder %s142, %s143
      %p155 = scmp.eq.s32.totalorder %s22, 1
      %p156 = por %p154, %p155
      %p158 = scmp.ne.s32.totalorder %s143, %s157
      %p159 = scmp.eq.s32.totalorder %s22, 0
      %p160 = por %p158, %p159
      %s162 = sadd.s32 %s161, 1
      %p165 = scmp.eq.s32.totalorder %s16, 1
      %p166 = scmp.ne.s32.totalorder %s161, %s163
      %p167 = scmp.eq.s32.totalorder %s16, 0
      %p168 = por %p166, %p167
      %p169 = scmp.ne.s32.totalorder %s161, %s163
      %p170 = scmp.eq.s32.totalorder %s21, 1
      %p171 = por %p169, %p170
      %p172 = scmp.ne.s32.totalorder %s163, %s164
      %p173 = scmp.eq.s32.totalorder %s21, 0
      %p174 = por %p172, %p173
      %p175 = scmp.ne.s32.totalorder %s163, %s164
      %p176 = scmp.eq.s32.totalorder %s22, 1
      %p177 = por %p175, %p176
      %p179 = scmp.ne.s32.totalorder %s164, %s178
      %p180 = scmp.eq.s32.totalorder %s22, 0
      %p181 = por %p179, %p180
      %s183 = sadd.s32 %s182, 1
      %p186 = scmp.eq.s32.totalorder %s16, 1
      %p187 = scmp.ne.s32.totalorder %s182, %s184
      %p188 = scmp.eq.s32.totalorder %s16, 0
      %p189 = por %p187, %p188
      %p190 = scmp.ne.s32.totalorder %s182, %s184
      %p191 = scmp.eq.s32.totalorder %s21, 1
      %p192 = por %p190, %p191
      %p193 = scmp.ne.s32.totalorder %s184, %s185
      %p194 = scmp.eq.s32.totalorder %s21, 0
      %p195 = por %p193, %p194
      %p196 = scmp.ne.s32.totalorder %s184, %s185
      %p197 = scmp.eq.s32.totalorder %s22, 1
      %p198 = por %p196, %p197
      %p200 = scmp.ne.s32.totalorder %s185, %s199
      %p201 = scmp.eq.s32.totalorder %s22, 0
      %p202 = por %p200, %p201
      %s203 = ssub.s32 %s23, %s35
      %p204 = scmp.eq.s32.totalorder %s203, 0
      %s206 = sadd.s32 %s205, 1
      %s207 = scalar_select %p204, %s205, %s206
      %p210 = pneg %p204
      %p211 = scmp.eq.s32.totalorder %s16, 1
      %p212 = por %p210, %p211
      %p213 = scmp.ne.s32.totalorder %s205, %s208
      %p214 = scmp.eq.s32.totalorder %s16, 0
      %p215 = por %p213, %p214
      %p216 = scmp.ne.s32.totalorder %s205, %s208
      %p217 = scmp.eq.s32.totalorder %s21, 1
      %p218 = por %p216, %p217
      %p219 = scmp.ne.s32.totalorder %s208, %s209
      %p220 = scmp.eq.s32.totalorder %s21, 0
      %p221 = por %p219, %p220
      %p222 = scmp.ne.s32.totalorder %s208, %s209
      %p223 = scmp.eq.s32.totalorder %s22, 1
      %p224 = por %p222, %p223
      %p226 = scmp.ne.s32.totalorder %s209, %s225
      %p227 = scmp.eq.s32.totalorder %s22, 0
      %p228 = por %p226, %p227
      %p229 = scmp.le.s32.totalorder 1, %s16
      %p230 = scmp.lt.s32.totalorder %s16, 3
      %p231 = pnand %p229, %p230
      %p232 = pneg %p231
      // Predicated region
      $region9: #{encoder_forward.17} parent=5 // pred_check
        _
      $region10: #{encoder_forward.17} parent=5 // pred_check_branch
        %234 = sbr.rel (%p231) target = $region12
      $region11: #{encoder_forward.17} parent=5 // pred_region
        %s235 = ssub.s32 %s16, 1
        // Predicated region
        $region13: #{encoder_forward.17} parent=11 // pred_check
          %p236 = pneg %p80
        $region14: #{encoder_forward.17} parent=11 // pred_check_branch
          %238 = sbr.rel (%p236) target = $region16
        $region15: #{encoder_forward.17} parent=11 // pred_region
          %p239 = scmp.lt.s32.totalorder %s26, 0
          %s240 = scalar_select %p239, %s26, 0
          %s241 = smul.addr %s240, 4
          %s242 = scalar_lea.vmem %s1, %s241
        $region16: #{encoder_forward.17} parent=11 // pred_fallthru
          _
        // Predicated region
        $region17: #{encoder_forward.17} parent=11 // pred_check
          %p243 = pneg %p106
        $region18: #{encoder_forward.17} parent=11 // pred_check_branch
          %245 = sbr.rel (%p243) target = $region20
        $region19: #{encoder_forward.17} parent=11 // pred_region
          %p246 = scmp.lt.s32.totalorder %s26, 0
          %s247 = scalar_select %p246, %s26, 0
          %s248 = scalar_lea.vmem %s2, %s247
        $region20: #{encoder_forward.17} parent=11 // pred_fallthru
          _
        // Predicated region
        $region21: #{encoder_forward.17} parent=11 // pred_check
          %p249 = pneg %p132
        $region22: #{encoder_forward.17} parent=11 // pred_check_branch
          %251 = sbr.rel (%p249) target = $region24
        $region23: #{encoder_forward.17} parent=11 // pred_region
          %s252 = smul.u32 8, %s26
          %p253 = scmp.lt.s32.totalorder %s252, 7
          %s254 = scalar_select %p253, %s252, 7
          %s255 = smul.addr %s254, 4
          %s256 = scalar_lea.vmem %s3, %s255
          %s257 = smul.u32 8, %s26
        $region24: #{encoder_forward.17} parent=11 // pred_fallthru
          _
        // Predicated region
        $region25: #{encoder_forward.17} parent=11 // pred_check
          %p258 = pneg %p153
        $region26: #{encoder_forward.17} parent=11 // pred_check_branch
          %260 = sbr.rel (%p258) target = $region28
        $region27: #{encoder_forward.17} parent=11 // pred_region
          _
        $region28: #{encoder_forward.17} parent=11 // pred_fallthru
          _
        // Predicated region
        $region29: #{encoder_forward.17} parent=11 // pred_check
          %p261 = pneg %p174
        $region30: #{encoder_forward.17} parent=11 // pred_check_branch
          %263 = sbr.rel (%p261) target = $region32
        $region31: #{encoder_forward.17} parent=11 // pred_region
          _
        $region32: #{encoder_forward.17} parent=11 // pred_fallthru
          _
        // Predicated region
        $region33: #{encoder_forward.17} parent=11 // pred_check
          %p264 = pneg %p195
        $region34: #{encoder_forward.17} parent=11 // pred_check_branch
          %266 = sbr.rel (%p264) target = $region36
        $region35: #{encoder_forward.17} parent=11 // pred_region
          _
        $region36: #{encoder_forward.17} parent=11 // pred_fallthru
          _
      $region12: #{encoder_forward.17} parent=5 // pred_fallthru
        _
      %p267 = scmp.lt.s32.totalorder %s16, 2
      // Predicated region
      $region37: #{encoder_forward.17} parent=5 // pred_check
        %p268 = pneg %p267
      $region38: #{encoder_forward.17} parent=5 // pred_check_branch
        %270 = sbr.rel (%p268) target = $region40
      $region39: #{encoder_forward.17} parent=5 // pred_region
        // Predicated region
        $region41: #{encoder_forward.17} parent=39 // pred_check
          %p271 = pneg %p48
        $region42: #{encoder_forward.17} parent=39 // pred_check_branch
          %273 = sbr.rel (%p271) target = $region44
        $region43: #{encoder_forward.17} parent=39 // pred_region
          %p274 = scmp.lt.s32.totalorder %s23, 1
          %s275 = scalar_select %p274, %s23, 1
          %s276 = smul.addr %s275, 8
          %s277 = scalar_lea.vmem %s0, %s276
        $region44: #{encoder_forward.17} parent=39 // pred_fallthru
          _
      $region40: #{encoder_forward.17} parent=5 // pred_fallthru
        _
      %p278 = scmp.le.s32.totalorder 1, %s16
      %p279 = scmp.lt.s32.totalorder %s16, 3
      %p280 = pnand %p278, %p279
      %p281 = pneg %p280
      // Predicated region
      $region45: #{encoder_forward.17} parent=5 // pred_check
        _
      $region46: #{encoder_forward.17} parent=5 // pred_check_branch
        %283 = sbr.rel (%p280) target = $region48
      $region47: #{encoder_forward.17} parent=5 // pred_region
        %s284 = ssub.s32 %s16, 1
        %p285 = scmp.lt.s32.totalorder %s25, 1
        %s286 = scalar_select %p285, %s25, 1
        %s287 = smul.addr %s286, 8
        %s288 = scalar_lea.vmem %s0, %s287
        %p289 = pneg %p54
        %p290 = pneg %p51
        %p291 = scmp.lt.s32.totalorder %s26, 0
        %s292 = scalar_select %p291, %s26, 0
        %s293 = smul.addr %s292, 4
        %s294 = scalar_lea.vmem %s1, %s293
        %p295 = pneg %p80
        %p296 = pneg %p77
        %p297 = scmp.lt.s32.totalorder %s26, 0
        %s298 = scalar_select %p297, %s26, 0
        %s299 = scalar_lea.vmem %s2, %s298
        %p300 = pneg %p106
        %p301 = pneg %p103
        %s302 = smul.u32 8, %s26
        %p303 = scmp.lt.s32.totalorder %s302, 7
        %s304 = scalar_select %p303, %s302, 7
        %s305 = smul.addr %s304, 4
        %s306 = scalar_lea.vmem %s3, %s305
        %p307 = pneg %p132
        %p308 = pneg %p129
        %p309 = pneg %p153
        %p310 = pneg %p150
        %p311 = pneg %p174
        %p312 = pneg %p171
        %p313 = pneg %p195
        %p314 = pneg %p192
        %p315 = pneg %p221
        %p316 = pneg %p218
        %s317 = sand.u32 %s208, 1
        %s318 = scalar_lea.sflag [#allocation4], %s317
        %s319 = sand.u32 %s208, 1
        %s320 = smul.addr %s319, 8
        %s321 = scalar_lea.vmem [#allocation3], %s320
        %p322 = scmp.lt.s32.totalorder %s25, 1
        %s323 = scalar_select %p322, %s25, 1
        %s324 = smul.addr %s323, 8
        %s325 = scalar_lea.vmem %s0, %s324
        %p326 = scmp.lt.s32.totalorder %s26, 0
        %s327 = scalar_select %p326, %s26, 0
        %s328 = smul.addr %s327, 4
        %s329 = scalar_lea.vmem %s1, %s328
        %p330 = scmp.lt.s32.totalorder %s26, 0
        %s331 = scalar_select %p330, %s26, 0
        %s332 = scalar_lea.vmem %s2, %s331
        %s333 = smul.u32 8, %s26
        %p334 = scmp.lt.s32.totalorder %s333, 7
        %s335 = scalar_select %p334, %s333, 7
        %s336 = smul.addr %s335, 4
        %s337 = scalar_lea.vmem %s3, %s336
        %s338 = smul.u32 8, %s26
        %p340 = scmp.eq.s32.totalorder %s26, 0
        // Predicated region
        $region49: #{encoder_forward.17} parent=47 // pred_check
          %p341 = pneg %p340
        $region50: #{encoder_forward.17} parent=47 // pred_check_branch
          %343 = sbr.rel (%p341) target = $region52
        $region51: #{encoder_forward.17} parent=47 // pred_region
          %vm344 = vcmask 261120
          %345 = vst.msk [vmem:[#allocation2] sm:$0xff] %vm344, 0.0
        $region52: #{encoder_forward.17} parent=47 // pred_fallthru
          _
        %v346 = vld [vmem:[%s325] sm:$0xff]
        %v347 = vpack.c.bf16 %v346, %v346
        %v348 = vld [vmem:[%s329] sm:$0xf]
        %v349 = vld [vmem:[%s329 + $0x4] sm:$0xf]
        %v350 = vld [vmem:[%s329 + $0x8] sm:$0xf]
        %v351 = vld [vmem:[%s329 + $0xc] sm:$0xf]
        %v352 = vld [vmem:[%s332] sm:$0x1]
        %v354 = vlaneseq
        %v355 = vshrl.u32 %v354, 7
        %v356 = vsub.s32 0, %v355
        %v357 = vrot.slane %v352, %v356
        %v363 = vunpack.c.l.b16 %v348
        %v364 = vunpack.c.l.b16 %v349
        %v365 = vunpack.c.l.b16 %v350
        %v366 = vunpack.c.l.b16 %v351
        %v367 = vpack.c.b16 %v364, %v363
        %v368 = vpack.c.b16 %v366, %v365
        %vm371 = vcmask 261120
        %v373 = vsel %vm371, %v347, 0
        %375 = vmatprep.subr.bf16.mxu0 0
        %376 = vmatpush1.bf16.msra.mxu0 0
        %377 = vmatprep.subr.bf16.mxu0 0
        %378 = vmatpush1.bf16.msra.mxu0 0
        %379 = vmatprep.subr.bf16.mxu0 0
        %380 = vmatpush1.bf16.msra.mxu0 0
        %381 = vmatprep.subr.bf16.mxu0 0
        %382 = vmatpush1.bf16.msra.mxu0 0
        %383 = vmatprep.subr.bf16.mxu0 0
        %384 = vmatpush1.bf16.msra.mxu0 0
        %385 = vmatprep.subr.bf16.mxu0 0
        %386 = vmatpush1.bf16.msra.mxu0 0
        %387 = vmatprep.subr.bf16.mxu0 0
        %388 = vmatpush1.bf16.msra.mxu0 %v368
        %389 = vmatprep.subr.bf16.mxu0 0
        %390 = vmatpush1.bf16.msra.mxu0 %v367
        %391 = vmatprep.subr.bf16.mxu0 0
        %392 = vmatpush2.bf16.msra.mxu0 0
        %393 = vmatprep.subr.bf16.mxu0 0
        %394 = vmatpush2.bf16.msra.mxu0 0
        %395 = vmatprep.subr.bf16.mxu0 0
        %396 = vmatpush2.bf16.msra.mxu0 0
        %397 = vmatprep.subr.bf16.mxu0 0
        %398 = vmatpush2.bf16.msra.mxu0 0
        %399 = vmatprep.subr.bf16.mxu0 0
        %400 = vmatpush2.bf16.msra.mxu0 0
        %401 = vmatprep.subr.bf16.mxu0 0
        %402 = vmatpush2.bf16.msra.mxu0 0
        %403 = vmatprep.subr.bf16.mxu0 0
        %404 = vmatpush2.bf16.msra.mxu0 0
        %405 = vmatprep.subr.bf16.mxu0 0
        %406 = vmatpush2.bf16.msra.mxu0 0
        %407 = vmatprep.mubr.bf16.mxu0 0
        %408 = vmatmul.mubr.bf16.gmra.mxu0 %v373
        %v409 = vpop.f32.mrf.mxu0
        %v410 = vadd.f32 %v357, %v409
        %v411 = vpop.f32.mrf.mxu0
        %v412 = vpop.f32.mrf.mxu0
        %v413 = vpop.f32.mrf.mxu0
        %414 = vdwg.mxu0
        %v415 = vmax.f32 %v410, 0.0
        %v416 = vpack.c.bf16 %v415, %v415
        %v417 = vld [vmem:[#allocation2] sm:$0xff]
        %v418 = vld [vmem:[%s337] sm:$0xf]
        %v419 = vld [vmem:[%s337 + $0x4] sm:$0xf]
        %v420 = vld [vmem:[%s337 + $0x8] sm:$0xf]
        %v421 = vld [vmem:[%s337 + $0xc] sm:$0xf]
        %v422 = vld [vmem:[%s337 + $0x10] sm:$0xf]
        %v423 = vld [vmem:[%s337 + $0x14] sm:$0xf]
        %v424 = vld [vmem:[%s337 + $0x18] sm:$0xf]
        %v425 = vld [vmem:[%s337 + $0x1c] sm:$0xf]
        %v434 = vunpack.c.l.b16 %v418
        %v435 = vunpack.c.l.b16 %v419
        %v436 = vunpack.c.l.b16 %v420
        %v437 = vunpack.c.l.b16 %v421
        %v438 = vunpack.c.l.b16 %v422
        %v439 = vunpack.c.l.b16 %v423
        %v440 = vunpack.c.l.b16 %v424
        %v441 = vunpack.c.l.b16 %v425
        %v442 = vpack.c.b16 %v435, %v434
        %v443 = vpack.c.b16 %v437, %v436
        %v444 = vpack.c.b16 %v439, %v438
        %v445 = vpack.c.b16 %v441, %v440
        %vm450 = vcmask 523264
        %v452 = vsel %vm450, %v416, 0
        %454 = vmatprep.subr.bf16.mxu0 0
        %455 = vmatpush1.bf16.msra.mxu0 0
        %456 = vmatprep.subr.bf16.mxu0 0
        %457 = vmatpush1.bf16.msra.mxu0 0
        %458 = vmatprep.subr.bf16.mxu0 0
        %459 = vmatpush1.bf16.msra.mxu0 0
        %460 = vmatprep.subr.bf16.mxu0 0
        %461 = vmatpush1.bf16.msra.mxu0 0
        %462 = vmatprep.subr.bf16.mxu0 0
        %463 = vmatpush1.bf16.msra.mxu0 %v445
        %464 = vmatprep.subr.bf16.mxu0 0
        %465 = vmatpush1.bf16.msra.mxu0 %v444
        %466 = vmatprep.subr.bf16.mxu0 0
        %467 = vmatpush1.bf16.msra.mxu0 %v443
        %468 = vmatprep.subr.bf16.mxu0 0
        %469 = vmatpush1.bf16.msra.mxu0 %v442
        %470 = vmatprep.subr.bf16.mxu0 0
        %471 = vmatpush2.bf16.msra.mxu0 0
        %472 = vmatprep.subr.bf16.mxu0 0
        %473 = vmatpush2.bf16.msra.mxu0 0
        %474 = vmatprep.subr.bf16.mxu0 0
        %475 = vmatpush2.bf16.msra.mxu0 0
        %476 = vmatprep.subr.bf16.mxu0 0
        %477 = vmatpush2.bf16.msra.mxu0 0
        %478 = vmatprep.subr.bf16.mxu0 0
        %479 = vmatpush2.bf16.msra.mxu0 0
        %480 = vmatprep.subr.bf16.mxu0 0
        %481 = vmatpush2.bf16.msra.mxu0 0
        %482 = vmatprep.subr.bf16.mxu0 0
        %483 = vmatpush2.bf16.msra.mxu0 0
        %484 = vmatprep.subr.bf16.mxu0 0
        %485 = vmatpush2.bf16.msra.mxu0 0
        %486 = vmatprep.mubr.bf16.mxu0 0
        %487 = vmatmul.mubr.bf16.gmra.mxu0 %v452
        %v488 = vpop.f32.mrf.mxu0
        %v489 = vadd.f32 0.0, %v488
        %v490 = vpop.f32.mrf.mxu0
        %v491 = vpop.f32.mrf.mxu0
        %v492 = vpop.f32.mrf.mxu0
        %493 = vdwg.mxu0
        %v494 = vadd.f32 %v417, %v489
        %495 = vst.msk [vmem:[#allocation2] sm:$0xff] %vm371, %v494
        // Predicated region
        $region53: #{encoder_forward.17} parent=47 // pred_check
          %p496 = pneg %p340
        $region54: #{encoder_forward.17} parent=47 // pred_check_branch
          %498 = sbr.rel (%p496) target = $region56
        $region55: #{encoder_forward.17} parent=47 // pred_region
          %v499 = vld [vmem:[#allocation2] sm:$0xff]
          %v500 = vadd.f32 %v346, %v499
          %v501 = vld [vmem:[%s4] sm:$0x1]
          %v503 = vlaneseq
          %v504 = vshrl.u32 %v503, 7
          %v505 = vsub.s32 0, %v504
          %v506 = vrot.slane %v501, %v505
          %v508 = vadd.f32 %v500, %v506
          %v509 = vld [vmem:[%s5] sm:$0x1]
          %v510 = vld [vmem:[%s6] sm:$0x1]
          %v511 = vsel %vm371, %v508, 0.0
          %512 = vadd.xlane.f32.xlu0 %v511
          %v513 = vpop.xlane.xlu0 %512
          %v514 = vrcp.pop 32.0
          %v515 = vmul.f32 %v513, %v514
          %v516 = vsub.f32 %v508, %v515
          %v517 = vmul.f32 %v516, %v516
          %v518 = vsel %vm371, %v517, 0.0
          %519 = vadd.xlane.f32.xlu0 %v518
          %v520 = vpop.xlane.xlu0 %519
          %v521 = vmul.f32 %v520, %v514
          %v522 = vadd.f32 %v521, 1e-06
          %v523 = vrsqrt.pop %v522
          %v524 = vmul.f32 %v516, %v523
          %v526 = vlaneseq
          %v527 = vshrl.u32 %v526, 7
          %v528 = vsub.s32 0, %v527
          %v529 = vrot.slane %v509, %v528
          %v531 = vmul.f32 %v524, %v529
          %v533 = vlaneseq
          %v534 = vshrl.u32 %v533, 7
          %v535 = vsub.s32 0, %v534
          %v536 = vrot.slane %v510, %v535
          %v538 = vadd.f32 %v531, %v536
          %539 = vst.msk [vmem:[%s321] sm:$0xff] %vm371, %v538
        $region56: #{encoder_forward.17} parent=47 // pred_fallthru
          _
        %s540 = sand.u32 %s208, 1
        %s541 = scalar_lea.sflag [#allocation4], %s540
        %s542 = sand.u32 %s208, 1
        %s543 = smul.addr %s542, 8
        %s544 = scalar_lea.vmem [#allocation3], %s543
        // Predicated region
        $region57: #{encoder_forward.17} parent=47 // pred_check
          %p545 = pneg %p218
        $region58: #{encoder_forward.17} parent=47 // pred_check_branch
          %547 = sbr.rel (%p545) target = $region60
        $region59: #{encoder_forward.17} parent=47 // pred_region
          %s549 = ssub.s32 128, 128
          %550 = vsyncadd %s541, %s549
          %s551 = smul.addr %s25, 128
          %s552 = scalar_lea.hbm %s7, %s551
          %s554 = sshll.u32 %s544, 4
          %s555 = int_to_ptr.vmem [resolvable:$true] %s554
          %557 = dma.vmem_to_hbm [thread:$0]  %s555, 128, %s552, %s541
        $region60: #{encoder_forward.17} parent=47 // pred_fallthru
          _
      $region48: #{encoder_forward.17} parent=5 // pred_fallthru
        _
      %p558 = scmp.le.s32.totalorder 2, %s16
      // Predicated region
      $region61: #{encoder_forward.17} parent=5 // pred_check
        %p559 = pneg %p558
      $region62: #{encoder_forward.17} parent=5 // pred_check_branch
        %561 = sbr.rel (%p559) target = $region64
      $region63: #{encoder_forward.17} parent=5 // pred_region
        %s562 = ssub.s32 %s16, 2
        // Predicated region
        $region65: #{encoder_forward.17} parent=63 // pred_check
          %p563 = pneg %p224
        $region66: #{encoder_forward.17} parent=63 // pred_check_branch
          %565 = sbr.rel (%p563) target = $region68
        $region67: #{encoder_forward.17} parent=63 // pred_region
          %s566 = sand.u32 %s209, 1
          %s567 = scalar_lea.sflag [#allocation4], %s566
          %s568 = sand.u32 %s209, 1
          %s569 = smul.addr %s568, 8
          %s570 = scalar_lea.vmem [#allocation3], %s569
          %571 = dma.done %s567, 128
        $region68: #{encoder_forward.17} parent=63 // pred_fallthru
          _
      $region64: #{encoder_forward.17} parent=5 // pred_fallthru
        _
    $region6: #{encoder_forward.17} parent=1 // loop_footer
      %s20 = sadd.s32 1, %s16
    $region7: #{encoder_forward.17} parent=1 // loop_footer_branch
      %15 = sbr.rel target = $region3
    $region8: #{encoder_forward.17} parent=1 // loop_exit
      _
    %572 = vsyncpa [#allocation4], 1
    %s573 = scalar_lea.sflag [#allocation4], 1
    %574 = vsyncpa %s573, 1

</llo_original>
